<compile_context>
chip_gen: v7x
topology: tpu7x:2x2x1
jax: 0.10.0
libtpu: 0.0.40
codegen_flags: <defaults>
</compile_context>

<pallas_src>
import jax
import jax.numpy as jnp
from jax.experimental import pallas as pl
from jax.experimental.pallas import tpu as pltpu

GN_EPS = 1e-5      # torch.nn.GroupNorm default
OUT_PAD = 128      # lane-dense width of the final conv / output store (real channels: 2)


def _round_up(x, m):
    return ((x + m - 1) // m) * m


def _loc_head_kernel(x_ref, w1_ref, b1_ref, g1_ref, bt1_ref,
                     w2_ref, b2_ref, g2_ref, bt2_ref,
                     w3_ref, b3_ref, a_ref, bc_ref, q_ref, meta_ref,
                     o_ref):
    """One row-block (a whole number of (level, batch) segments) per grid step.

    x_ref    : (r_blk, Cin)  bf16 channels-last rows; pad / dummy rows are zero
    w*_ref   : (3*C, Cout)   bf16 pre-stacked conv weights (rows [k*C:(k+1)*C] == torch w[:,:,k].T)
    b*_ref   : (1, Cout) f32 conv bias ; g*/bt*: (1, Cf) GroupNorm gamma / beta
    a_ref    : (1, s_pad, r_blk) f32 per-segment row-average matrix (valid mask and 1/T folded in)
    bc_ref   : (r_blk, s_pad)    f32 broadcast-back matrix (row r -> its segment)
    q_ref    : (Cf, Cf)          f32 per-group channel-average projector (/ (Cf // G))
    meta_ref : (r_blk, 2)   column 0 = valid-row mask, column 1 = per-level ScaleExp scale
    o_ref    : (r_blk, 128) lane-dense f32 output; only lanes 0..1 are real
    """
    r_blk = x_ref.shape[0]
    c_feat = g1_ref.shape[1]

    valid = meta_ref[:, 0:1]                               # (r_blk, 1)
    scale = meta_ref[:, 1:2]                               # (r_blk, 1)
    a = a_ref[0]                                           # (s_pad, r_blk)
    bc = bc_ref[...]                                       # (r_blk, s_pad)
    q = q_ref[...]                                         # (Cf, Cf)

    # Hoisted broadcasts / masks (JAX does not CSE broadcast_in_dim).
    valid_bc = jnp.broadcast_to(valid, (r_blk, c_feat))
    row = jax.lax.broadcasted_iota(jnp.int32, (r_blk, 1), 0)
    not_last = (row != (r_blk - 1)).astype(jnp.float32)    # zero the roll wrap-around row

    def conv3(h, w_ref, b_ref):
        # Conv1d(kernel=3, pad=1) as 3 K=C MXU matmuls on h[t-1], h[t], h[t+1].
        # Shifts ride the XLU (pltpu.roll).  Segment-boundary / conv zero-padding is free:
        # every segment slot ends with >= 1 zero row, so the "+1"-shifted wrap-around row is
        # the only one that needs explicit masking; the "-1" wrap source is a zero pad row.
        c = h.shape[1]
        h_prev = pltpu.roll(h, 1, axis=0)                          # h[t-1]
        h_next = pltpu.roll(h, r_blk - 1, axis=0) * not_last       # h[t+1], wrap row zeroed
        y = jnp.dot(h_prev.astype(jnp.bfloat16), w_ref[0:c, :],
                    preferred_element_type=jnp.float32)
        y = y + jnp.dot(h.astype(jnp.bfloat16), w_ref[c:2 * c, :],
                        preferred_element_type=jnp.float32)
        y = y + jnp.dot(h_next.astype(jnp.bfloat16), w_ref[2 * c:3 * c, :],
                        preferred_element_type=jnp.float32)
        return y + b_ref[...]

    def gn_relu(y, g_ref, bt_ref):
        # GroupNorm stats over (T_valid, C//G) per (segment, group), factored and in f32:
        #   seg = A @ y  (per-segment row avg, valid/T folded into A)
        #   seg_q = seg @ Q (per-group channel avg), mean = Bc @ seg_q (broadcast back).
        seg_m = jnp.dot(a, y, preferred_element_type=jnp.float32)         # (s_pad, Cf)
        seg_v = jnp.dot(a, y * y, preferred_element_type=jnp.float32)     # (s_pad, Cf)
        seg_m = jnp.dot(seg_m, q, preferred_element_type=jnp.float32)
        seg_v = jnp.dot(seg_v, q, preferred_element_type=jnp.float32)
        mean = jnp.dot(bc, seg_m, preferred_element_type=jnp.float32)     # (r_blk, Cf)
        ex2 = jnp.dot(bc, seg_v, preferred_element_type=jnp.float32)      # (r_blk, Cf)
        inv = jax.lax.rsqrt(ex2 - mean * mean + GN_EPS)
        yn = (y - mean) * inv * g_ref[...] + bt_ref[...]
        # ReLU, then re-zero pad rows so the next conv's shifted taps read zeros.
        return jnp.maximum(yn, 0.0) * valid_bc

    x = x_ref[...].astype(jnp.float32)                     # bf16 DMA, f32 elementwise math
    h = gn_relu(conv3(x, w1_ref, b1_ref), g1_ref, bt1_ref)          # layer 1
    h = gn_relu(conv3(h, w2_ref, b2_ref), g2_ref, bt2_ref)          # layer 2
    logits = conv3(h, w3_ref, b3_ref)                      # (r_blk, 128), lanes 0..1 real
    o_ref[...] = jnp.exp(logits * scale)                   # ScaleExp: exp(scale * x)


def init_loc_head_params(key, c_in, c_feat, groups, head_layer):
    """Synthetic init mirroring init_weights(): Conv1d kaiming_normal(fan_out, relu),
    conv bias = 0, GroupNorm weight = 1 / bias = 0, ScaleExp scale = 1.0 per level.
    Conv weights are pre-stacked to (3*Cin, Cout); the final conv is lane-padded to
    OUT_PAD output channels.  NOTE: the padded w3/b3 lanes MUST stay exactly zero so the
    padded output lanes are exp(0)=1 (finite) before being sliced off."""
    del groups
    k1, k2, k3 = jax.random.split(key, 3)
    w1 = jax.random.normal(k1, (3 * c_in, c_feat), jnp.float32) * jnp.sqrt(2.0 / (c_feat * 3))
    w2 = jax.random.normal(k2, (3 * c_feat, c_feat), jnp.float32) * jnp.sqrt(2.0 / (c_feat * 3))
    w3r = jax.random.normal(k3, (3 * c_feat, 2), jnp.float32) * jnp.sqrt(2.0 / (2 * 3))
    w3 = jnp.zeros((3 * c_feat, OUT_PAD), jnp.float32).at[:, :2].set(w3r)
    b1 = jnp.zeros((1, c_feat), jnp.float32)
    b2 = jnp.zeros((1, c_feat), jnp.float32)
    b3 = jnp.zeros((1, OUT_PAD), jnp.float32)
    g1 = jnp.ones((1, c_feat), jnp.float32)
    bt1 = jnp.zeros((1, c_feat), jnp.float32)
    g2 = jnp.ones((1, c_feat), jnp.float32)
    bt2 = jnp.zeros((1, c_feat), jnp.float32)
    params = (w1, b1, g1, bt1, w2, b2, g2, bt2, w3, b3)
    scales = [jnp.float32(1.0) for _ in range(head_layer)]     # ScaleExp init 1.0
    return params, scales


def loc_head_forward(fpn_feats_nct, params, scales, groups, num_row_blocks=4):
    """LocHead.forward: list of NCT FPN feats -> list of (B, T_i, 2) offsets.
    All levels and batch elements are fused into a single pallas_call."""
    # TODO(synk): the torch.isnan asserts in the reference forward are host-side runtime
    # checks with no in-kernel equivalent; they are omitted here.
    (w1, b1, g1, bt1, w2, b2, g2, bt2, w3, b3) = params
    L = len(fpn_feats_nct)
    B, c_in, _ = fpn_feats_nct[0].shape
    c_feat = g1.shape[1]
    assert c_feat % groups == 0
    Ts = [int(f.shape[2]) for f in fpn_feats_nct]

    num_row_blocks = max(int(num_row_blocks), 1)
    # Each (level, batch) pair is one "segment" of t_slot rows.  t_slot >= max_T + 1 gives
    # >= 1 zero row after every segment (the conv zero halo); multiple of 16 keeps bf16
    # (16,128)-packed block shapes legal and all blocks sublane-aligned.
    t_slot = _round_up(max(Ts) + 1, 16)
    n_seg = L * B
    # Pad the segment count so EVERY block owns the same whole number of segments (explicit,
    # not a silent 1-block fallback); keep num_row_blocks even on v7x for dual-TC work.
    n_seg_pad = _round_up(n_seg, num_row_blocks)
    s_blk = n_seg_pad // num_row_blocks
    s_pad = _round_up(s_blk, 8)
    r_blk = s_blk * t_slot
    R = n_seg_pad * t_slot

    # ---- fused channels-last slab: rows = (segment, t) on sublanes, channels on lanes ----
    xs, valids, scls, t_segs = [], [], [], []
    for l, f in enumerate(fpn_feats_nct):
        x_btc = jnp.transpose(f, (0, 2, 1)).astype(jnp.float32)        # NCT -> (B, T, C)
        xs.append(jnp.pad(x_btc, ((0, 0), (0, t_slot - Ts[l]), (0, 0))))
        v = (jnp.arange(t_slot) < Ts[l]).astype(jnp.float32)
        valids.append(jnp.broadcast_to(v, (B, t_slot)))
        scls.append(jnp.broadcast_to(jnp.asarray(scales[l], jnp.float32), (B, t_slot)))
        t_segs += [Ts[l]] * B
    x_seg = jnp.concatenate(xs, axis=0)                                # (n_seg, t_slot, Cin)
    valid_2d = jnp.concatenate(valids, axis=0)                         # (n_seg, t_slot)
    scale_2d = jnp.concatenate(scls, axis=0)
    pad_seg = n_seg_pad - n_seg
    if pad_seg:                                                        # dummy (all-invalid) segments
        x_seg = jnp.pad(x_seg, ((0, pad_seg), (0, 0), (0, 0)))
        valid_2d = jnp.pad(valid_2d, ((0, pad_seg), (0, 0)))
        scale_2d = jnp.pad(scale_2d, ((0, pad_seg), (0, 0)))
        t_segs += [1] * pad_seg                                        # avoid 0-divide in A
    x_rows = x_seg.reshape(R, c_in).astype(jnp.bfloat16)               # bf16 MXU operand / DMA
    meta = jnp.stack([valid_2d.reshape(R), scale_2d.reshape(R)], axis=1)   # (R, 2) f32

    # ---- factored GroupNorm-stat projectors (linear size, no R x R matrices) -------------
    t_of_seg = jnp.asarray(t_segs, jnp.float32)                        # (n_seg_pad,)
    a_rows = valid_2d / t_of_seg[:, None]                              # (n_seg_pad, t_slot)
    seg_eye = jnp.eye(s_blk, dtype=jnp.float32)
    a_blocks = (seg_eye[None, :, :, None] *
                a_rows.reshape(num_row_blocks, 1, s_blk, t_slot)
                ).reshape(num_row_blocks, s_blk, r_blk)
    a_blocks = jnp.pad(a_blocks, ((0, 0), (0, s_pad - s_blk), (0, 0)))  # (nb, s_pad, r_blk)
    bc_block = jnp.pad(jnp.repeat(seg_eye, t_slot, axis=0),
                       ((0, 0), (0, s_pad - s_blk)))                    # (r_blk, s_pad), shared

    cg = c_feat // groups
    grp = jnp.arange(c_feat) // cg
    q = (grp[:, None] == grp[None, :]).astype(jnp.float32) / cg         # (Cf, Cf)

    # bf16 conv weights (MXU operands); biases / GN affine / projectors stay f32.
    w1b, w2b, w3b = (w.astype(jnp.bfloat16) for w in (w1, w2, w3))

    # Per-block VMEM footprint -> explicit limit (double-buffered blocks + headroom),
    # capped well below v7x's 64 MiB physical VMEM (v5e/v6e have 128 MiB).
    blk_bytes = (r_blk * c_in * 2 + r_blk * OUT_PAD * 4
                 + s_pad * r_blk * 4 + r_blk * s_pad * 4 + r_blk * 128 * 4
                 + (3 * c_in * c_feat + 3 * c_feat * c_feat + 3 * c_feat * OUT_PAD) * 2
                 + (4 * c_feat + 2 * OUT_PAD) * 4 + c_feat * c_feat * 4)
    vmem_limit = int(min(max(4 * blk_bytes, 8 * 2 ** 20), 48 * 2 ** 20))

    # NOTE: the constant-index weight/Q specs are left at default double-buffering;
    # pl.Buffered(1) (pipeline_mode) would trim one redundant VMEM copy of each.
    out = pl.pallas_call(
        _loc_head_kernel,
        out_shape=jax.ShapeDtypeStruct((R, OUT_PAD), jnp.float32),
        grid=(num_row_blocks,),
        in_specs=[
            pl.BlockSpec((r_blk, c_in), lambda i: (i, 0)),               # x rows (bf16)
            pl.BlockSpec((3 * c_in, c_feat), lambda i: (0, 0)),          # w1 (bf16)
            pl.BlockSpec((1, c_feat), lambda i: (0, 0)),                 # b1
            pl.BlockSpec((1, c_feat), lambda i: (0, 0)),                 # gn1 gamma
            pl.BlockSpec((1, c_feat), lambda i: (0, 0)),                 # gn1 beta
            pl.BlockSpec((3 * c_feat, c_feat), lambda i: (0, 0)),        # w2 (bf16)
            pl.BlockSpec((1, c_feat), lambda i: (0, 0)),                 # b2
            pl.BlockSpec((1, c_feat), lambda i: (0, 0)),                 # gn2 gamma
            pl.BlockSpec((1, c_feat), lambda i: (0, 0)),                 # gn2 beta
            pl.BlockSpec((3 * c_feat, OUT_PAD), lambda i: (0, 0)),       # w3 (bf16, lane-padded)
            pl.BlockSpec((1, OUT_PAD), lambda i: (0, 0)),                # b3 (lane-padded)
            pl.BlockSpec((1, s_pad, r_blk), lambda i: (i, 0, 0)),        # A  (segment row-avg)
            pl.BlockSpec((r_blk, s_pad), lambda i: (0, 0)),              # Bc (broadcast back)
            pl.BlockSpec((c_feat, c_feat), lambda i: (0, 0)),            # Q  (group avg)
            pl.BlockSpec((r_blk, 2), lambda i: (i, 0)),                  # meta [valid, scale]
        ],
        out_specs=pl.BlockSpec((r_blk, OUT_PAD), lambda i: (i, 0)),
        compiler_params=pltpu.CompilerParams(
            dimension_semantics=("parallel",),
            vmem_limit_bytes=vmem_limit),
    )(x_rows, w1b, b1, g1, bt1, w2b, b2, g2, bt2, w3b, b3,
      a_blocks, bc_block, q, meta)

    # Un-fuse: (R, 128) -> per-level (B, T_i, 2), matching .view(B,2,-1).permute(0,2,1).
    out = out.reshape(n_seg_pad, t_slot, OUT_PAD)
    return [out[l * B:(l + 1) * B, :Ts[l], :2] for l in range(L)]


if __name__ == "__main__":
    # Small-but-lane-dense demo shapes (FPN heads typically use >=128 channels; if the
    # production width were <128 the hidden channels would be lane-padded like w3/b3).
    B, C_IN, C_FEAT, GROUPS = 2, 128, 128, 8
    HEAD_LAYER = 2
    T_LEVELS = [16, 8]

    key = jax.random.PRNGKey(0)
    kp, *kx = jax.random.split(key, 1 + HEAD_LAYER)
    params, scales = init_loc_head_params(kp, C_IN, C_FEAT, GROUPS, HEAD_LAYER)

    fpn_feats = [jax.random.normal(kx[i], (B, C_IN, T_LEVELS[i]), jnp.float32)
                 for i in range(HEAD_LAYER)]

    # num_row_blocks=4: even (both v7x TensorCores busy under "parallel") and >=4 grid
    # steps so the BlockSpec double-buffering has a pipelined steady state.
    outs = loc_head_forward(fpn_feats, params, scales, GROUPS, num_row_blocks=4)
    outs = [jax.block_until_ready(o) for o in outs]

    # sanity: shapes (B, T_i, 2), finite, positive (exp output)
    for o, t in zip(outs, T_LEVELS):
        assert o.shape == (B, t, 2), o.shape
        assert bool(jnp.all(jnp.isfinite(o)))
        assert bool(jnp.all(o > 0.0))
    print("KERNEL_OK")
</pallas_src>

<mosaic_0001>
module attributes {stable_mosaic.version = 11 : i64} {
  func.func @_loc_head_kernel(%arg0: i32, %arg1: memref<32x128xbf16, #tpu.memory_space<vmem>>, %arg2: memref<384x128xbf16, #tpu.memory_space<vmem>>, %arg3: memref<1x128xf32, #tpu.memory_space<vmem>>, %arg4: memref<1x128xf32, #tpu.memory_space<vmem>>, %arg5: memref<1x128xf32, #tpu.memory_space<vmem>>, %arg6: memref<384x128xbf16, #tpu.memory_space<vmem>>, %arg7: memref<1x128xf32, #tpu.memory_space<vmem>>, %arg8: memref<1x128xf32, #tpu.memory_space<vmem>>, %arg9: memref<1x128xf32, #tpu.memory_space<vmem>>, %arg10: memref<384x128xbf16, #tpu.memory_space<vmem>>, %arg11: memref<1x128xf32, #tpu.memory_space<vmem>>, %arg12: memref<1x8x32xf32, #tpu.memory_space<vmem>>, %arg13: memref<32x8xf32, #tpu.memory_space<vmem>>, %arg14: memref<128x128xf32, #tpu.memory_space<vmem>>, %arg15: memref<32x2xf32, #tpu.memory_space<vmem>>, %arg16: memref<32x128xf32, #tpu.memory_space<vmem>>) attributes {dimension_semantics = [#tpu.dimension_semantics<parallel>], iteration_bounds = array<i64: 4>, scalar_prefetch = 0 : i64, scratch_operands = 0 : i64, tpu.core_type = #tpu.core_type<tc>, window_params = [{transform_indices = @transform_0, window_bounds = array<i64: 32, 128>}, {pipeline_mode = #tpu.pipeline_mode<synchronous>, transform_indices = @transform_1, window_bounds = array<i64: 384, 128>}, {pipeline_mode = #tpu.pipeline_mode<synchronous>, transform_indices = @transform_2, window_bounds = array<i64: 1, 128>}, {pipeline_mode = #tpu.pipeline_mode<synchronous>, transform_indices = @transform_3, window_bounds = array<i64: 1, 128>}, {pipeline_mode = #tpu.pipeline_mode<synchronous>, transform_indices = @transform_4, window_bounds = array<i64: 1, 128>}, {pipeline_mode = #tpu.pipeline_mode<synchronous>, transform_indices = @transform_5, window_bounds = array<i64: 384, 128>}, {pipeline_mode = #tpu.pipeline_mode<synchronous>, transform_indices = @transform_6, window_bounds = array<i64: 1, 128>}, {pipeline_mode = #tpu.pipeline_mode<synchronous>, transform_indices = @transform_7, window_bounds = array<i64: 1, 128>}, {pipeline_mode = #tpu.pipeline_mode<synchronous>, transform_indices = @transform_8, window_bounds = array<i64: 1, 128>}, {pipeline_mode = #tpu.pipeline_mode<synchronous>, transform_indices = @transform_9, window_bounds = array<i64: 384, 128>}, {pipeline_mode = #tpu.pipeline_mode<synchronous>, transform_indices = @transform_10, window_bounds = array<i64: 1, 128>}, {transform_indices = @transform_11, window_bounds = array<i64: 1, 8, 32>}, {pipeline_mode = #tpu.pipeline_mode<synchronous>, transform_indices = @transform_12, window_bounds = array<i64: 32, 8>}, {pipeline_mode = #tpu.pipeline_mode<synchronous>, transform_indices = @transform_13, window_bounds = array<i64: 128, 128>}, {transform_indices = @transform_14, window_bounds = array<i64: 32, 2>}, {transform_indices = @transform_15, window_bounds = array<i64: 32, 128>}]} {
    %c0 = arith.constant 0 : index
    %c0_0 = arith.constant 0 : index
    %0 = vector.load %arg15[%c0, %c0_0] : memref<32x2xf32, #tpu.memory_space<vmem>>, vector<32x1xf32>
    %c0_1 = arith.constant 0 : index
    %c1 = arith.constant 1 : index
    %1 = vector.load %arg15[%c0_1, %c1] : memref<32x2xf32, #tpu.memory_space<vmem>>, vector<32x1xf32>
    %c0_2 = arith.constant 0 : index
    %c0_3 = arith.constant 0 : index
    %c0_4 = arith.constant 0 : index
    %2 = vector.load %arg12[%c0_2, %c0_3, %c0_4] : memref<1x8x32xf32, #tpu.memory_space<vmem>>, vector<1x8x32xf32>
    %3 = vector.shape_cast %2 : vector<1x8x32xf32> to vector<8x32xf32>
    %c0_5 = arith.constant 0 : index
    %c0_6 = arith.constant 0 : index
    %4 = vector.load %arg13[%c0_5, %c0_6] : memref<32x8xf32, #tpu.memory_space<vmem>>, vector<32x8xf32>
    %c0_7 = arith.constant 0 : index
    %c0_8 = arith.constant 0 : index
    %5 = vector.load %arg14[%c0_7, %c0_8] : memref<128x128xf32, #tpu.memory_space<vmem>>, vector<128x128xf32>
    %6 = vector.shape_cast %0 : vector<32x1xf32> to vector<32x1xf32>
    %7 = vector.broadcast %6 : vector<32x1xf32> to vector<32x128xf32>
    %8 = tpu.iota {dimensions = array<i32: 0>} : vector<32x1xi32>
    %c31_i32 = arith.constant 31 : i32
    %9 = vector.broadcast %c31_i32 : i32 to vector<32x1xi32>
    %10 = arith.cmpi ne, %8, %9 : vector<32x1xi32>
    %11 = arith.extui %10 : vector<32x1xi1> to vector<32x1xi32>
    %12 = arith.sitofp %11 : vector<32x1xi32> to vector<32x1xf32>
    %c0_9 = arith.constant 0 : index
    %c0_10 = arith.constant 0 : index
    %13 = vector.load %arg1[%c0_9, %c0_10] : memref<32x128xbf16, #tpu.memory_space<vmem>>, vector<32x128xbf16>
    %14 = arith.extf %13 : vector<32x128xbf16> to vector<32x128xf32>
    %c1_i32 = arith.constant 1 : i32
    %15 = tpu.dynamic_rotate %14 by %c1_i32 dim 0 : vector<32x128xf32>, i32 -> vector<32x128xf32>
    %c31_i32_11 = arith.constant 31 : i32
    %16 = tpu.dynamic_rotate %14 by %c31_i32_11 dim 0 : vector<32x128xf32>, i32 -> vector<32x128xf32>
    %17 = vector.broadcast %12 : vector<32x1xf32> to vector<32x128xf32>
    %18 = arith.mulf %16, %17 : vector<32x128xf32>
    %19 = arith.truncf %15 : vector<32x128xf32> to vector<32x128xbf16>
    %c0_12 = arith.constant 0 : index
    %c0_13 = arith.constant 0 : index
    %20 = vector.load %arg2[%c0_12, %c0_13] : memref<384x128xbf16, #tpu.memory_space<vmem>>, vector<128x128xbf16>
    %cst = arith.constant dense<0.000000e+00> : vector<32x128xf32>
    %21 = tpu.matmul %19, %20, %cst {dimension_numbers = #tpu.dot_dimension_numbers<[1], [0], [0], [1], [0, 0, 1, 1], [], []>} : vector<32x128xbf16>, vector<128x128xbf16>, vector<32x128xf32> -> vector<32x128xf32>
    %22 = arith.truncf %14 : vector<32x128xf32> to vector<32x128xbf16>
    %c128 = arith.constant 128 : index
    %c0_14 = arith.constant 0 : index
    %23 = vector.load %arg2[%c128, %c0_14] : memref<384x128xbf16, #tpu.memory_space<vmem>>, vector<128x128xbf16>
    %cst_15 = arith.constant dense<0.000000e+00> : vector<32x128xf32>
    %24 = tpu.matmul %22, %23, %cst_15 {dimension_numbers = #tpu.dot_dimension_numbers<[1], [0], [0], [1], [0, 0, 1, 1], [], []>} : vector<32x128xbf16>, vector<128x128xbf16>, vector<32x128xf32> -> vector<32x128xf32>
    %25 = arith.addf %21, %24 : vector<32x128xf32>
    %26 = arith.truncf %18 : vector<32x128xf32> to vector<32x128xbf16>
    %c256 = arith.constant 256 : index
    %c0_16 = arith.constant 0 : index
    %27 = vector.load %arg2[%c256, %c0_16] : memref<384x128xbf16, #tpu.memory_space<vmem>>, vector<128x128xbf16>
    %cst_17 = arith.constant dense<0.000000e+00> : vector<32x128xf32>
    %28 = tpu.matmul %26, %27, %cst_17 {dimension_numbers = #tpu.dot_dimension_numbers<[1], [0], [0], [1], [0, 0, 1, 1], [], []>} : vector<32x128xbf16>, vector<128x128xbf16>, vector<32x128xf32> -> vector<32x128xf32>
    %29 = arith.addf %25, %28 : vector<32x128xf32>
    %c0_18 = arith.constant 0 : index
    %c0_19 = arith.constant 0 : index
    %30 = vector.load %arg3[%c0_18, %c0_19] : memref<1x128xf32, #tpu.memory_space<vmem>>, vector<1x128xf32>
    %31 = vector.broadcast %30 : vector<1x128xf32> to vector<32x128xf32>
    %32 = arith.addf %29, %31 : vector<32x128xf32>
    %cst_20 = arith.constant dense<0.000000e+00> : vector<8x128xf32>
    %33 = tpu.matmul %3, %32, %cst_20 {dimension_numbers = #tpu.dot_dimension_numbers<[1], [0], [0], [1], [0, 0, 1, 1], [], []>} : vector<8x32xf32>, vector<32x128xf32>, vector<8x128xf32> -> vector<8x128xf32>
    %34 = arith.mulf %32, %32 : vector<32x128xf32>
    %cst_21 = arith.constant dense<0.000000e+00> : vector<8x128xf32>
    %35 = tpu.matmul %3, %34, %cst_21 {dimension_numbers = #tpu.dot_dimension_numbers<[1], [0], [0], [1], [0, 0, 1, 1], [], []>} : vector<8x32xf32>, vector<32x128xf32>, vector<8x128xf32> -> vector<8x128xf32>
    %cst_22 = arith.constant dense<0.000000e+00> : vector<8x128xf32>
    %36 = tpu.matmul %33, %5, %cst_22 {dimension_numbers = #tpu.dot_dimension_numbers<[1], [0], [0], [1], [0, 0, 1, 1], [], []>} : vector<8x128xf32>, vector<128x128xf32>, vector<8x128xf32> -> vector<8x128xf32>
    %cst_23 = arith.constant dense<0.000000e+00> : vector<8x128xf32>
    %37 = tpu.matmul %35, %5, %cst_23 {dimension_numbers = #tpu.dot_dimension_numbers<[1], [0], [0], [1], [0, 0, 1, 1], [], []>} : vector<8x128xf32>, vector<128x128xf32>, vector<8x128xf32> -> vector<8x128xf32>
    %cst_24 = arith.constant dense<0.000000e+00> : vector<32x128xf32>
    %38 = tpu.matmul %4, %36, %cst_24 {dimension_numbers = #tpu.dot_dimension_numbers<[1], [0], [0], [1], [0, 0, 1, 1], [], []>} : vector<32x8xf32>, vector<8x128xf32>, vector<32x128xf32> -> vector<32x128xf32>
    %cst_25 = arith.constant dense<0.000000e+00> : vector<32x128xf32>
    %39 = tpu.matmul %4, %37, %cst_25 {dimension_numbers = #tpu.dot_dimension_numbers<[1], [0], [0], [1], [0, 0, 1, 1], [], []>} : vector<32x8xf32>, vector<8x128xf32>, vector<32x128xf32> -> vector<32x128xf32>
    %40 = arith.mulf %38, %38 : vector<32x128xf32>
    %41 = arith.subf %39, %40 : vector<32x128xf32>
    %cst_26 = arith.constant 9.99999974E-6 : f32
    %42 = vector.broadcast %cst_26 : f32 to vector<32x128xf32>
    %43 = arith.addf %41, %42 : vector<32x128xf32>
    %44 = math.rsqrt %43 : vector<32x128xf32>
    %45 = arith.subf %32, %38 : vector<32x128xf32>
    %46 = arith.mulf %45, %44 : vector<32x128xf32>
    %c0_27 = arith.constant 0 : index
    %c0_28 = arith.constant 0 : index
    %47 = vector.load %arg4[%c0_27, %c0_28] : memref<1x128xf32, #tpu.memory_space<vmem>>, vector<1x128xf32>
    %48 = vector.broadcast %47 : vector<1x128xf32> to vector<32x128xf32>
    %49 = arith.mulf %46, %48 : vector<32x128xf32>
    %c0_29 = arith.constant 0 : index
    %c0_30 = arith.constant 0 : index
    %50 = vector.load %arg5[%c0_29, %c0_30] : memref<1x128xf32, #tpu.memory_space<vmem>>, vector<1x128xf32>
    %51 = vector.broadcast %50 : vector<1x128xf32> to vector<32x128xf32>
    %52 = arith.addf %49, %51 : vector<32x128xf32>
    %cst_31 = arith.constant 0.000000e+00 : f32
    %53 = vector.broadcast %cst_31 : f32 to vector<32x128xf32>
    %54 = arith.maximumf %52, %53 : vector<32x128xf32>
    %55 = arith.mulf %54, %7 : vector<32x128xf32>
    %c1_i32_32 = arith.constant 1 : i32
    %56 = tpu.dynamic_rotate %55 by %c1_i32_32 dim 0 : vector<32x128xf32>, i32 -> vector<32x128xf32>
    %c31_i32_33 = arith.constant 31 : i32
    %57 = tpu.dynamic_rotate %55 by %c31_i32_33 dim 0 : vector<32x128xf32>, i32 -> vector<32x128xf32>
    %58 = vector.broadcast %12 : vector<32x1xf32> to vector<32x128xf32>
    %59 = arith.mulf %57, %58 : vector<32x128xf32>
    %60 = arith.truncf %56 : vector<32x128xf32> to vector<32x128xbf16>
    %c0_34 = arith.constant 0 : index
    %c0_35 = arith.constant 0 : index
    %61 = vector.load %arg6[%c0_34, %c0_35] : memref<384x128xbf16, #tpu.memory_space<vmem>>, vector<128x128xbf16>
    %cst_36 = arith.constant dense<0.000000e+00> : vector<32x128xf32>
    %62 = tpu.matmul %60, %61, %cst_36 {dimension_numbers = #tpu.dot_dimension_numbers<[1], [0], [0], [1], [0, 0, 1, 1], [], []>} : vector<32x128xbf16>, vector<128x128xbf16>, vector<32x128xf32> -> vector<32x128xf32>
    %63 = arith.truncf %55 : vector<32x128xf32> to vector<32x128xbf16>
    %c128_37 = arith.constant 128 : index
    %c0_38 = arith.constant 0 : index
    %64 = vector.load %arg6[%c128_37, %c0_38] : memref<384x128xbf16, #tpu.memory_space<vmem>>, vector<128x128xbf16>
    %cst_39 = arith.constant dense<0.000000e+00> : vector<32x128xf32>
    %65 = tpu.matmul %63, %64, %cst_39 {dimension_numbers = #tpu.dot_dimension_numbers<[1], [0], [0], [1], [0, 0, 1, 1], [], []>} : vector<32x128xbf16>, vector<128x128xbf16>, vector<32x128xf32> -> vector<32x128xf32>
    %66 = arith.addf %62, %65 : vector<32x128xf32>
    %67 = arith.truncf %59 : vector<32x128xf32> to vector<32x128xbf16>
    %c256_40 = arith.constant 256 : index
    %c0_41 = arith.constant 0 : index
    %68 = vector.load %arg6[%c256_40, %c0_41] : memref<384x128xbf16, #tpu.memory_space<vmem>>, vector<128x128xbf16>
    %cst_42 = arith.constant dense<0.000000e+00> : vector<32x128xf32>
    %69 = tpu.matmul %67, %68, %cst_42 {dimension_numbers = #tpu.dot_dimension_numbers<[1], [0], [0], [1], [0, 0, 1, 1], [], []>} : vector<32x128xbf16>, vector<128x128xbf16>, vector<32x128xf32> -> vector<32x128xf32>
    %70 = arith.addf %66, %69 : vector<32x128xf32>
    %c0_43 = arith.constant 0 : index
    %c0_44 = arith.constant 0 : index
    %71 = vector.load %arg7[%c0_43, %c0_44] : memref<1x128xf32, #tpu.memory_space<vmem>>, vector<1x128xf32>
    %72 = vector.broadcast %71 : vector<1x128xf32> to vector<32x128xf32>
    %73 = arith.addf %70, %72 : vector<32x128xf32>
    %cst_45 = arith.constant dense<0.000000e+00> : vector<8x128xf32>
    %74 = tpu.matmul %3, %73, %cst_45 {dimension_numbers = #tpu.dot_dimension_numbers<[1], [0], [0], [1], [0, 0, 1, 1], [], []>} : vector<8x32xf32>, vector<32x128xf32>, vector<8x128xf32> -> vector<8x128xf32>
    %75 = arith.mulf %73, %73 : vector<32x128xf32>
    %cst_46 = arith.constant dense<0.000000e+00> : vector<8x128xf32>
    %76 = tpu.matmul %3, %75, %cst_46 {dimension_numbers = #tpu.dot_dimension_numbers<[1], [0], [0], [1], [0, 0, 1, 1], [], []>} : vector<8x32xf32>, vector<32x128xf32>, vector<8x128xf32> -> vector<8x128xf32>
    %cst_47 = arith.constant dense<0.000000e+00> : vector<8x128xf32>
    %77 = tpu.matmul %74, %5, %cst_47 {dimension_numbers = #tpu.dot_dimension_numbers<[1], [0], [0], [1], [0, 0, 1, 1], [], []>} : vector<8x128xf32>, vector<128x128xf32>, vector<8x128xf32> -> vector<8x128xf32>
    %cst_48 = arith.constant dense<0.000000e+00> : vector<8x128xf32>
    %78 = tpu.matmul %76, %5, %cst_48 {dimension_numbers = #tpu.dot_dimension_numbers<[1], [0], [0], [1], [0, 0, 1, 1], [], []>} : vector<8x128xf32>, vector<128x128xf32>, vector<8x128xf32> -> vector<8x128xf32>
    %cst_49 = arith.constant dense<0.000000e+00> : vector<32x128xf32>
    %79 = tpu.matmul %4, %77, %cst_49 {dimension_numbers = #tpu.dot_dimension_numbers<[1], [0], [0], [1], [0, 0, 1, 1], [], []>} : vector<32x8xf32>, vector<8x128xf32>, vector<32x128xf32> -> vector<32x128xf32>
    %cst_50 = arith.constant dense<0.000000e+00> : vector<32x128xf32>
    %80 = tpu.matmul %4, %78, %cst_50 {dimension_numbers = #tpu.dot_dimension_numbers<[1], [0], [0], [1], [0, 0, 1, 1], [], []>} : vector<32x8xf32>, vector<8x128xf32>, vector<32x128xf32> -> vector<32x128xf32>
    %81 = arith.mulf %79, %79 : vector<32x128xf32>
    %82 = arith.subf %80, %81 : vector<32x128xf32>
    %cst_51 = arith.constant 9.99999974E-6 : f32
    %83 = vector.broadcast %cst_51 : f32 to vector<32x128xf32>
    %84 = arith.addf %82, %83 : vector<32x128xf32>
    %85 = math.rsqrt %84 : vector<32x128xf32>
    %86 = arith.subf %73, %79 : vector<32x128xf32>
    %87 = arith.mulf %86, %85 : vector<32x128xf32>
    %c0_52 = arith.constant 0 : index
    %c0_53 = arith.constant 0 : index
    %88 = vector.load %arg8[%c0_52, %c0_53] : memref<1x128xf32, #tpu.memory_space<vmem>>, vector<1x128xf32>
    %89 = vector.broadcast %88 : vector<1x128xf32> to vector<32x128xf32>
    %90 = arith.mulf %87, %89 : vector<32x128xf32>
    %c0_54 = arith.constant 0 : index
    %c0_55 = arith.constant 0 : index
    %91 = vector.load %arg9[%c0_54, %c0_55] : memref<1x128xf32, #tpu.memory_space<vmem>>, vector<1x128xf32>
    %92 = vector.broadcast %91 : vector<1x128xf32> to vector<32x128xf32>
    %93 = arith.addf %90, %92 : vector<32x128xf32>
    %cst_56 = arith.constant 0.000000e+00 : f32
    %94 = vector.broadcast %cst_56 : f32 to vector<32x128xf32>
    %95 = arith.maximumf %93, %94 : vector<32x128xf32>
    %96 = arith.mulf %95, %7 : vector<32x128xf32>
    %c1_i32_57 = arith.constant 1 : i32
    %97 = tpu.dynamic_rotate %96 by %c1_i32_57 dim 0 : vector<32x128xf32>, i32 -> vector<32x128xf32>
    %c31_i32_58 = arith.constant 31 : i32
    %98 = tpu.dynamic_rotate %96 by %c31_i32_58 dim 0 : vector<32x128xf32>, i32 -> vector<32x128xf32>
    %99 = vector.broadcast %12 : vector<32x1xf32> to vector<32x128xf32>
    %100 = arith.mulf %98, %99 : vector<32x128xf32>
    %101 = arith.truncf %97 : vector<32x128xf32> to vector<32x128xbf16>
    %c0_59 = arith.constant 0 : index
    %c0_60 = arith.constant 0 : index
    %102 = vector.load %arg10[%c0_59, %c0_60] : memref<384x128xbf16, #tpu.memory_space<vmem>>, vector<128x128xbf16>
    %cst_61 = arith.constant dense<0.000000e+00> : vector<32x128xf32>
    %103 = tpu.matmul %101, %102, %cst_61 {dimension_numbers = #tpu.dot_dimension_numbers<[1], [0], [0], [1], [0, 0, 1, 1], [], []>} : vector<32x128xbf16>, vector<128x128xbf16>, vector<32x128xf32> -> vector<32x128xf32>
    %104 = arith.truncf %96 : vector<32x128xf32> to vector<32x128xbf16>
    %c128_62 = arith.constant 128 : index
    %c0_63 = arith.constant 0 : index
    %105 = vector.load %arg10[%c128_62, %c0_63] : memref<384x128xbf16, #tpu.memory_space<vmem>>, vector<128x128xbf16>
    %cst_64 = arith.constant dense<0.000000e+00> : vector<32x128xf32>
    %106 = tpu.matmul %104, %105, %cst_64 {dimension_numbers = #tpu.dot_dimension_numbers<[1], [0], [0], [1], [0, 0, 1, 1], [], []>} : vector<32x128xbf16>, vector<128x128xbf16>, vector<32x128xf32> -> vector<32x128xf32>
    %107 = arith.addf %103, %106 : vector<32x128xf32>
    %108 = arith.truncf %100 : vector<32x128xf32> to vector<32x128xbf16>
    %c256_65 = arith.constant 256 : index
    %c0_66 = arith.constant 0 : index
    %109 = vector.load %arg10[%c256_65, %c0_66] : memref<384x128xbf16, #tpu.memory_space<vmem>>, vector<128x128xbf16>
    %cst_67 = arith.constant dense<0.000000e+00> : vector<32x128xf32>
    %110 = tpu.matmul %108, %109, %cst_67 {dimension_numbers = #tpu.dot_dimension_numbers<[1], [0], [0], [1], [0, 0, 1, 1], [], []>} : vector<32x128xbf16>, vector<128x128xbf16>, vector<32x128xf32> -> vector<32x128xf32>
    %111 = arith.addf %107, %110 : vector<32x128xf32>
    %c0_68 = arith.constant 0 : index
    %c0_69 = arith.constant 0 : index
    %112 = vector.load %arg11[%c0_68, %c0_69] : memref<1x128xf32, #tpu.memory_space<vmem>>, vector<1x128xf32>
    %113 = vector.broadcast %112 : vector<1x128xf32> to vector<32x128xf32>
    %114 = arith.addf %111, %113 : vector<32x128xf32>
    %115 = vector.broadcast %1 : vector<32x1xf32> to vector<32x128xf32>
    %116 = arith.mulf %114, %115 : vector<32x128xf32>
    %117 = math.exp %116 : vector<32x128xf32>
    %c0_70 = arith.constant 0 : index
    %c0_71 = arith.constant 0 : index
    %118 = vector.load %arg16[%c0_70, %c0_71] : memref<32x128xf32, #tpu.memory_space<vmem>>, vector<32x128xf32>
    tpu.vector_store %arg16[%c0_70, %c0_71], %117 {strides = array<i32>} : memref<32x128xf32, #tpu.memory_space<vmem>>, vector<32x128xf32>,
    return
  }
  func.func @transform_0(%arg0: i32) -> (i32, i32) {
    %c0_i32 = arith.constant 0 : i32
    %c0_i32_0 = arith.constant 0 : i32
    return %arg0, %c0_i32 : i32, i32
  }
  func.func @transform_1(%arg0: i32) -> (i32, i32) {
    %c0_i32 = arith.constant 0 : i32
    %c0_i32_0 = arith.constant 0 : i32
    %c0_i32_1 = arith.constant 0 : i32
    return %c0_i32, %c0_i32_0 : i32, i32
  }
  func.func @transform_2(%arg0: i32) -> (i32, i32) {
    %c0_i32 = arith.constant 0 : i32
    %c0_i32_0 = arith.constant 0 : i32
    %c0_i32_1 = arith.constant 0 : i32
    return %c0_i32, %c0_i32_0 : i32, i32
  }
  func.func @transform_3(%arg0: i32) -> (i32, i32) {
    %c0_i32 = arith.constant 0 : i32
    %c0_i32_0 = arith.constant 0 : i32
    %c0_i32_1 = arith.constant 0 : i32
    return %c0_i32, %c0_i32_0 : i32, i32
  }
  func.func @transform_4(%arg0: i32) -> (i32, i32) {
    %c0_i32 = arith.constant 0 : i32
    %c0_i32_0 = arith.constant 0 : i32
    %c0_i32_1 = arith.constant 0 : i32
    return %c0_i32, %c0_i32_0 : i32, i32
  }
  func.func @transform_5(%arg0: i32) -> (i32, i32) {
    %c0_i32 = arith.constant 0 : i32
    %c0_i32_0 = arith.constant 0 : i32
    %c0_i32_1 = arith.constant 0 : i32
    return %c0_i32, %c0_i32_0 : i32, i32
  }
  func.func @transform_6(%arg0: i32) -> (i32, i32) {
    %c0_i32 = arith.constant 0 : i32
    %c0_i32_0 = arith.constant 0 : i32
    %c0_i32_1 = arith.constant 0 : i32
    return %c0_i32, %c0_i32_0 : i32, i32
  }
  func.func @transform_7(%arg0: i32) -> (i32, i32) {
    %c0_i32 = arith.constant 0 : i32
    %c0_i32_0 = arith.constant 0 : i32
    %c0_i32_1 = arith.constant 0 : i32
    return %c0_i32, %c0_i32_0 : i32, i32
  }
  func.func @transform_8(%arg0: i32) -> (i32, i32) {
    %c0_i32 = arith.constant 0 : i32
    %c0_i32_0 = arith.constant 0 : i32
    %c0_i32_1 = arith.constant 0 : i32
    return %c0_i32, %c0_i32_0 : i32, i32
  }
  func.func @transform_9(%arg0: i32) -> (i32, i32) {
    %c0_i32 = arith.constant 0 : i32
    %c0_i32_0 = arith.constant 0 : i32
    %c0_i32_1 = arith.constant 0 : i32
    return %c0_i32, %c0_i32_0 : i32, i32
  }
  func.func @transform_10(%arg0: i32) -> (i32, i32) {
    %c0_i32 = arith.constant 0 : i32
    %c0_i32_0 = arith.constant 0 : i32
    %c0_i32_1 = arith.constant 0 : i32
    return %c0_i32, %c0_i32_0 : i32, i32
  }
  func.func @transform_11(%arg0: i32) -> (i32, i32, i32) {
    %c0_i32 = arith.constant 0 : i32
    %c0_i32_0 = arith.constant 0 : i32
    %c0_i32_1 = arith.constant 0 : i32
    return %arg0, %c0_i32, %c0_i32_0 : i32, i32, i32
  }
  func.func @transform_12(%arg0: i32) -> (i32, i32) {
    %c0_i32 = arith.constant 0 : i32
    %c0_i32_0 = arith.constant 0 : i32
    %c0_i32_1 = arith.constant 0 : i32
    return %c0_i32, %c0_i32_0 : i32, i32
  }
  func.func @transform_13(%arg0: i32) -> (i32, i32) {
    %c0_i32 = arith.constant 0 : i32
    %c0_i32_0 = arith.constant 0 : i32
    %c0_i32_1 = arith.constant 0 : i32
    return %c0_i32, %c0_i32_0 : i32, i32
  }
  func.func @transform_14(%arg0: i32) -> (i32, i32) {
    %c0_i32 = arith.constant 0 : i32
    %c0_i32_0 = arith.constant 0 : i32
    return %arg0, %c0_i32 : i32, i32
  }
  func.func @transform_15(%arg0: i32) -> (i32, i32) {
    %c0_i32 = arith.constant 0 : i32
    %c0_i32_0 = arith.constant 0 : i32
    return %arg0, %c0_i32 : i32, i32
  }
}

</mosaic_0001>

<llo_original>
// kernel: tpu_custom_call.1
$region0: #{tpu_custom_call.1}
  #allocation0 [shape = 'u32[]', space=smem, size = 0x4, offset = 0x4, fixed_abs, tag = 'smem constant byte address 0x4 - core index']
  #allocation1 [shape = 'u32[144,128]{1,0:T(1,128)}', space=vmem, size = 0x12000, scoped, tag = 'internal scratch']
  %s0 = inlined_call_operand.hbm [shape: bf16[128,128], index: 0, kind: input, shape index: {}]
  %s1 = inlined_call_operand.hbm [shape: bf16[384,128], index: 1, kind: input, shape index: {}]
  %s2 = inlined_call_operand.vmem [shape: f32[1,128], index: 2, kind: input, shape index: {}]
  %s3 = inlined_call_operand.vmem [shape: f32[1,128], index: 3, kind: input, shape index: {}]
  %s4 = inlined_call_operand.vmem [shape: f32[1,128], index: 4, kind: input, shape index: {}]
  %s5 = inlined_call_operand.hbm [shape: bf16[384,128], index: 5, kind: input, shape index: {}]
  %s6 = inlined_call_operand.vmem [shape: f32[1,128], index: 6, kind: input, shape index: {}]
  %s7 = inlined_call_operand.vmem [shape: f32[1,128], index: 7, kind: input, shape index: {}]
  %s8 = inlined_call_operand.hbm [shape: f32[1,128], index: 8, kind: input, shape index: {}]
  %s9 = inlined_call_operand.vmem [shape: bf16[384,128], index: 9, kind: input, shape index: {}]
  %s10 = inlined_call_operand.hbm [shape: f32[1,128], index: 10, kind: input, shape index: {}]
  %s11 = inlined_call_operand.hbm [shape: f32[4,8,32], index: 11, kind: input, shape index: {}]
  %s12 = inlined_call_operand.vmem [shape: f32[32,8], index: 12, kind: input, shape index: {}]
  %s13 = inlined_call_operand.hbm [shape: f32[128,128], index: 13, kind: input, shape index: {}]
  %s14 = inlined_call_operand.vmem [shape: f32[128,2], index: 14, kind: input, shape index: {}]
  %s15 = inlined_call_operand.hbm [shape: f32[128,128], index: 15, kind: output, shape index: {}]
  %s16 = sld [smem:[#allocation0]]
  $region121: #{tpu_custom_call.1} parent=0
    _
  %s18 = ssub.s32 1, %s16
  %s19 = scalar_select 0, %s18, %s16
  $region1: #{tpu_custom_call.1} parent=0
    #allocation2 [shape = 'u8[16384]{0}', space=vmem, size = 0x4000, scoped, tag = 'input window, operand 0']
    #allocation3 [shape = 's32[2]{0}', space=sflag, size = 0x8, scoped, tag = 'scoped memory for tpu_custom_call.1']
    #allocation4 [shape = 's32[2]{0}', space=sflag, size = 0x8, scoped, tag = 'scoped memory for tpu_custom_call.1']
    #allocation5 [shape = 'u8[98304]{0}', space=vmem, size = 0x18000, scoped, tag = 'input window, operand 1, single buffered']
    #allocation6 [shape = 's32[1]{0}', space=sflag, size = 0x4, scoped, tag = 'scoped memory for tpu_custom_call.1']
    #allocation7 [shape = 'u8[98304]{0}', space=vmem, size = 0x18000, scoped, tag = 'input window, operand 5, single buffered']
    #allocation8 [shape = 'u8[512]{0}', space=vmem, size = 0x400, scoped, tag = 'input window, operand 8, single buffered']
    #allocation9 [shape = 's32[1]{0}', space=sflag, size = 0x4, scoped, tag = 'scoped memory for tpu_custom_call.1']
    #allocation10 [shape = 'u8[512]{0}', space=vmem, size = 0x400, scoped, tag = 'input window, operand 10, single buffered']
    #allocation11 [shape = 'u8[8192]{0}', space=vmem, size = 0x2000, scoped, tag = 'input window, operand 11']
    #allocation12 [shape = 's32[2]{0}', space=sflag, size = 0x8, scoped, tag = 'scoped memory for tpu_custom_call.1']
    #allocation13 [shape = 'u8[65536]{0}', space=vmem, size = 0x10000, scoped, tag = 'input window, operand 13, single buffered']
    #allocation14 [shape = 'u8[32768]{0}', space=vmem, size = 0x8000, scoped, tag = 'output window, operand 0']
    %20 = vsyncpa [#allocation3], 0
    %s21 = scalar_lea.sflag [#allocation3], 1
    %22 = vsyncpa %s21, 0
    %23 = vsyncpa [#allocation6], 0
    %24 = vsyncpa [#allocation9], 0
    %25 = vsyncpa [#allocation12], 0
    %s26 = scalar_lea.sflag [#allocation12], 1
    %27 = vsyncpa %s26, 0
    %28 = vsyncpa [#allocation4], 0
    %s29 = scalar_lea.sflag [#allocation4], 1
    %30 = vsyncpa %s29, 0
    loop: start=0, step=1, limit=6
    $region2: #{tpu_custom_call.1} parent=1 // loop_pre_header
      _
    $region3: #{tpu_custom_call.1} parent=1 // loop_header
      %s32 = sphi 0, %s36
      %p33 = scmp.ge.s32.totalorder %s32, 6
      %s42 = sphi 0, %s44
      %s45 = sphi 0, %s42
      %s46 = sphi 0, %s45
      %s62 = sphi 0, %s46
      %s66 = sphi 0, %s66
      %s68 = sphi 0, %s66
      %s69 = sphi 0, %s68
      %s83 = sphi 0, %s69
      %s87 = sphi 0, %s87
      %s89 = sphi 0, %s87
      %s90 = sphi 0, %s89
      %s104 = sphi 0, %s90
      %s108 = sphi 0, %s108
      %s110 = sphi 0, %s108
      %s111 = sphi 0, %s110
      %s125 = sphi 0, %s111
      %s129 = sphi 0, %s129
      %s131 = sphi 0, %s129
      %s132 = sphi 0, %s131
      %s146 = sphi 0, %s132
      %s150 = sphi 0, %s150
      %s152 = sphi 0, %s150
      %s153 = sphi 0, %s152
      %s167 = sphi 0, %s153
      %s171 = sphi 0, %s171
      %s173 = sphi 0, %s171
      %s174 = sphi 0, %s173
      %s188 = sphi 0, %s174
      %s192 = sphi 0, %s192
      %s194 = sphi 0, %s192
      %s195 = sphi 0, %s194
      %s209 = sphi 0, %s195
      %s213 = sphi 0, %s213
      %s215 = sphi 0, %s213
      %s216 = sphi 0, %s215
      %s230 = sphi 0, %s216
      %s234 = sphi 0, %s234
      %s236 = sphi 0, %s234
      %s237 = sphi 0, %s236
      %s251 = sphi 0, %s237
      %s255 = sphi 0, %s255
      %s257 = sphi 0, %s255
      %s258 = sphi 0, %s257
      %s272 = sphi 0, %s258
      %s278 = sphi 0, %s280
      %s281 = sphi 0, %s278
      %s282 = sphi 0, %s281
      %s298 = sphi 0, %s282
      %s302 = sphi 0, %s302
      %s304 = sphi 0, %s302
      %s305 = sphi 0, %s304
      %s319 = sphi 0, %s305
      %s323 = sphi 0, %s323
      %s325 = sphi 0, %s323
      %s326 = sphi 0, %s325
      %s340 = sphi 0, %s326
      %s346 = sphi 0, %s348
      %s349 = sphi 0, %s346
      %s350 = sphi 0, %s349
      %s366 = sphi 0, %s350
      %s372 = sphi 0, %s374
      %s375 = sphi 0, %s372
      %s376 = sphi 0, %s375
      %s392 = sphi 0, %s376
    $region4: #{tpu_custom_call.1} parent=1 // loop_header_branch
      %35 = sbr.rel (%p33) target = $region8
    $region5: #{tpu_custom_call.1} parent=1 // loop_body
      %s37 = ssub.s32 %s32, 1
      %s38 = ssub.s32 %s32, 2
      %s39 = sadd.s32 %s32, 1
      %s40 = ssub.s32 %s32, %s39
      %p41 = scmp.eq.s32.totalorder %s40, 0
      %s43 = sadd.s32 %s42, 1
      %s44 = scalar_select %p41, %s42, %s43
      %p47 = pneg %p41
      %p48 = scmp.eq.s32.totalorder %s32, 3
      %p49 = por %p47, %p48
      %p50 = scmp.ne.s32.totalorder %s42, %s45
      %p51 = scmp.eq.s32.totalorder %s32, 0
      %p52 = por %p50, %p51
      %p53 = scmp.ne.s32.totalorder %s42, %s45
      %p54 = scmp.eq.s32.totalorder %s37, 3
      %p55 = por %p53, %p54
      %p56 = scmp.ne.s32.totalorder %s45, %s46
      %p57 = scmp.eq.s32.totalorder %s37, 0
      %p58 = por %p56, %p57
      %p59 = scmp.ne.s32.totalorder %s45, %s46
      %p60 = scmp.eq.s32.totalorder %s38, 3
      %p61 = por %p59, %p60
      %p63 = scmp.ne.s32.totalorder %s46, %s62
      %p64 = scmp.eq.s32.totalorder %s38, 0
      %p65 = por %p63, %p64
      %s67 = sadd.s32 %s66, 1
      %p70 = scmp.eq.s32.totalorder %s32, 3
      %p71 = scmp.ne.s32.totalorder %s66, %s68
      %p72 = scmp.eq.s32.totalorder %s32, 0
      %p73 = por %p71, %p72
      %p74 = scmp.ne.s32.totalorder %s66, %s68
      %p75 = scmp.eq.s32.totalorder %s37, 3
      %p76 = por %p74, %p75
      %p77 = scmp.ne.s32.totalorder %s68, %s69
      %p78 = scmp.eq.s32.totalorder %s37, 0
      %p79 = por %p77, %p78
      %p80 = scmp.ne.s32.totalorder %s68, %s69
      %p81 = scmp.eq.s32.totalorder %s38, 3
      %p82 = por %p80, %p81
      %p84 = scmp.ne.s32.totalorder %s69, %s83
      %p85 = scmp.eq.s32.totalorder %s38, 0
      %p86 = por %p84, %p85
      %s88 = sadd.s32 %s87, 1
      %p91 = scmp.eq.s32.totalorder %s32, 3
      %p92 = scmp.ne.s32.totalorder %s87, %s89
      %p93 = scmp.eq.s32.totalorder %s32, 0
      %p94 = por %p92, %p93
      %p95 = scmp.ne.s32.totalorder %s87, %s89
      %p96 = scmp.eq.s32.totalorder %s37, 3
      %p97 = por %p95, %p96
      %p98 = scmp.ne.s32.totalorder %s89, %s90
      %p99 = scmp.eq.s32.totalorder %s37, 0
      %p100 = por %p98, %p99
      %p101 = scmp.ne.s32.totalorder %s89, %s90
      %p102 = scmp.eq.s32.totalorder %s38, 3
      %p103 = por %p101, %p102
      %p105 = scmp.ne.s32.totalorder %s90, %s104
      %p106 = scmp.eq.s32.totalorder %s38, 0
      %p107 = por %p105, %p106
      %s109 = sadd.s32 %s108, 1
      %p112 = scmp.eq.s32.totalorder %s32, 3
      %p113 = scmp.ne.s32.totalorder %s108, %s110
      %p114 = scmp.eq.s32.totalorder %s32, 0
      %p115 = por %p113, %p114
      %p116 = scmp.ne.s32.totalorder %s108, %s110
      %p117 = scmp.eq.s32.totalorder %s37, 3
      %p118 = por %p116, %p117
      %p119 = scmp.ne.s32.totalorder %s110, %s111
      %p120 = scmp.eq.s32.totalorder %s37, 0
      %p121 = por %p119, %p120
      %p122 = scmp.ne.s32.totalorder %s110, %s111
      %p123 = scmp.eq.s32.totalorder %s38, 3
      %p124 = por %p122, %p123
      %p126 = scmp.ne.s32.totalorder %s111, %s125
      %p127 = scmp.eq.s32.totalorder %s38, 0
      %p128 = por %p126, %p127
      %s130 = sadd.s32 %s129, 1
      %p133 = scmp.eq.s32.totalorder %s32, 3
      %p134 = scmp.ne.s32.totalorder %s129, %s131
      %p135 = scmp.eq.s32.totalorder %s32, 0
      %p136 = por %p134, %p135
      %p137 = scmp.ne.s32.totalorder %s129, %s131
      %p138 = scmp.eq.s32.totalorder %s37, 3
      %p139 = por %p137, %p138
      %p140 = scmp.ne.s32.totalorder %s131, %s132
      %p141 = scmp.eq.s32.totalorder %s37, 0
      %p142 = por %p140, %p141
      %p143 = scmp.ne.s32.totalorder %s131, %s132
      %p144 = scmp.eq.s32.totalorder %s38, 3
      %p145 = por %p143, %p144
      %p147 = scmp.ne.s32.totalorder %s132, %s146
      %p148 = scmp.eq.s32.totalorder %s38, 0
      %p149 = por %p147, %p148
      %s151 = sadd.s32 %s150, 1
      %p154 = scmp.eq.s32.totalorder %s32, 3
      %p155 = scmp.ne.s32.totalorder %s150, %s152
      %p156 = scmp.eq.s32.totalorder %s32, 0
      %p157 = por %p155, %p156
      %p158 = scmp.ne.s32.totalorder %s150, %s152
      %p159 = scmp.eq.s32.totalorder %s37, 3
      %p160 = por %p158, %p159
      %p161 = scmp.ne.s32.totalorder %s152, %s153
      %p162 = scmp.eq.s32.totalorder %s37, 0
      %p163 = por %p161, %p162
      %p164 = scmp.ne.s32.totalorder %s152, %s153
      %p165 = scmp.eq.s32.totalorder %s38, 3
      %p166 = por %p164, %p165
      %p168 = scmp.ne.s32.totalorder %s153, %s167
      %p169 = scmp.eq.s32.totalorder %s38, 0
      %p170 = por %p168, %p169
      %s172 = sadd.s32 %s171, 1
      %p175 = scmp.eq.s32.totalorder %s32, 3
      %p176 = scmp.ne.s32.totalorder %s171, %s173
      %p177 = scmp.eq.s32.totalorder %s32, 0
      %p178 = por %p176, %p177
      %p179 = scmp.ne.s32.totalorder %s171, %s173
      %p180 = scmp.eq.s32.totalorder %s37, 3
      %p181 = por %p179, %p180
      %p182 = scmp.ne.s32.totalorder %s173, %s174
      %p183 = scmp.eq.s32.totalorder %s37, 0
      %p184 = por %p182, %p183
      %p185 = scmp.ne.s32.totalorder %s173, %s174
      %p186 = scmp.eq.s32.totalorder %s38, 3
      %p187 = por %p185, %p186
      %p189 = scmp.ne.s32.totalorder %s174, %s188
      %p190 = scmp.eq.s32.totalorder %s38, 0
      %p191 = por %p189, %p190
      %s193 = sadd.s32 %s192, 1
      %p196 = scmp.eq.s32.totalorder %s32, 3
      %p197 = scmp.ne.s32.totalorder %s192, %s194
      %p198 = scmp.eq.s32.totalorder %s32, 0
      %p199 = por %p197, %p198
      %p200 = scmp.ne.s32.totalorder %s192, %s194
      %p201 = scmp.eq.s32.totalorder %s37, 3
      %p202 = por %p200, %p201
      %p203 = scmp.ne.s32.totalorder %s194, %s195
      %p204 = scmp.eq.s32.totalorder %s37, 0
      %p205 = por %p203, %p204
      %p206 = scmp.ne.s32.totalorder %s194, %s195
      %p207 = scmp.eq.s32.totalorder %s38, 3
      %p208 = por %p206, %p207
      %p210 = scmp.ne.s32.totalorder %s195, %s209
      %p211 = scmp.eq.s32.totalorder %s38, 0
      %p212 = por %p210, %p211
      %s214 = sadd.s32 %s213, 1
      %p217 = scmp.eq.s32.totalorder %s32, 3
      %p218 = scmp.ne.s32.totalorder %s213, %s215
      %p219 = scmp.eq.s32.totalorder %s32, 0
      %p220 = por %p218, %p219
      %p221 = scmp.ne.s32.totalorder %s213, %s215
      %p222 = scmp.eq.s32.totalorder %s37, 3
      %p223 = por %p221, %p222
      %p224 = scmp.ne.s32.totalorder %s215, %s216
      %p225 = scmp.eq.s32.totalorder %s37, 0
      %p226 = por %p224, %p225
      %p227 = scmp.ne.s32.totalorder %s215, %s216
      %p228 = scmp.eq.s32.totalorder %s38, 3
      %p229 = por %p227, %p228
      %p231 = scmp.ne.s32.totalorder %s216, %s230
      %p232 = scmp.eq.s32.totalorder %s38, 0
      %p233 = por %p231, %p232
      %s235 = sadd.s32 %s234, 1
      %p238 = scmp.eq.s32.totalorder %s32, 3
      %p239 = scmp.ne.s32.totalorder %s234, %s236
      %p240 = scmp.eq.s32.totalorder %s32, 0
      %p241 = por %p239, %p240
      %p242 = scmp.ne.s32.totalorder %s234, %s236
      %p243 = scmp.eq.s32.totalorder %s37, 3
      %p244 = por %p242, %p243
      %p245 = scmp.ne.s32.totalorder %s236, %s237
      %p246 = scmp.eq.s32.totalorder %s37, 0
      %p247 = por %p245, %p246
      %p248 = scmp.ne.s32.totalorder %s236, %s237
      %p249 = scmp.eq.s32.totalorder %s38, 3
      %p250 = por %p248, %p249
      %p252 = scmp.ne.s32.totalorder %s237, %s251
      %p253 = scmp.eq.s32.totalorder %s38, 0
      %p254 = por %p252, %p253
      %s256 = sadd.s32 %s255, 1
      %p259 = scmp.eq.s32.totalorder %s32, 3
      %p260 = scmp.ne.s32.totalorder %s255, %s257
      %p261 = scmp.eq.s32.totalorder %s32, 0
      %p262 = por %p260, %p261
      %p263 = scmp.ne.s32.totalorder %s255, %s257
      %p264 = scmp.eq.s32.totalorder %s37, 3
      %p265 = por %p263, %p264
      %p266 = scmp.ne.s32.totalorder %s257, %s258
      %p267 = scmp.eq.s32.totalorder %s37, 0
      %p268 = por %p266, %p267
      %p269 = scmp.ne.s32.totalorder %s257, %s258
      %p270 = scmp.eq.s32.totalorder %s38, 3
      %p271 = por %p269, %p270
      %p273 = scmp.ne.s32.totalorder %s258, %s272
      %p274 = scmp.eq.s32.totalorder %s38, 0
      %p275 = por %p273, %p274
      %s276 = ssub.s32 %s32, %s39
      %p277 = scmp.eq.s32.totalorder %s276, 0
      %s279 = sadd.s32 %s278, 1
      %s280 = scalar_select %p277, %s278, %s279
      %p283 = pneg %p277
      %p284 = scmp.eq.s32.totalorder %s32, 3
      %p285 = por %p283, %p284
      %p286 = scmp.ne.s32.totalorder %s278, %s281
      %p287 = scmp.eq.s32.totalorder %s32, 0
      %p288 = por %p286, %p287
      %p289 = scmp.ne.s32.totalorder %s278, %s281
      %p290 = scmp.eq.s32.totalorder %s37, 3
      %p291 = por %p289, %p290
      %p292 = scmp.ne.s32.totalorder %s281, %s282
      %p293 = scmp.eq.s32.totalorder %s37, 0
      %p294 = por %p292, %p293
      %p295 = scmp.ne.s32.totalorder %s281, %s282
      %p296 = scmp.eq.s32.totalorder %s38, 3
      %p297 = por %p295, %p296
      %p299 = scmp.ne.s32.totalorder %s282, %s298
      %p300 = scmp.eq.s32.totalorder %s38, 0
      %p301 = por %p299, %p300
      %s303 = sadd.s32 %s302, 1
      %p306 = scmp.eq.s32.totalorder %s32, 3
      %p307 = scmp.ne.s32.totalorder %s302, %s304
      %p308 = scmp.eq.s32.totalorder %s32, 0
      %p309 = por %p307, %p308
      %p310 = scmp.ne.s32.totalorder %s302, %s304
      %p311 = scmp.eq.s32.totalorder %s37, 3
      %p312 = por %p310, %p311
      %p313 = scmp.ne.s32.totalorder %s304, %s305
      %p314 = scmp.eq.s32.totalorder %s37, 0
      %p315 = por %p313, %p314
      %p316 = scmp.ne.s32.totalorder %s304, %s305
      %p317 = scmp.eq.s32.totalorder %s38, 3
      %p318 = por %p316, %p317
      %p320 = scmp.ne.s32.totalorder %s305, %s319
      %p321 = scmp.eq.s32.totalorder %s38, 0
      %p322 = por %p320, %p321
      %s324 = sadd.s32 %s323, 1
      %p327 = scmp.eq.s32.totalorder %s32, 3
      %p328 = scmp.ne.s32.totalorder %s323, %s325
      %p329 = scmp.eq.s32.totalorder %s32, 0
      %p330 = por %p328, %p329
      %p331 = scmp.ne.s32.totalorder %s323, %s325
      %p332 = scmp.eq.s32.totalorder %s37, 3
      %p333 = por %p331, %p332
      %p334 = scmp.ne.s32.totalorder %s325, %s326
      %p335 = scmp.eq.s32.totalorder %s37, 0
      %p336 = por %p334, %p335
      %p337 = scmp.ne.s32.totalorder %s325, %s326
      %p338 = scmp.eq.s32.totalorder %s38, 3
      %p339 = por %p337, %p338
      %p341 = scmp.ne.s32.totalorder %s326, %s340
      %p342 = scmp.eq.s32.totalorder %s38, 0
      %p343 = por %p341, %p342
      %s344 = ssub.s32 %s32, %s39
      %p345 = scmp.eq.s32.totalorder %s344, 0
      %s347 = sadd.s32 %s346, 1
      %s348 = scalar_select %p345, %s346, %s347
      %p351 = pneg %p345
      %p352 = scmp.eq.s32.totalorder %s32, 3
      %p353 = por %p351, %p352
      %p354 = scmp.ne.s32.totalorder %s346, %s349
      %p355 = scmp.eq.s32.totalorder %s32, 0
      %p356 = por %p354, %p355
      %p357 = scmp.ne.s32.totalorder %s346, %s349
      %p358 = scmp.eq.s32.totalorder %s37, 3
      %p359 = por %p357, %p358
      %p360 = scmp.ne.s32.totalorder %s349, %s350
      %p361 = scmp.eq.s32.totalorder %s37, 0
      %p362 = por %p360, %p361
      %p363 = scmp.ne.s32.totalorder %s349, %s350
      %p364 = scmp.eq.s32.totalorder %s38, 3
      %p365 = por %p363, %p364
      %p367 = scmp.ne.s32.totalorder %s350, %s366
      %p368 = scmp.eq.s32.totalorder %s38, 0
      %p369 = por %p367, %p368
      %s370 = ssub.s32 %s32, %s39
      %p371 = scmp.eq.s32.totalorder %s370, 0
      %s373 = sadd.s32 %s372, 1
      %s374 = scalar_select %p371, %s372, %s373
      %p377 = pneg %p371
      %p378 = scmp.eq.s32.totalorder %s32, 3
      %p379 = por %p377, %p378
      %p380 = scmp.ne.s32.totalorder %s372, %s375
      %p381 = scmp.eq.s32.totalorder %s32, 0
      %p382 = por %p380, %p381
      %p383 = scmp.ne.s32.totalorder %s372, %s375
      %p384 = scmp.eq.s32.totalorder %s37, 3
      %p385 = por %p383, %p384
      %p386 = scmp.ne.s32.totalorder %s375, %s376
      %p387 = scmp.eq.s32.totalorder %s37, 0
      %p388 = por %p386, %p387
      %p389 = scmp.ne.s32.totalorder %s375, %s376
      %p390 = scmp.eq.s32.totalorder %s38, 3
      %p391 = por %p389, %p390
      %p393 = scmp.ne.s32.totalorder %s376, %s392
      %p394 = scmp.eq.s32.totalorder %s38, 0
      %p395 = por %p393, %p394
      %p396 = scmp.le.s32.totalorder 1, %s32
      %p397 = scmp.lt.s32.totalorder %s32, 5
      %p398 = pnand %p396, %p397
      %p399 = pneg %p398
      // Predicated region
      $region9: #{tpu_custom_call.1} parent=5 // pred_check
        _
      $region10: #{tpu_custom_call.1} parent=5 // pred_check_branch
        %401 = sbr.rel (%p398) target = $region12
      $region11: #{tpu_custom_call.1} parent=5 // pred_region
        %s402 = ssub.s32 %s32, 1
        // Predicated region
        $region13: #{tpu_custom_call.1} parent=11 // pred_check
          %p403 = pneg %p79
        $region14: #{tpu_custom_call.1} parent=11 // pred_check_branch
          %405 = sbr.rel (%p403) target = $region16
        $region15: #{tpu_custom_call.1} parent=11 // pred_region
          %s407 = ssub.s32 3072, 3072
          %408 = vsyncadd [#allocation6], %s407
          %s409 = sshll.u32 [#allocation5], 4
          %s410 = int_to_ptr.vmem [resolvable:$true] %s409
          %415 = dma.hbm_to_vmem [thread:$0]  %s1, 3072, %s410, [#allocation6], 64, 64, 4
        $region16: #{tpu_custom_call.1} parent=11 // pred_fallthru
          _
        // Predicated region
        $region17: #{tpu_custom_call.1} parent=11 // pred_check
          %p416 = pneg %p100
        $region18: #{tpu_custom_call.1} parent=11 // pred_check_branch
          %418 = sbr.rel (%p416) target = $region20
        $region19: #{tpu_custom_call.1} parent=11 // pred_region
          _
        $region20: #{tpu_custom_call.1} parent=11 // pred_fallthru
          _
        // Predicated region
        $region21: #{tpu_custom_call.1} parent=11 // pred_check
          %p419 = pneg %p121
        $region22: #{tpu_custom_call.1} parent=11 // pred_check_branch
          %421 = sbr.rel (%p419) target = $region24
        $region23: #{tpu_custom_call.1} parent=11 // pred_region
          _
        $region24: #{tpu_custom_call.1} parent=11 // pred_fallthru
          _
        // Predicated region
        $region25: #{tpu_custom_call.1} parent=11 // pred_check
          %p422 = pneg %p142
        $region26: #{tpu_custom_call.1} parent=11 // pred_check_branch
          %424 = sbr.rel (%p422) target = $region28
        $region27: #{tpu_custom_call.1} parent=11 // pred_region
          _
        $region28: #{tpu_custom_call.1} parent=11 // pred_fallthru
          _
        // Predicated region
        $region29: #{tpu_custom_call.1} parent=11 // pred_check
          %p425 = pneg %p163
        $region30: #{tpu_custom_call.1} parent=11 // pred_check_branch
          %427 = sbr.rel (%p425) target = $region32
        $region31: #{tpu_custom_call.1} parent=11 // pred_region
          %s429 = ssub.s32 3072, 3072
          %430 = vsyncadd [#allocation6], %s429
          %s431 = sshll.u32 [#allocation7], 4
          %s432 = int_to_ptr.vmem [resolvable:$true] %s431
          %437 = dma.hbm_to_vmem [thread:$0]  %s5, 3072, %s432, [#allocation6], 64, 64, 4
        $region32: #{tpu_custom_call.1} parent=11 // pred_fallthru
          _
        // Predicated region
        $region33: #{tpu_custom_call.1} parent=11 // pred_check
          %p438 = pneg %p184
        $region34: #{tpu_custom_call.1} parent=11 // pred_check_branch
          %440 = sbr.rel (%p438) target = $region36
        $region35: #{tpu_custom_call.1} parent=11 // pred_region
          _
        $region36: #{tpu_custom_call.1} parent=11 // pred_fallthru
          _
        // Predicated region
        $region37: #{tpu_custom_call.1} parent=11 // pred_check
          %p441 = pneg %p205
        $region38: #{tpu_custom_call.1} parent=11 // pred_check_branch
          %443 = sbr.rel (%p441) target = $region40
        $region39: #{tpu_custom_call.1} parent=11 // pred_region
          _
        $region40: #{tpu_custom_call.1} parent=11 // pred_fallthru
          _
        // Predicated region
        $region41: #{tpu_custom_call.1} parent=11 // pred_check
          %p444 = pneg %p226
        $region42: #{tpu_custom_call.1} parent=11 // pred_check_branch
          %446 = sbr.rel (%p444) target = $region44
        $region43: #{tpu_custom_call.1} parent=11 // pred_region
          %s448 = ssub.s32 16, 16
          %449 = vsyncadd [#allocation9], %s448
          %s451 = sshll.u32 [#allocation8], 4
          %s452 = int_to_ptr.vmem [resolvable:$true] %s451
          %454 = dma.hbm_to_vmem [thread:$0]  %s8, 16, %s452, [#allocation9]
        $region44: #{tpu_custom_call.1} parent=11 // pred_fallthru
          _
        // Predicated region
        $region45: #{tpu_custom_call.1} parent=11 // pred_check
          %p455 = pneg %p247
        $region46: #{tpu_custom_call.1} parent=11 // pred_check_branch
          %457 = sbr.rel (%p455) target = $region48
        $region47: #{tpu_custom_call.1} parent=11 // pred_region
          _
        $region48: #{tpu_custom_call.1} parent=11 // pred_fallthru
          _
        // Predicated region
        $region49: #{tpu_custom_call.1} parent=11 // pred_check
          %p458 = pneg %p268
        $region50: #{tpu_custom_call.1} parent=11 // pred_check_branch
          %460 = sbr.rel (%p458) target = $region52
        $region51: #{tpu_custom_call.1} parent=11 // pred_region
          %s462 = ssub.s32 16, 16
          %463 = vsyncadd [#allocation9], %s462
          %s465 = sshll.u32 [#allocation10], 4
          %s466 = int_to_ptr.vmem [resolvable:$true] %s465
          %468 = dma.hbm_to_vmem [thread:$0]  %s10, 16, %s466, [#allocation9]
        $region52: #{tpu_custom_call.1} parent=11 // pred_fallthru
          _
        // Predicated region
        $region53: #{tpu_custom_call.1} parent=11 // pred_check
          %p469 = pneg %p315
        $region54: #{tpu_custom_call.1} parent=11 // pred_check_branch
          %471 = sbr.rel (%p469) target = $region56
        $region55: #{tpu_custom_call.1} parent=11 // pred_region
          _
        $region56: #{tpu_custom_call.1} parent=11 // pred_fallthru
          _
        // Predicated region
        $region57: #{tpu_custom_call.1} parent=11 // pred_check
          %p472 = pneg %p336
        $region58: #{tpu_custom_call.1} parent=11 // pred_check_branch
          %474 = sbr.rel (%p472) target = $region60
        $region59: #{tpu_custom_call.1} parent=11 // pred_region
          %s476 = ssub.s32 2048, 2048
          %477 = vsyncadd [#allocation12], %s476
          %s478 = sshll.u32 [#allocation13], 4
          %s479 = int_to_ptr.vmem [resolvable:$true] %s478
          %484 = dma.hbm_to_vmem [thread:$0]  %s13, 2048, %s479, [#allocation12], 128, 128, 8
        $region60: #{tpu_custom_call.1} parent=11 // pred_fallthru
          _
      $region12: #{tpu_custom_call.1} parent=5 // pred_fallthru
        _
      %p485 = scmp.lt.s32.totalorder %s32, 4
      // Predicated region
      $region61: #{tpu_custom_call.1} parent=5 // pred_check
        %p486 = pneg %p485
      $region62: #{tpu_custom_call.1} parent=5 // pred_check_branch
        %488 = sbr.rel (%p486) target = $region64
      $region63: #{tpu_custom_call.1} parent=5 // pred_region
        // Predicated region
        $region65: #{tpu_custom_call.1} parent=63 // pred_check
          %p489 = pneg %p52
        $region66: #{tpu_custom_call.1} parent=63 // pred_check_branch
          %491 = sbr.rel (%p489) target = $region68
        $region67: #{tpu_custom_call.1} parent=63 // pred_region
          %s492 = sand.u32 %s42, 1
          %s493 = scalar_lea.sflag [#allocation3], %s492
          %s494 = sand.u32 %s42, 1
          %s495 = smul.addr %s494, 16
          %s496 = scalar_lea.vmem [#allocation2], %s495
          %s497 = smul.u32 4, %s32
          %s499 = ssub.s32 256, 256
          %500 = vsyncadd %s493, %s499
          %s501 = smul.addr %s497, 64
          %s502 = scalar_lea.hbm %s0, %s501
          %s503 = sshll.u32 %s496, 4
          %s504 = int_to_ptr.vmem [resolvable:$true] %s503
          %509 = dma.hbm_to_vmem [thread:$0]  %s502, 256, %s504, %s493, 64, 64, 4
        $region68: #{tpu_custom_call.1} parent=63 // pred_fallthru
          _
        // Predicated region
        $region69: #{tpu_custom_call.1} parent=63 // pred_check
          %p510 = pneg %p288
        $region70: #{tpu_custom_call.1} parent=63 // pred_check_branch
          %512 = sbr.rel (%p510) target = $region72
        $region71: #{tpu_custom_call.1} parent=63 // pred_region
          %s513 = sand.u32 %s32, 1
          %s514 = scalar_lea.sflag [#allocation12], %s513
          %s515 = sand.u32 %s278, 1
          %s516 = smul.addr %s515, 8
          %s517 = scalar_lea.vmem [#allocation11], %s516
          %s519 = ssub.s32 128, 128
          %520 = vsyncadd %s514, %s519
          %s521 = smul.addr %s32, 128
          %s522 = scalar_lea.hbm %s11, %s521
          %s524 = sshll.u32 %s517, 4
          %s525 = int_to_ptr.vmem [resolvable:$true] %s524
          %527 = dma.hbm_to_vmem [thread:$0]  %s522, 128, %s525, %s514
        $region72: #{tpu_custom_call.1} parent=63 // pred_fallthru
          _
        // Predicated region
        $region73: #{tpu_custom_call.1} parent=63 // pred_check
          %p528 = pneg %p356
        $region74: #{tpu_custom_call.1} parent=63 // pred_check_branch
          %530 = sbr.rel (%p528) target = $region76
        $region75: #{tpu_custom_call.1} parent=63 // pred_region
          %s531 = smul.u32 4, %s32
          %p532 = scmp.lt.s32.totalorder %s531, 15
          %s533 = scalar_select %p532, %s531, 15
          %s534 = smul.addr %s533, 8
          %s535 = scalar_lea.vmem %s14, %s534
          %s536 = smul.u32 4, %s32
        $region76: #{tpu_custom_call.1} parent=63 // pred_fallthru
          _
      $region64: #{tpu_custom_call.1} parent=5 // pred_fallthru
        _
      %p537 = scmp.le.s32.totalorder 1, %s32
      %p538 = scmp.lt.s32.totalorder %s32, 5
      %p539 = pnand %p537, %p538
      %p540 = pneg %p539
      // Predicated region
      $region77: #{tpu_custom_call.1} parent=5 // pred_check
        _
      $region78: #{tpu_custom_call.1} parent=5 // pred_check_branch
        %542 = sbr.rel (%p539) target = $region80
      $region79: #{tpu_custom_call.1} parent=5 // pred_region
        %s543 = ssub.s32 %s32, 1
        %s544 = sand.u32 %s45, 1
        %s545 = scalar_lea.sflag [#allocation3], %s544
        %s546 = sand.u32 %s45, 1
        %s547 = smul.addr %s546, 16
        %s548 = scalar_lea.vmem [#allocation2], %s547
        // Predicated region
        $region81: #{tpu_custom_call.1} parent=79 // pred_check
          %p549 = pneg %p58
        $region82: #{tpu_custom_call.1} parent=79 // pred_check_branch
          %551 = sbr.rel (%p549) target = $region84
        $region83: #{tpu_custom_call.1} parent=79 // pred_region
          %552 = dma.done %s545, 256
        $region84: #{tpu_custom_call.1} parent=79 // pred_fallthru
          _
        // Predicated region
        $region85: #{tpu_custom_call.1} parent=79 // pred_check
          %p553 = pneg %p79
        $region86: #{tpu_custom_call.1} parent=79 // pred_check_branch
          %555 = sbr.rel (%p553) target = $region88
        $region87: #{tpu_custom_call.1} parent=79 // pred_region
          %556 = dma.done [#allocation6], 3072
        $region88: #{tpu_custom_call.1} parent=79 // pred_fallthru
          _
        // Predicated region
        $region89: #{tpu_custom_call.1} parent=79 // pred_check
          %p557 = pneg %p163
        $region90: #{tpu_custom_call.1} parent=79 // pred_check_branch
          %559 = sbr.rel (%p557) target = $region92
        $region91: #{tpu_custom_call.1} parent=79 // pred_region
          %560 = dma.done [#allocation6], 3072
        $region92: #{tpu_custom_call.1} parent=79 // pred_fallthru
          _
        // Predicated region
        $region93: #{tpu_custom_call.1} parent=79 // pred_check
          %p561 = pneg %p226
        $region94: #{tpu_custom_call.1} parent=79 // pred_check_branch
          %563 = sbr.rel (%p561) target = $region96
        $region95: #{tpu_custom_call.1} parent=79 // pred_region
          %564 = dma.done [#allocation9], 16
        $region96: #{tpu_custom_call.1} parent=79 // pred_fallthru
          _
        // Predicated region
        $region97: #{tpu_custom_call.1} parent=79 // pred_check
          %p565 = pneg %p268
        $region98: #{tpu_custom_call.1} parent=79 // pred_check_branch
          %567 = sbr.rel (%p565) target = $region100
        $region99: #{tpu_custom_call.1} parent=79 // pred_region
          %568 = dma.done [#allocation9], 16
        $region100: #{tpu_custom_call.1} parent=79 // pred_fallthru
          _
        %s569 = sand.u32 %s37, 1
        %s570 = scalar_lea.sflag [#allocation12], %s569
        %s571 = sand.u32 %s281, 1
        %s572 = smul.addr %s571, 8
        %s573 = scalar_lea.vmem [#allocation11], %s572
        // Predicated region
        $region101: #{tpu_custom_call.1} parent=79 // pred_check
          %p574 = pneg %p294
        $region102: #{tpu_custom_call.1} parent=79 // pred_check_branch
          %576 = sbr.rel (%p574) target = $region104
        $region103: #{tpu_custom_call.1} parent=79 // pred_region
          %577 = dma.done %s570, 128
        $region104: #{tpu_custom_call.1} parent=79 // pred_fallthru
          _
        // Predicated region
        $region105: #{tpu_custom_call.1} parent=79 // pred_check
          %p578 = pneg %p336
        $region106: #{tpu_custom_call.1} parent=79 // pred_check_branch
          %580 = sbr.rel (%p578) target = $region108
        $region107: #{tpu_custom_call.1} parent=79 // pred_region
          %581 = dma.done [#allocation12], 2048
        $region108: #{tpu_custom_call.1} parent=79 // pred_fallthru
          _
        %s582 = sand.u32 %s45, 1
        %s583 = scalar_lea.sflag [#allocation3], %s582
        %s584 = sand.u32 %s45, 1
        %s585 = smul.addr %s584, 16
        %s586 = scalar_lea.vmem [#allocation2], %s585
        %p587 = pneg %p58
        %p588 = pneg %p55
        %p589 = pneg %p79
        %p590 = pneg %p76
        %p591 = pneg %p100
        %p592 = pneg %p97
        %p593 = pneg %p121
        %p594 = pneg %p118
        %p595 = pneg %p142
        %p596 = pneg %p139
        %p597 = pneg %p163
        %p598 = pneg %p160
        %p599 = pneg %p184
        %p600 = pneg %p181
        %p601 = pneg %p205
        %p602 = pneg %p202
        %p603 = pneg %p226
        %p604 = pneg %p223
        %p605 = pneg %p247
        %p606 = pneg %p244
        %p607 = pneg %p268
        %p608 = pneg %p265
        %s609 = sand.u32 %s37, 1
        %s610 = scalar_lea.sflag [#allocation12], %s609
        %s611 = sand.u32 %s281, 1
        %s612 = smul.addr %s611, 8
        %s613 = scalar_lea.vmem [#allocation11], %s612
        %p614 = pneg %p294
        %p615 = pneg %p291
        %p616 = pneg %p315
        %p617 = pneg %p312
        %p618 = pneg %p336
        %p619 = pneg %p333
        %s620 = smul.u32 4, %s37
        %p621 = scmp.lt.s32.totalorder %s620, 15
        %s622 = scalar_select %p621, %s620, 15
        %s623 = smul.addr %s622, 8
        %s624 = scalar_lea.vmem %s14, %s623
        %p625 = pneg %p362
        %p626 = pneg %p359
        %p627 = pneg %p388
        %p628 = pneg %p385
        %s629 = sand.u32 %s375, 1
        %s630 = scalar_lea.sflag [#allocation4], %s629
        %s631 = sand.u32 %s375, 1
        %s632 = smul.addr %s631, 32
        %s633 = scalar_lea.vmem [#allocation14], %s632
        %s634 = smul.u32 4, %s37
        %s635 = smul.u32 4, %s37
        %p636 = scmp.lt.s32.totalorder %s635, 15
        %s637 = scalar_select %p636, %s635, 15
        %s638 = smul.addr %s637, 8
        %s639 = scalar_lea.vmem %s14, %s638
        %s640 = smul.u32 4, %s37
        %s641 = smul.u32 4, %s37
        %v643 = vld [vmem:[%s639] sm:$0xff]
        %v644 = vld [vmem:[%s639 + $0x8] sm:$0xff]
        %v645 = vld [vmem:[%s639 + $0x10] sm:$0xff]
        %v646 = vld [vmem:[%s639 + $0x18] sm:$0xff]
        %v647 = vld [vmem:[%s573] sm:$0xff]
        %v648 = vld [vmem:[%s12] sm:$0xff]
        %v649 = vld [vmem:[%s12 + $0x8] sm:$0xff]
        %v650 = vld [vmem:[%s12 + $0x10] sm:$0xff]
        %v651 = vld [vmem:[%s12 + $0x18] sm:$0xff]
        %v652 = vld [vmem:[#allocation13] sm:$0xff]
        %v653 = vld [vmem:[#allocation13 + $0x8] sm:$0xff]
        %v654 = vld [vmem:[#allocation13 + $0x10] sm:$0xff]
        %v655 = vld [vmem:[#allocation13 + $0x18] sm:$0xff]
        %v656 = vld [vmem:[#allocation13 + $0x20] sm:$0xff]
        %v657 = vld [vmem:[#allocation13 + $0x28] sm:$0xff]
        %v658 = vld [vmem:[#allocation13 + $0x30] sm:$0xff]
        %v659 = vld [vmem:[#allocation13 + $0x38] sm:$0xff]
        %v660 = vld [vmem:[#allocation13 + $0x40] sm:$0xff]
        %v661 = vld [vmem:[#allocation13 + $0x48] sm:$0xff]
        %v662 = vld [vmem:[#allocation13 + $0x50] sm:$0xff]
        %v663 = vld [vmem:[#allocation13 + $0x58] sm:$0xff]
        %v664 = vld [vmem:[#allocation13 + $0x60] sm:$0xff]
        %v665 = vld [vmem:[#allocation13 + $0x68] sm:$0xff]
        %v666 = vld [vmem:[#allocation13 + $0x70] sm:$0xff]
        %v667 = vld [vmem:[#allocation13 + $0x78] sm:$0xff]
        %669 = vset.pattern.permute.xlu0 0
        %670 = vperm.xlu0 %669, %v643
        %v671 = vpop.permute.xlu0 %670
        %674 = vset.pattern.permute.xlu0 0
        %675 = vperm.xlu0 %674, %v644
        %v676 = vpop.permute.xlu0 %675
        %679 = vset.pattern.permute.xlu0 0
        %680 = vperm.xlu0 %679, %v645
        %v681 = vpop.permute.xlu0 %680
        %684 = vset.pattern.permute.xlu0 0
        %685 = vperm.xlu0 %684, %v646
        %v686 = vpop.permute.xlu0 %685
        %v688 = vlaneseq
        %v689 = vshrl.u32 %v688, 7
        %v690 = vadd.s32 %v689, 8
        %v691 = vadd.s32 %v689, 16
        %v692 = vadd.s32 %v689, 24
        %vm693 = vcmp.ne.s32.totalorder %v689, 31
        %vm694 = vcmp.ne.s32.totalorder %v690, 31
        %vm695 = vcmp.ne.s32.totalorder %v691, 31
        %vm696 = vcmp.ne.s32.totalorder %v692, 31
        %v697 = vsel %vm693, 1, 0
        %v698 = vsel %vm694, 1, 0
        %v699 = vsel %vm695, 1, 0
        %v700 = vsel %vm696, 1, 0
        %v701 = vcvt.s32.f32 %v697
        %v702 = vcvt.s32.f32 %v698
        %v703 = vcvt.s32.f32 %v699
        %v704 = vcvt.s32.f32 %v700
        %v705 = vld [vmem:[%s548] sm:$0xf]
        %v706 = vld [vmem:[%s548 + $0x4] sm:$0xf]
        %v707 = vld [vmem:[%s548 + $0x8] sm:$0xf]
        %v708 = vld [vmem:[%s548 + $0xc] sm:$0xf]
        %v709 = vunpack.c.l.bf16 %v705
        %v710 = vunpack.c.l.bf16 %v706
        %v711 = vunpack.c.l.bf16 %v707
        %v712 = vunpack.c.l.bf16 %v708
        %v713 = vrot.slane %v709, 7
        %v714 = vrot.slane %v710, 7
        %v715 = vrot.slane %v711, 7
        %v716 = vrot.slane %v712, 7
        %vm717 = vcmp.lt.s32.totalorder %v689, 1
        %v718 = vsel %vm717, %v715, %v716
        %v719 = vsel %vm717, %v714, %v715
        %v720 = vsel %vm717, %v713, %v714
        %v721 = vsel %vm717, %v716, %v713
        %v722 = vrot.slane %v709, 1
        %v723 = vrot.slane %v710, 1
        %v724 = vrot.slane %v711, 1
        %v725 = vrot.slane %v712, 1
        %vm726 = vcmp.lt.s32.totalorder %v689, 7
        %v727 = vsel %vm726, %v724, %v725
        %v728 = vsel %vm726, %v723, %v724
        %v729 = vsel %vm726, %v722, %v723
        %v730 = vsel %vm726, %v725, %v722
        %v731 = vmul.f32 %v729, %v701
        %v732 = vmul.f32 %v728, %v702
        %v733 = vmul.f32 %v727, %v703
        %v734 = vmul.f32 %v730, %v704
        %v735 = vpack.c.bf16 %v720, %v721
        %v736 = vpack.c.bf16 %v718, %v719
        %v737 = vld [vmem:[#allocation5] sm:$0xf]
        %v738 = vld [vmem:[#allocation5 + $0x4] sm:$0xf]
        %v739 = vld [vmem:[#allocation5 + $0x8] sm:$0xf]
        %v740 = vld [vmem:[#allocation5 + $0xc] sm:$0xf]
        %v741 = vld [vmem:[#allocation5 + $0x10] sm:$0xf]
        %v742 = vld [vmem:[#allocation5 + $0x14] sm:$0xf]
        %v743 = vld [vmem:[#allocation5 + $0x18] sm:$0xf]
        %v744 = vld [vmem:[#allocation5 + $0x1c] sm:$0xf]
        %v745 = vld [vmem:[#allocation5 + $0x20] sm:$0xf]
        %v746 = vld [vmem:[#allocation5 + $0x24] sm:$0xf]
        %v747 = vld [vmem:[#allocation5 + $0x28] sm:$0xf]
        %v748 = vld [vmem:[#allocation5 + $0x2c] sm:$0xf]
        %v749 = vld [vmem:[#allocation5 + $0x30] sm:$0xf]
        %v750 = vld [vmem:[#allocation5 + $0x34] sm:$0xf]
        %v751 = vld [vmem:[#allocation5 + $0x38] sm:$0xf]
        %v752 = vld [vmem:[#allocation5 + $0x3c] sm:$0xf]
        %v753 = vld [vmem:[#allocation5 + $0x40] sm:$0xf]
        %v754 = vld [vmem:[#allocation5 + $0x44] sm:$0xf]
        %v755 = vld [vmem:[#allocation5 + $0x48] sm:$0xf]
        %v756 = vld [vmem:[#allocation5 + $0x4c] sm:$0xf]
        %v757 = vld [vmem:[#allocation5 + $0x50] sm:$0xf]
        %v758 = vld [vmem:[#allocation5 + $0x54] sm:$0xf]
        %v759 = vld [vmem:[#allocation5 + $0x58] sm:$0xf]
        %v760 = vld [vmem:[#allocation5 + $0x5c] sm:$0xf]
        %v761 = vld [vmem:[#allocation5 + $0x60] sm:$0xf]
        %v762 = vld [vmem:[#allocation5 + $0x64] sm:$0xf]
        %v763 = vld [vmem:[#allocation5 + $0x68] sm:$0xf]
        %v764 = vld [vmem:[#allocation5 + $0x6c] sm:$0xf]
        %v765 = vld [vmem:[#allocation5 + $0x70] sm:$0xf]
        %v766 = vld [vmem:[#allocation5 + $0x74] sm:$0xf]
        %v767 = vld [vmem:[#allocation5 + $0x78] sm:$0xf]
        %v768 = vld [vmem:[#allocation5 + $0x7c] sm:$0xf]
        %v773 = vunpack.c.l.b16 %v705
        %v774 = vunpack.c.l.b16 %v706
        %v775 = vunpack.c.l.b16 %v707
        %v776 = vunpack.c.l.b16 %v708
        %v777 = vpack.c.b16 %v774, %v773
        %v778 = vpack.c.b16 %v776, %v775
        %v797 = vunpack.c.l.b16 %v753
        %v798 = vunpack.c.l.b16 %v754
        %v799 = vunpack.c.l.b16 %v755
        %v800 = vunpack.c.l.b16 %v756
        %v801 = vunpack.c.l.b16 %v757
        %v802 = vunpack.c.l.b16 %v758
        %v803 = vunpack.c.l.b16 %v759
        %v804 = vunpack.c.l.b16 %v760
        %v805 = vunpack.c.l.b16 %v761
        %v806 = vunpack.c.l.b16 %v762
        %v807 = vunpack.c.l.b16 %v763
        %v808 = vunpack.c.l.b16 %v764
        %v809 = vunpack.c.l.b16 %v765
        %v810 = vunpack.c.l.b16 %v766
        %v811 = vunpack.c.l.b16 %v767
        %v812 = vunpack.c.l.b16 %v768
        %v813 = vpack.c.b16 %v798, %v797
        %v814 = vpack.c.b16 %v800, %v799
        %v815 = vpack.c.b16 %v802, %v801
        %v816 = vpack.c.b16 %v804, %v803
        %v817 = vpack.c.b16 %v806, %v805
        %v818 = vpack.c.b16 %v808, %v807
        %v819 = vpack.c.b16 %v810, %v809
        %v820 = vpack.c.b16 %v812, %v811
        %829 = vmatprep.subr.bf16.mxu0 0
        %830 = vmatpush1.bf16.msra.mxu0 %v813
        %831 = vmatprep.subr.bf16.mxu0 0
        %832 = vmatpush1.bf16.msra.mxu0 %v814
        %833 = vmatprep.subr.bf16.mxu0 0
        %834 = vmatpush1.bf16.msra.mxu0 %v815
        %835 = vmatprep.subr.bf16.mxu0 0
        %836 = vmatpush1.bf16.msra.mxu0 %v816
        %837 = vmatprep.subr.bf16.mxu0 0
        %838 = vmatpush1.bf16.msra.mxu0 %v817
        %839 = vmatprep.subr.bf16.mxu0 0
        %840 = vmatpush1.bf16.msra.mxu0 %v818
        %841 = vmatprep.subr.bf16.mxu0 0
        %842 = vmatpush1.bf16.msra.mxu0 %v819
        %843 = vmatprep.subr.bf16.mxu0 0
        %844 = vmatpush1.bf16.msra.mxu0 %v820
        %845 = vmatprep.subr.bf16.mxu0 0
        %846 = vmatpush1.bf16.msra.mxu0 0
        %847 = vmatprep.subr.bf16.mxu0 0
        %848 = vmatpush1.bf16.msra.mxu0 0
        %849 = vmatprep.subr.bf16.mxu0 0
        %850 = vmatpush1.bf16.msra.mxu0 0
        %851 = vmatprep.subr.bf16.mxu0 0
        %852 = vmatpush1.bf16.msra.mxu0 0
        %853 = vmatprep.subr.bf16.mxu0 0
        %854 = vmatpush1.bf16.msra.mxu0 0
        %855 = vmatprep.subr.bf16.mxu0 0
        %856 = vmatpush1.bf16.msra.mxu0 0
        %857 = vmatprep.subr.bf16.mxu0 0
        %858 = vmatpush1.bf16.msra.mxu0 0
        %859 = vmatprep.subr.bf16.mxu0 0
        %860 = vmatpush1.bf16.msra.mxu0 0
        %861 = vmatprep.mubr.bf16.mxu0 0
        %862 = vmatmul.mubr.bf16.gmra.mrb[0].mxu0 %v777
        %v863 = vpop.f32.mrb[0].mxu0
        %v864 = vadd.f32 0.0, %v863
        %v865 = vpop.f32.mrb[0].mxu0
        %v866 = vpop.f32.mrb[0].mxu0
        %v867 = vadd.f32 0.0, %v866
        %v868 = vpop.f32.mrb[0].mxu0
        %869 = vmatprep.mubr.bf16.mxu0 0
        %870 = vmatmul.mubr.bf16.gmra.mrb[0].mxu0 %v778
        %v871 = vpop.f32.mrb[0].mxu0
        %v872 = vadd.f32 0.0, %v871
        %v873 = vpop.f32.mrb[0].mxu0
        %v874 = vpop.f32.mrb[0].mxu0
        %v875 = vadd.f32 0.0, %v874
        %v876 = vpop.f32.mrb[0].mxu0
        %877 = vdwg.mxu0
        %v894 = vunpack.c.l.b16 %v737
        %v895 = vunpack.c.l.b16 %v738
        %v896 = vunpack.c.l.b16 %v739
        %v897 = vunpack.c.l.b16 %v740
        %v898 = vunpack.c.l.b16 %v741
        %v899 = vunpack.c.l.b16 %v742
        %v900 = vunpack.c.l.b16 %v743
        %v901 = vunpack.c.l.b16 %v744
        %v902 = vunpack.c.l.b16 %v745
        %v903 = vunpack.c.l.b16 %v746
        %v904 = vunpack.c.l.b16 %v747
        %v905 = vunpack.c.l.b16 %v748
        %v906 = vunpack.c.l.b16 %v749
        %v907 = vunpack.c.l.b16 %v750
        %v908 = vunpack.c.l.b16 %v751
        %v909 = vunpack.c.l.b16 %v752
        %v910 = vpack.c.b16 %v895, %v894
        %v911 = vpack.c.b16 %v897, %v896
        %v912 = vpack.c.b16 %v899, %v898
        %v913 = vpack.c.b16 %v901, %v900
        %v914 = vpack.c.b16 %v903, %v902
        %v915 = vpack.c.b16 %v905, %v904
        %v916 = vpack.c.b16 %v907, %v906
        %v917 = vpack.c.b16 %v909, %v908
        %926 = vmatprep.subr.bf16.mxu0 0
        %927 = vmatpush1.bf16.msra.mxu0 %v910
        %928 = vmatprep.subr.bf16.mxu0 0
        %929 = vmatpush1.bf16.msra.mxu0 %v911
        %930 = vmatprep.subr.bf16.mxu0 0
        %931 = vmatpush1.bf16.msra.mxu0 %v912
        %932 = vmatprep.subr.bf16.mxu0 0
        %933 = vmatpush1.bf16.msra.mxu0 %v913
        %934 = vmatprep.subr.bf16.mxu0 0
        %935 = vmatpush1.bf16.msra.mxu0 %v914
        %936 = vmatprep.subr.bf16.mxu0 0
        %937 = vmatpush1.bf16.msra.mxu0 %v915
        %938 = vmatprep.subr.bf16.mxu0 0
        %939 = vmatpush1.bf16.msra.mxu0 %v916
        %940 = vmatprep.subr.bf16.mxu0 0
        %941 = vmatpush1.bf16.msra.mxu0 %v917
        %942 = vmatprep.subr.bf16.mxu0 0
        %943 = vmatpush1.bf16.msra.mxu0 0
        %944 = vmatprep.subr.bf16.mxu0 0
        %945 = vmatpush1.bf16.msra.mxu0 0
        %946 = vmatprep.subr.bf16.mxu0 0
        %947 = vmatpush1.bf16.msra.mxu0 0
        %948 = vmatprep.subr.bf16.mxu0 0
        %949 = vmatpush1.bf16.msra.mxu0 0
        %950 = vmatprep.subr.bf16.mxu0 0
        %951 = vmatpush1.bf16.msra.mxu0 0
        %952 = vmatprep.subr.bf16.mxu0 0
        %953 = vmatpush1.bf16.msra.mxu0 0
        %954 = vmatprep.subr.bf16.mxu0 0
        %955 = vmatpush1.bf16.msra.mxu0 0
        %956 = vmatprep.subr.bf16.mxu0 0
        %957 = vmatpush1.bf16.msra.mxu0 0
        %958 = vmatprep.mubr.bf16.mxu0 0
        %959 = vmatmul.mubr.bf16.gmra.mrb[0].mxu0 %v735
        %v960 = vpop.f32.mrb[0].mxu0
        %v961 = vadd.f32 %v864, %v960
        %v962 = vpop.f32.mrb[0].mxu0
        %v963 = vpop.f32.mrb[0].mxu0
        %v964 = vadd.f32 %v867, %v963
        %v965 = vpop.f32.mrb[0].mxu0
        %966 = vmatprep.mubr.bf16.mxu0 0
        %967 = vmatmul.mubr.bf16.gmra.mrb[0].mxu0 %v736
        %v968 = vpop.f32.mrb[0].mxu0
        %v969 = vadd.f32 %v872, %v968
        %v970 = vpop.f32.mrb[0].mxu0
        %v971 = vpop.f32.mrb[0].mxu0
        %v972 = vadd.f32 %v875, %v971
        %v973 = vpop.f32.mrb[0].mxu0
        %974 = vdwg.mxu0
        %v975 = vpack.c.bf16 %v732, %v731
        %v976 = vpack.c.bf16 %v734, %v733
        %v977 = vld [vmem:[#allocation5 + $0x80] sm:$0xf]
        %v978 = vld [vmem:[#allocation5 + $0x84] sm:$0xf]
        %v979 = vld [vmem:[#allocation5 + $0x88] sm:$0xf]
        %v980 = vld [vmem:[#allocation5 + $0x8c] sm:$0xf]
        %v981 = vld [vmem:[#allocation5 + $0x90] sm:$0xf]
        %v982 = vld [vmem:[#allocation5 + $0x94] sm:$0xf]
        %v983 = vld [vmem:[#allocation5 + $0x98] sm:$0xf]
        %v984 = vld [vmem:[#allocation5 + $0x9c] sm:$0xf]
        %v985 = vld [vmem:[#allocation5 + $0xa0] sm:$0xf]
        %v986 = vld [vmem:[#allocation5 + $0xa4] sm:$0xf]
        %v987 = vld [vmem:[#allocation5 + $0xa8] sm:$0xf]
        %v988 = vld [vmem:[#allocation5 + $0xac] sm:$0xf]
        %v989 = vld [vmem:[#allocation5 + $0xb0] sm:$0xf]
        %v990 = vld [vmem:[#allocation5 + $0xb4] sm:$0xf]
        %v991 = vld [vmem:[#allocation5 + $0xb8] sm:$0xf]
        %v992 = vld [vmem:[#allocation5 + $0xbc] sm:$0xf]
        %v1009 = vunpack.c.l.b16 %v977
        %v1010 = vunpack.c.l.b16 %v978
        %v1011 = vunpack.c.l.b16 %v979
        %v1012 = vunpack.c.l.b16 %v980
        %v1013 = vunpack.c.l.b16 %v981
        %v1014 = vunpack.c.l.b16 %v982
        %v1015 = vunpack.c.l.b16 %v983
        %v1016 = vunpack.c.l.b16 %v984
        %v1017 = vunpack.c.l.b16 %v985
        %v1018 = vunpack.c.l.b16 %v986
        %v1019 = vunpack.c.l.b16 %v987
        %v1020 = vunpack.c.l.b16 %v988
        %v1021 = vunpack.c.l.b16 %v989
        %v1022 = vunpack.c.l.b16 %v990
        %v1023 = vunpack.c.l.b16 %v991
        %v1024 = vunpack.c.l.b16 %v992
        %v1025 = vpack.c.b16 %v1010, %v1009
        %v1026 = vpack.c.b16 %v1012, %v1011
        %v1027 = vpack.c.b16 %v1014, %v1013
        %v1028 = vpack.c.b16 %v1016, %v1015
        %v1029 = vpack.c.b16 %v1018, %v1017
        %v1030 = vpack.c.b16 %v1020, %v1019
        %v1031 = vpack.c.b16 %v1022, %v1021
        %v1032 = vpack.c.b16 %v1024, %v1023
        %1041 = vmatprep.subr.bf16.mxu0 0
        %1042 = vmatpush1.bf16.msra.mxu0 %v1025
        %1043 = vmatprep.subr.bf16.mxu0 0
        %1044 = vmatpush1.bf16.msra.mxu0 %v1026
        %1045 = vmatprep.subr.bf16.mxu0 0
        %1046 = vmatpush1.bf16.msra.mxu0 %v1027
        %1047 = vmatprep.subr.bf16.mxu0 0
        %1048 = vmatpush1.bf16.msra.mxu0 %v1028
        %1049 = vmatprep.subr.bf16.mxu0 0
        %1050 = vmatpush1.bf16.msra.mxu0 %v1029
        %1051 = vmatprep.subr.bf16.mxu0 0
        %1052 = vmatpush1.bf16.msra.mxu0 %v1030
        %1053 = vmatprep.subr.bf16.mxu0 0
        %1054 = vmatpush1.bf16.msra.mxu0 %v1031
        %1055 = vmatprep.subr.bf16.mxu0 0
        %1056 = vmatpush1.bf16.msra.mxu0 %v1032
        %1057 = vmatprep.subr.bf16.mxu0 0
        %1058 = vmatpush1.bf16.msra.mxu0 0
        %1059 = vmatprep.subr.bf16.mxu0 0
        %1060 = vmatpush1.bf16.msra.mxu0 0
        %1061 = vmatprep.subr.bf16.mxu0 0
        %1062 = vmatpush1.bf16.msra.mxu0 0
        %1063 = vmatprep.subr.bf16.mxu0 0
        %1064 = vmatpush1.bf16.msra.mxu0 0
        %1065 = vmatprep.subr.bf16.mxu0 0
        %1066 = vmatpush1.bf16.msra.mxu0 0
        %1067 = vmatprep.subr.bf16.mxu0 0
        %1068 = vmatpush1.bf16.msra.mxu0 0
        %1069 = vmatprep.subr.bf16.mxu0 0
        %1070 = vmatpush1.bf16.msra.mxu0 0
        %1071 = vmatprep.subr.bf16.mxu0 0
        %1072 = vmatpush1.bf16.msra.mxu0 0
        %1073 = vmatprep.mubr.bf16.mxu0 0
        %1074 = vmatmul.mubr.bf16.gmra.mrb[0].mxu0 %v975
        %v1075 = vpop.f32.mrb[0].mxu0
        %v1076 = vadd.f32 0.0, %v1075
        %v1077 = vpop.f32.mrb[0].mxu0
        %v1078 = vpop.f32.mrb[0].mxu0
        %v1079 = vadd.f32 0.0, %v1078
        %v1080 = vpop.f32.mrb[0].mxu0
        %1081 = vmatprep.mubr.bf16.mxu0 0
        %1082 = vmatmul.mubr.bf16.gmra.mrb[0].mxu0 %v976
        %v1083 = vpop.f32.mrb[0].mxu0
        %v1084 = vadd.f32 0.0, %v1083
        %v1085 = vpop.f32.mrb[0].mxu0
        %v1086 = vpop.f32.mrb[0].mxu0
        %v1087 = vadd.f32 0.0, %v1086
        %v1088 = vpop.f32.mrb[0].mxu0
        %1089 = vdwg.mxu0
        %v1090 = vadd.f32 %v961, %v1076
        %v1091 = vadd.f32 %v964, %v1079
        %v1092 = vadd.f32 %v969, %v1084
        %v1093 = vadd.f32 %v972, %v1087
        %v1094 = vld [vmem:[%s2] sm:$0x1]
        %v1096 = vlaneseq
        %v1097 = vshrl.u32 %v1096, 7
        %v1098 = vsub.s32 0, %v1097
        %v1099 = vrot.slane %v1094, %v1098
        %v1101 = vadd.f32 %v1090, %v1099
        %v1102 = vadd.f32 %v1091, %v1099
        %v1103 = vadd.f32 %v1092, %v1099
        %v1104 = vadd.f32 %v1093, %v1099
        %vm1105 = vcmask 261120
        %v1107 = vsel %vm1105, %v647, 0
        %1109 = vmatprep.subr.mxu0 0.0
        %1110 = vmatpush1.msra.mxu0 %v1101
        %1111 = vmatprep.subr.mxu0 0.0
        %1112 = vmatpush1.msra.mxu0 %v1102
        %1113 = vmatprep.subr.mxu0 0.0
        %1114 = vmatpush1.msra.mxu0 %v1103
        %1115 = vmatprep.subr.mxu0 0.0
        %1116 = vmatpush1.msra.mxu0 %v1104
        %1117 = vmatprep.subr.mxu0 0.0
        %1118 = vmatpush1.msra.mxu0 0.0
        %1119 = vmatprep.subr.mxu0 0.0
        %1120 = vmatpush1.msra.mxu0 0.0
        %1121 = vmatprep.subr.mxu0 0.0
        %1122 = vmatpush1.msra.mxu0 0.0
        %1123 = vmatprep.subr.mxu0 0.0
        %1124 = vmatpush1.msra.mxu0 0.0
        %1125 = vmatprep.subr.mxu0 0.0
        %1126 = vmatpush1.msra.mxu0 0.0
        %1127 = vmatprep.subr.mxu0 0.0
        %1128 = vmatpush1.msra.mxu0 0.0
        %1129 = vmatprep.subr.mxu0 0.0
        %1130 = vmatpush1.msra.mxu0 0.0
        %1131 = vmatprep.subr.mxu0 0.0
        %1132 = vmatpush1.msra.mxu0 0.0
        %1133 = vmatprep.subr.mxu0 0.0
        %1134 = vmatpush1.msra.mxu0 0.0
        %1135 = vmatprep.subr.mxu0 0.0
        %1136 = vmatpush1.msra.mxu0 0.0
        %1137 = vmatprep.subr.mxu0 0.0
        %1138 = vmatpush1.msra.mxu0 0.0
        %1139 = vmatprep.subr.mxu0 0.0
        %1140 = vmatpush1.msra.mxu0 0.0
        %1141 = vmatprep.subr.mxu0 0.0
        %1142 = vmatpush1.msra.mxu0 0.0
        %1143 = vmatprep.subr.mxu0 0.0
        %1144 = vmatpush1.msra.mxu0 0.0
        %1145 = vmatprep.subr.mxu0 0.0
        %1146 = vmatpush1.msra.mxu0 0.0
        %1147 = vmatprep.subr.mxu0 0.0
        %1148 = vmatpush1.msra.mxu0 0.0
        %1149 = vmatprep.subr.mxu0 0.0
        %1150 = vmatpush1.msra.mxu0 0.0
        %1151 = vmatprep.subr.mxu0 0.0
        %1152 = vmatpush1.msra.mxu0 0.0
        %1153 = vmatprep.subr.mxu0 0.0
        %1154 = vmatpush1.msra.mxu0 0.0
        %1155 = vmatprep.subr.mxu0 0.0
        %1156 = vmatpush1.msra.mxu0 0.0
        %1157 = vmatprep.subr.mxu0 0.0
        %1158 = vmatpush1.msra.mxu0 0.0
        %1159 = vmatprep.subr.mxu0 0.0
        %1160 = vmatpush1.msra.mxu0 0.0
        %1161 = vmatprep.subr.mxu0 0.0
        %1162 = vmatpush1.msra.mxu0 0.0
        %1163 = vmatprep.subr.mxu0 0.0
        %1164 = vmatpush1.msra.mxu0 0.0
        %1165 = vmatprep.subr.mxu0 0.0
        %1166 = vmatpush1.msra.mxu0 0.0
        %1167 = vmatprep.subr.mxu0 0.0
        %1168 = vmatpush1.msra.mxu0 0.0
        %1169 = vmatprep.subr.mxu0 0.0
        %1170 = vmatpush1.msra.mxu0 0.0
        %1171 = vmatprep.subr.mxu0 0.0
        %1172 = vmatpush1.msra.mxu0 0.0
        %1173 = vmatprep.mubr.f32.mxu0 0.0
        %1174 = vmatmul.mubr.f32.gmra.mrb[0].mxu0 %v1107
        %v1175 = vpop.f32.mrb[0].mxu0
        %v1176 = vadd.f32 0.0, %v1175
        %v1177 = vpop.f32.mrb[0].mxu0
        %1178 = vdwg.mxu0
        %v1179 = vmul.f32 %v1101, %v1101
        %v1180 = vmul.f32 %v1102, %v1102
        %v1181 = vmul.f32 %v1103, %v1103
        %v1182 = vmul.f32 %v1104, %v1104
        %1183 = vmatprep.subr.mxu0 0.0
        %1184 = vmatpush1.msra.mxu0 %v1179
        %1185 = vmatprep.subr.mxu0 0.0
        %1186 = vmatpush1.msra.mxu0 %v1180
        %1187 = vmatprep.subr.mxu0 0.0
        %1188 = vmatpush1.msra.mxu0 %v1181
        %1189 = vmatprep.subr.mxu0 0.0
        %1190 = vmatpush1.msra.mxu0 %v1182
        %1191 = vmatprep.subr.mxu0 0.0
        %1192 = vmatpush1.msra.mxu0 0.0
        %1193 = vmatprep.subr.mxu0 0.0
        %1194 = vmatpush1.msra.mxu0 0.0
        %1195 = vmatprep.subr.mxu0 0.0
        %1196 = vmatpush1.msra.mxu0 0.0
        %1197 = vmatprep.subr.mxu0 0.0
        %1198 = vmatpush1.msra.mxu0 0.0
        %1199 = vmatprep.subr.mxu0 0.0
        %1200 = vmatpush1.msra.mxu0 0.0
        %1201 = vmatprep.subr.mxu0 0.0
        %1202 = vmatpush1.msra.mxu0 0.0
        %1203 = vmatprep.subr.mxu0 0.0
        %1204 = vmatpush1.msra.mxu0 0.0
        %1205 = vmatprep.subr.mxu0 0.0
        %1206 = vmatpush1.msra.mxu0 0.0
        %1207 = vmatprep.subr.mxu0 0.0
        %1208 = vmatpush1.msra.mxu0 0.0
        %1209 = vmatprep.subr.mxu0 0.0
        %1210 = vmatpush1.msra.mxu0 0.0
        %1211 = vmatprep.subr.mxu0 0.0
        %1212 = vmatpush1.msra.mxu0 0.0
        %1213 = vmatprep.subr.mxu0 0.0
        %1214 = vmatpush1.msra.mxu0 0.0
        %1215 = vmatprep.subr.mxu0 0.0
        %1216 = vmatpush1.msra.mxu0 0.0
        %1217 = vmatprep.subr.mxu0 0.0
        %1218 = vmatpush1.msra.mxu0 0.0
        %1219 = vmatprep.subr.mxu0 0.0
        %1220 = vmatpush1.msra.mxu0 0.0
        %1221 = vmatprep.subr.mxu0 0.0
        %1222 = vmatpush1.msra.mxu0 0.0
        %1223 = vmatprep.subr.mxu0 0.0
        %1224 = vmatpush1.msra.mxu0 0.0
        %1225 = vmatprep.subr.mxu0 0.0
        %1226 = vmatpush1.msra.mxu0 0.0
        %1227 = vmatprep.subr.mxu0 0.0
        %1228 = vmatpush1.msra.mxu0 0.0
        %1229 = vmatprep.subr.mxu0 0.0
        %1230 = vmatpush1.msra.mxu0 0.0
        %1231 = vmatprep.subr.mxu0 0.0
        %1232 = vmatpush1.msra.mxu0 0.0
        %1233 = vmatprep.subr.mxu0 0.0
        %1234 = vmatpush1.msra.mxu0 0.0
        %1235 = vmatprep.subr.mxu0 0.0
        %1236 = vmatpush1.msra.mxu0 0.0
        %1237 = vmatprep.subr.mxu0 0.0
        %1238 = vmatpush1.msra.mxu0 0.0
        %1239 = vmatprep.subr.mxu0 0.0
        %1240 = vmatpush1.msra.mxu0 0.0
        %1241 = vmatprep.subr.mxu0 0.0
        %1242 = vmatpush1.msra.mxu0 0.0
        %1243 = vmatprep.subr.mxu0 0.0
        %1244 = vmatpush1.msra.mxu0 0.0
        %1245 = vmatprep.subr.mxu0 0.0
        %1246 = vmatpush1.msra.mxu0 0.0
        %1247 = vmatprep.mubr.f32.mxu0 0.0
        %1248 = vmatmul.mubr.f32.gmra.mrb[0].mxu0 %v1107
        %v1249 = vpop.f32.mrb[0].mxu0
        %v1250 = vadd.f32 0.0, %v1249
        %v1251 = vpop.f32.mrb[0].mxu0
        %1252 = vdwg.mxu0
        %1253 = vmatprep.subr.mxu0 0.0
        %1254 = vmatpush1.msra.mxu0 %v652
        %1255 = vmatprep.subr.mxu0 0.0
        %1256 = vmatpush1.msra.mxu0 %v653
        %1257 = vmatprep.subr.mxu0 0.0
        %1258 = vmatpush1.msra.mxu0 %v654
        %1259 = vmatprep.subr.mxu0 0.0
        %1260 = vmatpush1.msra.mxu0 %v655
        %1261 = vmatprep.subr.mxu0 0.0
        %1262 = vmatpush1.msra.mxu0 %v656
        %1263 = vmatprep.subr.mxu0 0.0
        %1264 = vmatpush1.msra.mxu0 %v657
        %1265 = vmatprep.subr.mxu0 0.0
        %1266 = vmatpush1.msra.mxu0 %v658
        %1267 = vmatprep.subr.mxu0 0.0
        %1268 = vmatpush1.msra.mxu0 %v659
        %1269 = vmatprep.subr.mxu0 0.0
        %1270 = vmatpush1.msra.mxu0 %v660
        %1271 = vmatprep.subr.mxu0 0.0
        %1272 = vmatpush1.msra.mxu0 %v661
        %1273 = vmatprep.subr.mxu0 0.0
        %1274 = vmatpush1.msra.mxu0 %v662
        %1275 = vmatprep.subr.mxu0 0.0
        %1276 = vmatpush1.msra.mxu0 %v663
        %1277 = vmatprep.subr.mxu0 0.0
        %1278 = vmatpush1.msra.mxu0 %v664
        %1279 = vmatprep.subr.mxu0 0.0
        %1280 = vmatpush1.msra.mxu0 %v665
        %1281 = vmatprep.subr.mxu0 0.0
        %1282 = vmatpush1.msra.mxu0 %v666
        %1283 = vmatprep.subr.mxu0 0.0
        %1284 = vmatpush1.msra.mxu0 %v667
        %1285 = vmatprep.subr.mxu0 0.0
        %1286 = vmatpush1.msra.mxu0 0.0
        %1287 = vmatprep.subr.mxu0 0.0
        %1288 = vmatpush1.msra.mxu0 0.0
        %1289 = vmatprep.subr.mxu0 0.0
        %1290 = vmatpush1.msra.mxu0 0.0
        %1291 = vmatprep.subr.mxu0 0.0
        %1292 = vmatpush1.msra.mxu0 0.0
        %1293 = vmatprep.subr.mxu0 0.0
        %1294 = vmatpush1.msra.mxu0 0.0
        %1295 = vmatprep.subr.mxu0 0.0
        %1296 = vmatpush1.msra.mxu0 0.0
        %1297 = vmatprep.subr.mxu0 0.0
        %1298 = vmatpush1.msra.mxu0 0.0
        %1299 = vmatprep.subr.mxu0 0.0
        %1300 = vmatpush1.msra.mxu0 0.0
        %1301 = vmatprep.subr.mxu0 0.0
        %1302 = vmatpush1.msra.mxu0 0.0
        %1303 = vmatprep.subr.mxu0 0.0
        %1304 = vmatpush1.msra.mxu0 0.0
        %1305 = vmatprep.subr.mxu0 0.0
        %1306 = vmatpush1.msra.mxu0 0.0
        %1307 = vmatprep.subr.mxu0 0.0
        %1308 = vmatpush1.msra.mxu0 0.0
        %1309 = vmatprep.subr.mxu0 0.0
        %1310 = vmatpush1.msra.mxu0 0.0
        %1311 = vmatprep.subr.mxu0 0.0
        %1312 = vmatpush1.msra.mxu0 0.0
        %1313 = vmatprep.subr.mxu0 0.0
        %1314 = vmatpush1.msra.mxu0 0.0
        %1315 = vmatprep.subr.mxu0 0.0
        %1316 = vmatpush1.msra.mxu0 0.0
        %1317 = vmatprep.mubr.f32.mxu0 0.0
        %1318 = vmatmul.mubr.f32.gmra.mrb[0].mxu0 %v1176
        %v1319 = vpop.f32.mrb[0].mxu0
        %v1320 = vadd.f32 0.0, %v1319
        %v1321 = vpop.f32.mrb[0].mxu0
        %1322 = vdwg.mxu0
        %1323 = vmatprep.subr.mxu0 0.0
        %1324 = vmatpush1.msra.mxu0 %v652
        %1325 = vmatprep.subr.mxu0 0.0
        %1326 = vmatpush1.msra.mxu0 %v653
        %1327 = vmatprep.subr.mxu0 0.0
        %1328 = vmatpush1.msra.mxu0 %v654
        %1329 = vmatprep.subr.mxu0 0.0
        %1330 = vmatpush1.msra.mxu0 %v655
        %1331 = vmatprep.subr.mxu0 0.0
        %1332 = vmatpush1.msra.mxu0 %v656
        %1333 = vmatprep.subr.mxu0 0.0
        %1334 = vmatpush1.msra.mxu0 %v657
        %1335 = vmatprep.subr.mxu0 0.0
        %1336 = vmatpush1.msra.mxu0 %v658
        %1337 = vmatprep.subr.mxu0 0.0
        %1338 = vmatpush1.msra.mxu0 %v659
        %1339 = vmatprep.subr.mxu0 0.0
        %1340 = vmatpush1.msra.mxu0 %v660
        %1341 = vmatprep.subr.mxu0 0.0
        %1342 = vmatpush1.msra.mxu0 %v661
        %1343 = vmatprep.subr.mxu0 0.0
        %1344 = vmatpush1.msra.mxu0 %v662
        %1345 = vmatprep.subr.mxu0 0.0
        %1346 = vmatpush1.msra.mxu0 %v663
        %1347 = vmatprep.subr.mxu0 0.0
        %1348 = vmatpush1.msra.mxu0 %v664
        %1349 = vmatprep.subr.mxu0 0.0
        %1350 = vmatpush1.msra.mxu0 %v665
        %1351 = vmatprep.subr.mxu0 0.0
        %1352 = vmatpush1.msra.mxu0 %v666
        %1353 = vmatprep.subr.mxu0 0.0
        %1354 = vmatpush1.msra.mxu0 %v667
        %1355 = vmatprep.subr.mxu0 0.0
        %1356 = vmatpush1.msra.mxu0 0.0
        %1357 = vmatprep.subr.mxu0 0.0
        %1358 = vmatpush1.msra.mxu0 0.0
        %1359 = vmatprep.subr.mxu0 0.0
        %1360 = vmatpush1.msra.mxu0 0.0
        %1361 = vmatprep.subr.mxu0 0.0
        %1362 = vmatpush1.msra.mxu0 0.0
        %1363 = vmatprep.subr.mxu0 0.0
        %1364 = vmatpush1.msra.mxu0 0.0
        %1365 = vmatprep.subr.mxu0 0.0
        %1366 = vmatpush1.msra.mxu0 0.0
        %1367 = vmatprep.subr.mxu0 0.0
        %1368 = vmatpush1.msra.mxu0 0.0
        %1369 = vmatprep.subr.mxu0 0.0
        %1370 = vmatpush1.msra.mxu0 0.0
        %1371 = vmatprep.subr.mxu0 0.0
        %1372 = vmatpush1.msra.mxu0 0.0
        %1373 = vmatprep.subr.mxu0 0.0
        %1374 = vmatpush1.msra.mxu0 0.0
        %1375 = vmatprep.subr.mxu0 0.0
        %1376 = vmatpush1.msra.mxu0 0.0
        %1377 = vmatprep.subr.mxu0 0.0
        %1378 = vmatpush1.msra.mxu0 0.0
        %1379 = vmatprep.subr.mxu0 0.0
        %1380 = vmatpush1.msra.mxu0 0.0
        %1381 = vmatprep.subr.mxu0 0.0
        %1382 = vmatpush1.msra.mxu0 0.0
        %1383 = vmatprep.subr.mxu0 0.0
        %1384 = vmatpush1.msra.mxu0 0.0
        %1385 = vmatprep.subr.mxu0 0.0
        %1386 = vmatpush1.msra.mxu0 0.0
        %1387 = vmatprep.mubr.f32.mxu0 0.0
        %1388 = vmatmul.mubr.f32.gmra.mrb[0].mxu0 %v1250
        %v1389 = vpop.f32.mrb[0].mxu0
        %v1390 = vadd.f32 0.0, %v1389
        %v1391 = vpop.f32.mrb[0].mxu0
        %1392 = vdwg.mxu0
        %vm1393 = vcmask 64512
        %v1395 = vsel %vm1393, %v648, 0
        %v1398 = vsel %vm1393, %v649, 0
        %v1401 = vsel %vm1393, %v650, 0
        %v1404 = vsel %vm1393, %v651, 0
        %1406 = vmatprep.subr.mxu0 0.0
        %1407 = vmatpush1.msra.mxu0 %v1320
        %1408 = vmatprep.subr.mxu0 0.0
        %1409 = vmatpush1.msra.mxu0 0.0
        %1410 = vmatprep.subr.mxu0 0.0
        %1411 = vmatpush1.msra.mxu0 0.0
        %1412 = vmatprep.subr.mxu0 0.0
        %1413 = vmatpush1.msra.mxu0 0.0
        %1414 = vmatprep.subr.mxu0 0.0
        %1415 = vmatpush1.msra.mxu0 0.0
        %1416 = vmatprep.subr.mxu0 0.0
        %1417 = vmatpush1.msra.mxu0 0.0
        %1418 = vmatprep.subr.mxu0 0.0
        %1419 = vmatpush1.msra.mxu0 0.0
        %1420 = vmatprep.subr.mxu0 0.0
        %1421 = vmatpush1.msra.mxu0 0.0
        %1422 = vmatprep.subr.mxu0 0.0
        %1423 = vmatpush1.msra.mxu0 0.0
        %1424 = vmatprep.subr.mxu0 0.0
        %1425 = vmatpush1.msra.mxu0 0.0
        %1426 = vmatprep.subr.mxu0 0.0
        %1427 = vmatpush1.msra.mxu0 0.0
        %1428 = vmatprep.subr.mxu0 0.0
        %1429 = vmatpush1.msra.mxu0 0.0
        %1430 = vmatprep.subr.mxu0 0.0
        %1431 = vmatpush1.msra.mxu0 0.0
        %1432 = vmatprep.subr.mxu0 0.0
        %1433 = vmatpush1.msra.mxu0 0.0
        %1434 = vmatprep.subr.mxu0 0.0
        %1435 = vmatpush1.msra.mxu0 0.0
        %1436 = vmatprep.subr.mxu0 0.0
        %1437 = vmatpush1.msra.mxu0 0.0
        %1438 = vmatprep.subr.mxu0 0.0
        %1439 = vmatpush1.msra.mxu0 0.0
        %1440 = vmatprep.subr.mxu0 0.0
        %1441 = vmatpush1.msra.mxu0 0.0
        %1442 = vmatprep.subr.mxu0 0.0
        %1443 = vmatpush1.msra.mxu0 0.0
        %1444 = vmatprep.subr.mxu0 0.0
        %1445 = vmatpush1.msra.mxu0 0.0
        %1446 = vmatprep.subr.mxu0 0.0
        %1447 = vmatpush1.msra.mxu0 0.0
        %1448 = vmatprep.subr.mxu0 0.0
        %1449 = vmatpush1.msra.mxu0 0.0
        %1450 = vmatprep.subr.mxu0 0.0
        %1451 = vmatpush1.msra.mxu0 0.0
        %1452 = vmatprep.subr.mxu0 0.0
        %1453 = vmatpush1.msra.mxu0 0.0
        %1454 = vmatprep.subr.mxu0 0.0
        %1455 = vmatpush1.msra.mxu0 0.0
        %1456 = vmatprep.subr.mxu0 0.0
        %1457 = vmatpush1.msra.mxu0 0.0
        %1458 = vmatprep.subr.mxu0 0.0
        %1459 = vmatpush1.msra.mxu0 0.0
        %1460 = vmatprep.subr.mxu0 0.0
        %1461 = vmatpush1.msra.mxu0 0.0
        %1462 = vmatprep.subr.mxu0 0.0
        %1463 = vmatpush1.msra.mxu0 0.0
        %1464 = vmatprep.subr.mxu0 0.0
        %1465 = vmatpush1.msra.mxu0 0.0
        %1466 = vmatprep.subr.mxu0 0.0
        %1467 = vmatpush1.msra.mxu0 0.0
        %1468 = vmatprep.subr.mxu0 0.0
        %1469 = vmatpush1.msra.mxu0 0.0
        %1470 = vmatprep.mubr.f32.mxu0 0.0
        %1471 = vmatmul.mubr.f32.gmra.mrb[0].mxu0 %v1395
        %v1472 = vpop.f32.mrb[0].mxu0
        %v1473 = vadd.f32 0.0, %v1472
        %v1474 = vpop.f32.mrb[0].mxu0
        %1475 = vmatprep.mubr.f32.mxu0 0.0
        %1476 = vmatmul.mubr.f32.gmra.mrb[0].mxu0 %v1398
        %v1477 = vpop.f32.mrb[0].mxu0
        %v1478 = vadd.f32 0.0, %v1477
        %v1479 = vpop.f32.mrb[0].mxu0
        %1480 = vmatprep.mubr.f32.mxu0 0.0
        %1481 = vmatmul.mubr.f32.gmra.mrb[0].mxu0 %v1401
        %v1482 = vpop.f32.mrb[0].mxu0
        %v1483 = vadd.f32 0.0, %v1482
        %v1484 = vpop.f32.mrb[0].mxu0
        %1485 = vmatprep.mubr.f32.mxu0 0.0
        %1486 = vmatmul.mubr.f32.gmra.mrb[0].mxu0 %v1404
        %v1487 = vpop.f32.mrb[0].mxu0
        %v1488 = vadd.f32 0.0, %v1487
        %v1489 = vpop.f32.mrb[0].mxu0
        %1490 = vdwg.mxu0
        %1491 = vmatprep.subr.mxu0 0.0
        %1492 = vmatpush1.msra.mxu0 %v1390
        %1493 = vmatprep.subr.mxu0 0.0
        %1494 = vmatpush1.msra.mxu0 0.0
        %1495 = vmatprep.subr.mxu0 0.0
        %1496 = vmatpush1.msra.mxu0 0.0
        %1497 = vmatprep.subr.mxu0 0.0
        %1498 = vmatpush1.msra.mxu0 0.0
        %1499 = vmatprep.subr.mxu0 0.0
        %1500 = vmatpush1.msra.mxu0 0.0
        %1501 = vmatprep.subr.mxu0 0.0
        %1502 = vmatpush1.msra.mxu0 0.0
        %1503 = vmatprep.subr.mxu0 0.0
        %1504 = vmatpush1.msra.mxu0 0.0
        %1505 = vmatprep.subr.mxu0 0.0
        %1506 = vmatpush1.msra.mxu0 0.0
        %1507 = vmatprep.subr.mxu0 0.0
        %1508 = vmatpush1.msra.mxu0 0.0
        %1509 = vmatprep.subr.mxu0 0.0
        %1510 = vmatpush1.msra.mxu0 0.0
        %1511 = vmatprep.subr.mxu0 0.0
        %1512 = vmatpush1.msra.mxu0 0.0
        %1513 = vmatprep.subr.mxu0 0.0
        %1514 = vmatpush1.msra.mxu0 0.0
        %1515 = vmatprep.subr.mxu0 0.0
        %1516 = vmatpush1.msra.mxu0 0.0
        %1517 = vmatprep.subr.mxu0 0.0
        %1518 = vmatpush1.msra.mxu0 0.0
        %1519 = vmatprep.subr.mxu0 0.0
        %1520 = vmatpush1.msra.mxu0 0.0
        %1521 = vmatprep.subr.mxu0 0.0
        %1522 = vmatpush1.msra.mxu0 0.0
        %1523 = vmatprep.subr.mxu0 0.0
        %1524 = vmatpush1.msra.mxu0 0.0
        %1525 = vmatprep.subr.mxu0 0.0
        %1526 = vmatpush1.msra.mxu0 0.0
        %1527 = vmatprep.subr.mxu0 0.0
        %1528 = vmatpush1.msra.mxu0 0.0
        %1529 = vmatprep.subr.mxu0 0.0
        %1530 = vmatpush1.msra.mxu0 0.0
        %1531 = vmatprep.subr.mxu0 0.0
        %1532 = vmatpush1.msra.mxu0 0.0
        %1533 = vmatprep.subr.mxu0 0.0
        %1534 = vmatpush1.msra.mxu0 0.0
        %1535 = vmatprep.subr.mxu0 0.0
        %1536 = vmatpush1.msra.mxu0 0.0
        %1537 = vmatprep.subr.mxu0 0.0
        %1538 = vmatpush1.msra.mxu0 0.0
        %1539 = vmatprep.subr.mxu0 0.0
        %1540 = vmatpush1.msra.mxu0 0.0
        %1541 = vmatprep.subr.mxu0 0.0
        %1542 = vmatpush1.msra.mxu0 0.0
        %1543 = vmatprep.subr.mxu0 0.0
        %1544 = vmatpush1.msra.mxu0 0.0
        %1545 = vmatprep.subr.mxu0 0.0
        %1546 = vmatpush1.msra.mxu0 0.0
        %1547 = vmatprep.subr.mxu0 0.0
        %1548 = vmatpush1.msra.mxu0 0.0
        %1549 = vmatprep.subr.mxu0 0.0
        %1550 = vmatpush1.msra.mxu0 0.0
        %1551 = vmatprep.subr.mxu0 0.0
        %1552 = vmatpush1.msra.mxu0 0.0
        %1553 = vmatprep.subr.mxu0 0.0
        %1554 = vmatpush1.msra.mxu0 0.0
        %1555 = vmatprep.mubr.f32.mxu0 0.0
        %1556 = vmatmul.mubr.f32.gmra.mrb[0].mxu0 %v1395
        %v1557 = vpop.f32.mrb[0].mxu0
        %v1558 = vadd.f32 0.0, %v1557
        %v1559 = vpop.f32.mrb[0].mxu0
        %1560 = vmatprep.mubr.f32.mxu0 0.0
        %1561 = vmatmul.mubr.f32.gmra.mrb[0].mxu0 %v1398
        %v1562 = vpop.f32.mrb[0].mxu0
        %v1563 = vadd.f32 0.0, %v1562
        %v1564 = vpop.f32.mrb[0].mxu0
        %1565 = vmatprep.mubr.f32.mxu0 0.0
        %1566 = vmatmul.mubr.f32.gmra.mrb[0].mxu0 %v1401
        %v1567 = vpop.f32.mrb[0].mxu0
        %v1568 = vadd.f32 0.0, %v1567
        %v1569 = vpop.f32.mrb[0].mxu0
        %1570 = vmatprep.mubr.f32.mxu0 0.0
        %1571 = vmatmul.mubr.f32.gmra.mrb[0].mxu0 %v1404
        %v1572 = vpop.f32.mrb[0].mxu0
        %v1573 = vadd.f32 0.0, %v1572
        %v1574 = vpop.f32.mrb[0].mxu0
        %1575 = vdwg.mxu0
        %v1576 = vmul.f32 %v1473, %v1473
        %v1577 = vmul.f32 %v1478, %v1478
        %v1578 = vmul.f32 %v1483, %v1483
        %v1579 = vmul.f32 %v1488, %v1488
        %v1580 = vsub.f32 %v1558, %v1576
        %v1581 = vsub.f32 %v1563, %v1577
        %v1582 = vsub.f32 %v1568, %v1578
        %v1583 = vsub.f32 %v1573, %v1579
        %v1584 = vadd.f32 %v1580, 1e-05
        %v1585 = vadd.f32 %v1581, 1e-05
        %v1586 = vadd.f32 %v1582, 1e-05
        %v1587 = vadd.f32 %v1583, 1e-05
        %v1588 = vrsqrt.pop %v1584
        %v1589 = vrsqrt.pop %v1585
        %v1590 = vrsqrt.pop %v1586
        %v1591 = vrsqrt.pop %v1587
        %v1592 = vsub.f32 %v1101, %v1473
        %v1593 = vsub.f32 %v1102, %v1478
        %v1594 = vsub.f32 %v1103, %v1483
        %v1595 = vsub.f32 %v1104, %v1488
        %v1596 = vmul.f32 %v1592, %v1588
        %v1597 = vmul.f32 %v1593, %v1589
        %v1598 = vmul.f32 %v1594, %v1590
        %v1599 = vmul.f32 %v1595, %v1591
        %v1600 = vld [vmem:[%s3] sm:$0x1]
        %v1602 = vlaneseq
        %v1603 = vshrl.u32 %v1602, 7
        %v1604 = vsub.s32 0, %v1603
        %v1605 = vrot.slane %v1600, %v1604
        %v1607 = vmul.f32 %v1596, %v1605
        %v1608 = vmul.f32 %v1597, %v1605
        %v1609 = vmul.f32 %v1598, %v1605
        %v1610 = vmul.f32 %v1599, %v1605
        %v1611 = vld [vmem:[%s4] sm:$0x1]
        %v1613 = vlaneseq
        %v1614 = vshrl.u32 %v1613, 7
        %v1615 = vsub.s32 0, %v1614
        %v1616 = vrot.slane %v1611, %v1615
        %v1618 = vadd.f32 %v1607, %v1616
        %v1619 = vadd.f32 %v1608, %v1616
        %v1620 = vadd.f32 %v1609, %v1616
        %v1621 = vadd.f32 %v1610, %v1616
        %v1622 = vmax.f32 %v1618, 0.0
        %v1623 = vmax.f32 %v1619, 0.0
        %v1624 = vmax.f32 %v1620, 0.0
        %v1625 = vmax.f32 %v1621, 0.0
        %v1626 = vmul.f32 %v1622, %v671
        %v1627 = vmul.f32 %v1623, %v676
        %v1628 = vmul.f32 %v1624, %v681
        %v1629 = vmul.f32 %v1625, %v686
        %v1630 = vrot.slane %v1626, 7
        %v1631 = vrot.slane %v1627, 7
        %v1632 = vrot.slane %v1628, 7
        %v1633 = vrot.slane %v1629, 7
        %v1634 = vsel %vm717, %v1632, %v1633
        %v1635 = vsel %vm717, %v1631, %v1632
        %v1636 = vsel %vm717, %v1630, %v1631
        %v1637 = vsel %vm717, %v1633, %v1630
        %v1638 = vrot.slane %v1626, 1
        %v1639 = vrot.slane %v1627, 1
        %v1640 = vrot.slane %v1628, 1
        %v1641 = vrot.slane %v1629, 1
        %v1642 = vsel %vm726, %v1640, %v1641
        %v1643 = vsel %vm726, %v1639, %v1640
        %v1644 = vsel %vm726, %v1638, %v1639
        %v1645 = vsel %vm726, %v1641, %v1638
        %v1646 = vmul.f32 %v1644, %v701
        %v1647 = vmul.f32 %v1643, %v702
        %v1648 = vmul.f32 %v1642, %v703
        %v1649 = vmul.f32 %v1645, %v704
        %v1650 = vpack.c.bf16 %v1636, %v1637
        %v1651 = vpack.c.bf16 %v1634, %v1635
        %v1652 = vld [vmem:[#allocation7] sm:$0xf]
        %v1653 = vld [vmem:[#allocation7 + $0x4] sm:$0xf]
        %v1654 = vld [vmem:[#allocation7 + $0x8] sm:$0xf]
        %v1655 = vld [vmem:[#allocation7 + $0xc] sm:$0xf]
        %v1656 = vld [vmem:[#allocation7 + $0x10] sm:$0xf]
        %v1657 = vld [vmem:[#allocation7 + $0x14] sm:$0xf]
        %v1658 = vld [vmem:[#allocation7 + $0x18] sm:$0xf]
        %v1659 = vld [vmem:[#allocation7 + $0x1c] sm:$0xf]
        %v1660 = vld [vmem:[#allocation7 + $0x20] sm:$0xf]
        %v1661 = vld [vmem:[#allocation7 + $0x24] sm:$0xf]
        %v1662 = vld [vmem:[#allocation7 + $0x28] sm:$0xf]
        %v1663 = vld [vmem:[#allocation7 + $0x2c] sm:$0xf]
        %v1664 = vld [vmem:[#allocation7 + $0x30] sm:$0xf]
        %v1665 = vld [vmem:[#allocation7 + $0x34] sm:$0xf]
        %v1666 = vld [vmem:[#allocation7 + $0x38] sm:$0xf]
        %v1667 = vld [vmem:[#allocation7 + $0x3c] sm:$0xf]
        %v1668 = vpack.c.bf16 %v1627, %v1626
        %v1669 = vpack.c.bf16 %v1629, %v1628
        %v1670 = vld [vmem:[#allocation7 + $0x40] sm:$0xf]
        %v1671 = vld [vmem:[#allocation7 + $0x44] sm:$0xf]
        %v1672 = vld [vmem:[#allocation7 + $0x48] sm:$0xf]
        %v1673 = vld [vmem:[#allocation7 + $0x4c] sm:$0xf]
        %v1674 = vld [vmem:[#allocation7 + $0x50] sm:$0xf]
        %v1675 = vld [vmem:[#allocation7 + $0x54] sm:$0xf]
        %v1676 = vld [vmem:[#allocation7 + $0x58] sm:$0xf]
        %v1677 = vld [vmem:[#allocation7 + $0x5c] sm:$0xf]
        %v1678 = vld [vmem:[#allocation7 + $0x60] sm:$0xf]
        %v1679 = vld [vmem:[#allocation7 + $0x64] sm:$0xf]
        %v1680 = vld [vmem:[#allocation7 + $0x68] sm:$0xf]
        %v1681 = vld [vmem:[#allocation7 + $0x6c] sm:$0xf]
        %v1682 = vld [vmem:[#allocation7 + $0x70] sm:$0xf]
        %v1683 = vld [vmem:[#allocation7 + $0x74] sm:$0xf]
        %v1684 = vld [vmem:[#allocation7 + $0x78] sm:$0xf]
        %v1685 = vld [vmem:[#allocation7 + $0x7c] sm:$0xf]
        %v1702 = vunpack.c.l.b16 %v1670
        %v1703 = vunpack.c.l.b16 %v1671
        %v1704 = vunpack.c.l.b16 %v1672
        %v1705 = vunpack.c.l.b16 %v1673
        %v1706 = vunpack.c.l.b16 %v1674
        %v1707 = vunpack.c.l.b16 %v1675
        %v1708 = vunpack.c.l.b16 %v1676
        %v1709 = vunpack.c.l.b16 %v1677
        %v1710 = vunpack.c.l.b16 %v1678
        %v1711 = vunpack.c.l.b16 %v1679
        %v1712 = vunpack.c.l.b16 %v1680
        %v1713 = vunpack.c.l.b16 %v1681
        %v1714 = vunpack.c.l.b16 %v1682
        %v1715 = vunpack.c.l.b16 %v1683
        %v1716 = vunpack.c.l.b16 %v1684
        %v1717 = vunpack.c.l.b16 %v1685
        %v1718 = vpack.c.b16 %v1703, %v1702
        %v1719 = vpack.c.b16 %v1705, %v1704
        %v1720 = vpack.c.b16 %v1707, %v1706
        %v1721 = vpack.c.b16 %v1709, %v1708
        %v1722 = vpack.c.b16 %v1711, %v1710
        %v1723 = vpack.c.b16 %v1713, %v1712
        %v1724 = vpack.c.b16 %v1715, %v1714
        %v1725 = vpack.c.b16 %v1717, %v1716
        %1734 = vmatprep.subr.bf16.mxu0 0
        %1735 = vmatpush1.bf16.msra.mxu0 %v1718
        %1736 = vmatprep.subr.bf16.mxu0 0
        %1737 = vmatpush1.bf16.msra.mxu0 %v1719
        %1738 = vmatprep.subr.bf16.mxu0 0
        %1739 = vmatpush1.bf16.msra.mxu0 %v1720
        %1740 = vmatprep.subr.bf16.mxu0 0
        %1741 = vmatpush1.bf16.msra.mxu0 %v1721
        %1742 = vmatprep.subr.bf16.mxu0 0
        %1743 = vmatpush1.bf16.msra.mxu0 %v1722
        %1744 = vmatprep.subr.bf16.mxu0 0
        %1745 = vmatpush1.bf16.msra.mxu0 %v1723
        %1746 = vmatprep.subr.bf16.mxu0 0
        %1747 = vmatpush1.bf16.msra.mxu0 %v1724
        %1748 = vmatprep.subr.bf16.mxu0 0
        %1749 = vmatpush1.bf16.msra.mxu0 %v1725
        %1750 = vmatprep.subr.bf16.mxu0 0
        %1751 = vmatpush1.bf16.msra.mxu0 0
        %1752 = vmatprep.subr.bf16.mxu0 0
        %1753 = vmatpush1.bf16.msra.mxu0 0
        %1754 = vmatprep.subr.bf16.mxu0 0
        %1755 = vmatpush1.bf16.msra.mxu0 0
        %1756 = vmatprep.subr.bf16.mxu0 0
        %1757 = vmatpush1.bf16.msra.mxu0 0
        %1758 = vmatprep.subr.bf16.mxu0 0
        %1759 = vmatpush1.bf16.msra.mxu0 0
        %1760 = vmatprep.subr.bf16.mxu0 0
        %1761 = vmatpush1.bf16.msra.mxu0 0
        %1762 = vmatprep.subr.bf16.mxu0 0
        %1763 = vmatpush1.bf16.msra.mxu0 0
        %1764 = vmatprep.subr.bf16.mxu0 0
        %1765 = vmatpush1.bf16.msra.mxu0 0
        %1766 = vmatprep.mubr.bf16.mxu0 0
        %1767 = vmatmul.mubr.bf16.gmra.mrb[0].mxu0 %v1668
        %v1768 = vpop.f32.mrb[0].mxu0
        %v1769 = vadd.f32 0.0, %v1768
        %v1770 = vpop.f32.mrb[0].mxu0
        %v1771 = vpop.f32.mrb[0].mxu0
        %v1772 = vadd.f32 0.0, %v1771
        %v1773 = vpop.f32.mrb[0].mxu0
        %1774 = vmatprep.mubr.bf16.mxu0 0
        %1775 = vmatmul.mubr.bf16.gmra.mrb[0].mxu0 %v1669
        %v1776 = vpop.f32.mrb[0].mxu0
        %v1777 = vadd.f32 0.0, %v1776
        %v1778 = vpop.f32.mrb[0].mxu0
        %v1779 = vpop.f32.mrb[0].mxu0
        %v1780 = vadd.f32 0.0, %v1779
        %v1781 = vpop.f32.mrb[0].mxu0
        %1782 = vdwg.mxu0
        %v1799 = vunpack.c.l.b16 %v1652
        %v1800 = vunpack.c.l.b16 %v1653
        %v1801 = vunpack.c.l.b16 %v1654
        %v1802 = vunpack.c.l.b16 %v1655
        %v1803 = vunpack.c.l.b16 %v1656
        %v1804 = vunpack.c.l.b16 %v1657
        %v1805 = vunpack.c.l.b16 %v1658
        %v1806 = vunpack.c.l.b16 %v1659
        %v1807 = vunpack.c.l.b16 %v1660
        %v1808 = vunpack.c.l.b16 %v1661
        %v1809 = vunpack.c.l.b16 %v1662
        %v1810 = vunpack.c.l.b16 %v1663
        %v1811 = vunpack.c.l.b16 %v1664
        %v1812 = vunpack.c.l.b16 %v1665
        %v1813 = vunpack.c.l.b16 %v1666
        %v1814 = vunpack.c.l.b16 %v1667
        %v1815 = vpack.c.b16 %v1800, %v1799
        %v1816 = vpack.c.b16 %v1802, %v1801
        %v1817 = vpack.c.b16 %v1804, %v1803
        %v1818 = vpack.c.b16 %v1806, %v1805
        %v1819 = vpack.c.b16 %v1808, %v1807
        %v1820 = vpack.c.b16 %v1810, %v1809
        %v1821 = vpack.c.b16 %v1812, %v1811
        %v1822 = vpack.c.b16 %v1814, %v1813
        %1831 = vmatprep.subr.bf16.mxu0 0
        %1832 = vmatpush1.bf16.msra.mxu0 %v1815
        %1833 = vmatprep.subr.bf16.mxu0 0
        %1834 = vmatpush1.bf16.msra.mxu0 %v1816
        %1835 = vmatprep.subr.bf16.mxu0 0
        %1836 = vmatpush1.bf16.msra.mxu0 %v1817
        %1837 = vmatprep.subr.bf16.mxu0 0
        %1838 = vmatpush1.bf16.msra.mxu0 %v1818
        %1839 = vmatprep.subr.bf16.mxu0 0
        %1840 = vmatpush1.bf16.msra.mxu0 %v1819
        %1841 = vmatprep.subr.bf16.mxu0 0
        %1842 = vmatpush1.bf16.msra.mxu0 %v1820
        %1843 = vmatprep.subr.bf16.mxu0 0
        %1844 = vmatpush1.bf16.msra.mxu0 %v1821
        %1845 = vmatprep.subr.bf16.mxu0 0
        %1846 = vmatpush1.bf16.msra.mxu0 %v1822
        %1847 = vmatprep.subr.bf16.mxu0 0
        %1848 = vmatpush1.bf16.msra.mxu0 0
        %1849 = vmatprep.subr.bf16.mxu0 0
        %1850 = vmatpush1.bf16.msra.mxu0 0
        %1851 = vmatprep.subr.bf16.mxu0 0
        %1852 = vmatpush1.bf16.msra.mxu0 0
        %1853 = vmatprep.subr.bf16.mxu0 0
        %1854 = vmatpush1.bf16.msra.mxu0 0
        %1855 = vmatprep.subr.bf16.mxu0 0
        %1856 = vmatpush1.bf16.msra.mxu0 0
        %1857 = vmatprep.subr.bf16.mxu0 0
        %1858 = vmatpush1.bf16.msra.mxu0 0
        %1859 = vmatprep.subr.bf16.mxu0 0
        %1860 = vmatpush1.bf16.msra.mxu0 0
        %1861 = vmatprep.subr.bf16.mxu0 0
        %1862 = vmatpush1.bf16.msra.mxu0 0
        %1863 = vmatprep.mubr.bf16.mxu0 0
        %1864 = vmatmul.mubr.bf16.gmra.mrb[0].mxu0 %v1650
        %v1865 = vpop.f32.mrb[0].mxu0
        %v1866 = vadd.f32 %v1769, %v1865
        %v1867 = vpop.f32.mrb[0].mxu0
        %v1868 = vpop.f32.mrb[0].mxu0
        %v1869 = vadd.f32 %v1772, %v1868
        %v1870 = vpop.f32.mrb[0].mxu0
        %1871 = vmatprep.mubr.bf16.mxu0 0
        %1872 = vmatmul.mubr.bf16.gmra.mrb[0].mxu0 %v1651
        %v1873 = vpop.f32.mrb[0].mxu0
        %v1874 = vadd.f32 %v1777, %v1873
        %v1875 = vpop.f32.mrb[0].mxu0
        %v1876 = vpop.f32.mrb[0].mxu0
        %v1877 = vadd.f32 %v1780, %v1876
        %v1878 = vpop.f32.mrb[0].mxu0
        %1879 = vdwg.mxu0
        %v1880 = vpack.c.bf16 %v1647, %v1646
        %v1881 = vpack.c.bf16 %v1649, %v1648
        %v1882 = vld [vmem:[#allocation7 + $0x80] sm:$0xf]
        %v1883 = vld [vmem:[#allocation7 + $0x84] sm:$0xf]
        %v1884 = vld [vmem:[#allocation7 + $0x88] sm:$0xf]
        %v1885 = vld [vmem:[#allocation7 + $0x8c] sm:$0xf]
        %v1886 = vld [vmem:[#allocation7 + $0x90] sm:$0xf]
        %v1887 = vld [vmem:[#allocation7 + $0x94] sm:$0xf]
        %v1888 = vld [vmem:[#allocation7 + $0x98] sm:$0xf]
        %v1889 = vld [vmem:[#allocation7 + $0x9c] sm:$0xf]
        %v1890 = vld [vmem:[#allocation7 + $0xa0] sm:$0xf]
        %v1891 = vld [vmem:[#allocation7 + $0xa4] sm:$0xf]
        %v1892 = vld [vmem:[#allocation7 + $0xa8] sm:$0xf]
        %v1893 = vld [vmem:[#allocation7 + $0xac] sm:$0xf]
        %v1894 = vld [vmem:[#allocation7 + $0xb0] sm:$0xf]
        %v1895 = vld [vmem:[#allocation7 + $0xb4] sm:$0xf]
        %v1896 = vld [vmem:[#allocation7 + $0xb8] sm:$0xf]
        %v1897 = vld [vmem:[#allocation7 + $0xbc] sm:$0xf]
        %v1914 = vunpack.c.l.b16 %v1882
        %v1915 = vunpack.c.l.b16 %v1883
        %v1916 = vunpack.c.l.b16 %v1884
        %v1917 = vunpack.c.l.b16 %v1885
        %v1918 = vunpack.c.l.b16 %v1886
        %v1919 = vunpack.c.l.b16 %v1887
        %v1920 = vunpack.c.l.b16 %v1888
        %v1921 = vunpack.c.l.b16 %v1889
        %v1922 = vunpack.c.l.b16 %v1890
        %v1923 = vunpack.c.l.b16 %v1891
        %v1924 = vunpack.c.l.b16 %v1892
        %v1925 = vunpack.c.l.b16 %v1893
        %v1926 = vunpack.c.l.b16 %v1894
        %v1927 = vunpack.c.l.b16 %v1895
        %v1928 = vunpack.c.l.b16 %v1896
        %v1929 = vunpack.c.l.b16 %v1897
        %v1930 = vpack.c.b16 %v1915, %v1914
        %v1931 = vpack.c.b16 %v1917, %v1916
        %v1932 = vpack.c.b16 %v1919, %v1918
        %v1933 = vpack.c.b16 %v1921, %v1920
        %v1934 = vpack.c.b16 %v1923, %v1922
        %v1935 = vpack.c.b16 %v1925, %v1924
        %v1936 = vpack.c.b16 %v1927, %v1926
        %v1937 = vpack.c.b16 %v1929, %v1928
        %1946 = vmatprep.subr.bf16.mxu0 0
        %1947 = vmatpush1.bf16.msra.mxu0 %v1930
        %1948 = vmatprep.subr.bf16.mxu0 0
        %1949 = vmatpush1.bf16.msra.mxu0 %v1931
        %1950 = vmatprep.subr.bf16.mxu0 0
        %1951 = vmatpush1.bf16.msra.mxu0 %v1932
        %1952 = vmatprep.subr.bf16.mxu0 0
        %1953 = vmatpush1.bf16.msra.mxu0 %v1933
        %1954 = vmatprep.subr.bf16.mxu0 0
        %1955 = vmatpush1.bf16.msra.mxu0 %v1934
        %1956 = vmatprep.subr.bf16.mxu0 0
        %1957 = vmatpush1.bf16.msra.mxu0 %v1935
        %1958 = vmatprep.subr.bf16.mxu0 0
        %1959 = vmatpush1.bf16.msra.mxu0 %v1936
        %1960 = vmatprep.subr.bf16.mxu0 0
        %1961 = vmatpush1.bf16.msra.mxu0 %v1937
        %1962 = vmatprep.subr.bf16.mxu0 0
        %1963 = vmatpush1.bf16.msra.mxu0 0
        %1964 = vmatprep.subr.bf16.mxu0 0
        %1965 = vmatpush1.bf16.msra.mxu0 0
        %1966 = vmatprep.subr.bf16.mxu0 0
        %1967 = vmatpush1.bf16.msra.mxu0 0
        %1968 = vmatprep.subr.bf16.mxu0 0
        %1969 = vmatpush1.bf16.msra.mxu0 0
        %1970 = vmatprep.subr.bf16.mxu0 0
        %1971 = vmatpush1.bf16.msra.mxu0 0
        %1972 = vmatprep.subr.bf16.mxu0 0
        %1973 = vmatpush1.bf16.msra.mxu0 0
        %1974 = vmatprep.subr.bf16.mxu0 0
        %1975 = vmatpush1.bf16.msra.mxu0 0
        %1976 = vmatprep.subr.bf16.mxu0 0
        %1977 = vmatpush1.bf16.msra.mxu0 0
        %1978 = vmatprep.mubr.bf16.mxu0 0
        %1979 = vmatmul.mubr.bf16.gmra.mrb[0].mxu0 %v1880
        %v1980 = vpop.f32.mrb[0].mxu0
        %v1981 = vadd.f32 0.0, %v1980
        %v1982 = vpop.f32.mrb[0].mxu0
        %v1983 = vpop.f32.mrb[0].mxu0
        %v1984 = vadd.f32 0.0, %v1983
        %v1985 = vpop.f32.mrb[0].mxu0
        %1986 = vmatprep.mubr.bf16.mxu0 0
        %1987 = vmatmul.mubr.bf16.gmra.mrb[0].mxu0 %v1881
        %v1988 = vpop.f32.mrb[0].mxu0
        %v1989 = vadd.f32 0.0, %v1988
        %v1990 = vpop.f32.mrb[0].mxu0
        %v1991 = vpop.f32.mrb[0].mxu0
        %v1992 = vadd.f32 0.0, %v1991
        %v1993 = vpop.f32.mrb[0].mxu0
        %1994 = vdwg.mxu0
        %v1995 = vadd.f32 %v1866, %v1981
        %v1996 = vadd.f32 %v1869, %v1984
        %v1997 = vadd.f32 %v1874, %v1989
        %v1998 = vadd.f32 %v1877, %v1992
        %v1999 = vld [vmem:[%s6] sm:$0x1]
        %v2001 = vlaneseq
        %v2002 = vshrl.u32 %v2001, 7
        %v2003 = vsub.s32 0, %v2002
        %v2004 = vrot.slane %v1999, %v2003
        %v2006 = vadd.f32 %v1995, %v2004
        %v2007 = vadd.f32 %v1996, %v2004
        %v2008 = vadd.f32 %v1997, %v2004
        %v2009 = vadd.f32 %v1998, %v2004
        %2010 = vmatprep.subr.mxu0 0.0
        %2011 = vmatpush1.msra.mxu0 %v2006
        %2012 = vmatprep.subr.mxu0 0.0
        %2013 = vmatpush1.msra.mxu0 %v2007
        %2014 = vmatprep.subr.mxu0 0.0
        %2015 = vmatpush1.msra.mxu0 %v2008
        %2016 = vmatprep.subr.mxu0 0.0
        %2017 = vmatpush1.msra.mxu0 %v2009
        %2018 = vmatprep.subr.mxu0 0.0
        %2019 = vmatpush1.msra.mxu0 0.0
        %2020 = vmatprep.subr.mxu0 0.0
        %2021 = vmatpush1.msra.mxu0 0.0
        %2022 = vmatprep.subr.mxu0 0.0
        %2023 = vmatpush1.msra.mxu0 0.0
        %2024 = vmatprep.subr.mxu0 0.0
        %2025 = vmatpush1.msra.mxu0 0.0
        %2026 = vmatprep.subr.mxu0 0.0
        %2027 = vmatpush1.msra.mxu0 0.0
        %2028 = vmatprep.subr.mxu0 0.0
        %2029 = vmatpush1.msra.mxu0 0.0
        %2030 = vmatprep.subr.mxu0 0.0
        %2031 = vmatpush1.msra.mxu0 0.0
        %2032 = vmatprep.subr.mxu0 0.0
        %2033 = vmatpush1.msra.mxu0 0.0
        %2034 = vmatprep.subr.mxu0 0.0
        %2035 = vmatpush1.msra.mxu0 0.0
        %2036 = vmatprep.subr.mxu0 0.0
        %2037 = vmatpush1.msra.mxu0 0.0
        %2038 = vmatprep.subr.mxu0 0.0
        %2039 = vmatpush1.msra.mxu0 0.0
        %2040 = vmatprep.subr.mxu0 0.0
        %2041 = vmatpush1.msra.mxu0 0.0
        %2042 = vmatprep.subr.mxu0 0.0
        %2043 = vmatpush1.msra.mxu0 0.0
        %2044 = vmatprep.subr.mxu0 0.0
        %2045 = vmatpush1.msra.mxu0 0.0
        %2046 = vmatprep.subr.mxu0 0.0
        %2047 = vmatpush1.msra.mxu0 0.0
        %2048 = vmatprep.subr.mxu0 0.0
        %2049 = vmatpush1.msra.mxu0 0.0
        %2050 = vmatprep.subr.mxu0 0.0
        %2051 = vmatpush1.msra.mxu0 0.0
        %2052 = vmatprep.subr.mxu0 0.0
        %2053 = vmatpush1.msra.mxu0 0.0
        %2054 = vmatprep.subr.mxu0 0.0
        %2055 = vmatpush1.msra.mxu0 0.0
        %2056 = vmatprep.subr.mxu0 0.0
        %2057 = vmatpush1.msra.mxu0 0.0
        %2058 = vmatprep.subr.mxu0 0.0
        %2059 = vmatpush1.msra.mxu0 0.0
        %2060 = vmatprep.subr.mxu0 0.0
        %2061 = vmatpush1.msra.mxu0 0.0
        %2062 = vmatprep.subr.mxu0 0.0
        %2063 = vmatpush1.msra.mxu0 0.0
        %2064 = vmatprep.subr.mxu0 0.0
        %2065 = vmatpush1.msra.mxu0 0.0
        %2066 = vmatprep.subr.mxu0 0.0
        %2067 = vmatpush1.msra.mxu0 0.0
        %2068 = vmatprep.subr.mxu0 0.0
        %2069 = vmatpush1.msra.mxu0 0.0
        %2070 = vmatprep.subr.mxu0 0.0
        %2071 = vmatpush1.msra.mxu0 0.0
        %2072 = vmatprep.subr.mxu0 0.0
        %2073 = vmatpush1.msra.mxu0 0.0
        %2074 = vmatprep.mubr.f32.mxu0 0.0
        %2075 = vmatmul.mubr.f32.gmra.mrb[0].mxu0 %v1107
        %v2076 = vpop.f32.mrb[0].mxu0
        %v2077 = vadd.f32 0.0, %v2076
        %v2078 = vpop.f32.mrb[0].mxu0
        %2079 = vdwg.mxu0
        %v2080 = vmul.f32 %v2006, %v2006
        %v2081 = vmul.f32 %v2007, %v2007
        %v2082 = vmul.f32 %v2008, %v2008
        %v2083 = vmul.f32 %v2009, %v2009
        %2084 = vmatprep.subr.mxu0 0.0
        %2085 = vmatpush1.msra.mxu0 %v2080
        %2086 = vmatprep.subr.mxu0 0.0
        %2087 = vmatpush1.msra.mxu0 %v2081
        %2088 = vmatprep.subr.mxu0 0.0
        %2089 = vmatpush1.msra.mxu0 %v2082
        %2090 = vmatprep.subr.mxu0 0.0
        %2091 = vmatpush1.msra.mxu0 %v2083
        %2092 = vmatprep.subr.mxu0 0.0
        %2093 = vmatpush1.msra.mxu0 0.0
        %2094 = vmatprep.subr.mxu0 0.0
        %2095 = vmatpush1.msra.mxu0 0.0
        %2096 = vmatprep.subr.mxu0 0.0
        %2097 = vmatpush1.msra.mxu0 0.0
        %2098 = vmatprep.subr.mxu0 0.0
        %2099 = vmatpush1.msra.mxu0 0.0
        %2100 = vmatprep.subr.mxu0 0.0
        %2101 = vmatpush1.msra.mxu0 0.0
        %2102 = vmatprep.subr.mxu0 0.0
        %2103 = vmatpush1.msra.mxu0 0.0
        %2104 = vmatprep.subr.mxu0 0.0
        %2105 = vmatpush1.msra.mxu0 0.0
        %2106 = vmatprep.subr.mxu0 0.0
        %2107 = vmatpush1.msra.mxu0 0.0
        %2108 = vmatprep.subr.mxu0 0.0
        %2109 = vmatpush1.msra.mxu0 0.0
        %2110 = vmatprep.subr.mxu0 0.0
        %2111 = vmatpush1.msra.mxu0 0.0
        %2112 = vmatprep.subr.mxu0 0.0
        %2113 = vmatpush1.msra.mxu0 0.0
        %2114 = vmatprep.subr.mxu0 0.0
        %2115 = vmatpush1.msra.mxu0 0.0
        %2116 = vmatprep.subr.mxu0 0.0
        %2117 = vmatpush1.msra.mxu0 0.0
        %2118 = vmatprep.subr.mxu0 0.0
        %2119 = vmatpush1.msra.mxu0 0.0
        %2120 = vmatprep.subr.mxu0 0.0
        %2121 = vmatpush1.msra.mxu0 0.0
        %2122 = vmatprep.subr.mxu0 0.0
        %2123 = vmatpush1.msra.mxu0 0.0
        %2124 = vmatprep.subr.mxu0 0.0
        %2125 = vmatpush1.msra.mxu0 0.0
        %2126 = vmatprep.subr.mxu0 0.0
        %2127 = vmatpush1.msra.mxu0 0.0
        %2128 = vmatprep.subr.mxu0 0.0
        %2129 = vmatpush1.msra.mxu0 0.0
        %2130 = vmatprep.subr.mxu0 0.0
        %2131 = vmatpush1.msra.mxu0 0.0
        %2132 = vmatprep.subr.mxu0 0.0
        %2133 = vmatpush1.msra.mxu0 0.0
        %2134 = vmatprep.subr.mxu0 0.0
        %2135 = vmatpush1.msra.mxu0 0.0
        %2136 = vmatprep.subr.mxu0 0.0
        %2137 = vmatpush1.msra.mxu0 0.0
        %2138 = vmatprep.subr.mxu0 0.0
        %2139 = vmatpush1.msra.mxu0 0.0
        %2140 = vmatprep.subr.mxu0 0.0
        %2141 = vmatpush1.msra.mxu0 0.0
        %2142 = vmatprep.subr.mxu0 0.0
        %2143 = vmatpush1.msra.mxu0 0.0
        %2144 = vmatprep.subr.mxu0 0.0
        %2145 = vmatpush1.msra.mxu0 0.0
        %2146 = vmatprep.subr.mxu0 0.0
        %2147 = vmatpush1.msra.mxu0 0.0
        %2148 = vmatprep.mubr.f32.mxu0 0.0
        %2149 = vmatmul.mubr.f32.gmra.mrb[0].mxu0 %v1107
        %v2150 = vpop.f32.mrb[0].mxu0
        %v2151 = vadd.f32 0.0, %v2150
        %v2152 = vpop.f32.mrb[0].mxu0
        %2153 = vdwg.mxu0
        %2154 = vmatprep.subr.mxu0 0.0
        %2155 = vmatpush1.msra.mxu0 %v652
        %2156 = vmatprep.subr.mxu0 0.0
        %2157 = vmatpush1.msra.mxu0 %v653
        %2158 = vmatprep.subr.mxu0 0.0
        %2159 = vmatpush1.msra.mxu0 %v654
        %2160 = vmatprep.subr.mxu0 0.0
        %2161 = vmatpush1.msra.mxu0 %v655
        %2162 = vmatprep.subr.mxu0 0.0
        %2163 = vmatpush1.msra.mxu0 %v656
        %2164 = vmatprep.subr.mxu0 0.0
        %2165 = vmatpush1.msra.mxu0 %v657
        %2166 = vmatprep.subr.mxu0 0.0
        %2167 = vmatpush1.msra.mxu0 %v658
        %2168 = vmatprep.subr.mxu0 0.0
        %2169 = vmatpush1.msra.mxu0 %v659
        %2170 = vmatprep.subr.mxu0 0.0
        %2171 = vmatpush1.msra.mxu0 %v660
        %2172 = vmatprep.subr.mxu0 0.0
        %2173 = vmatpush1.msra.mxu0 %v661
        %2174 = vmatprep.subr.mxu0 0.0
        %2175 = vmatpush1.msra.mxu0 %v662
        %2176 = vmatprep.subr.mxu0 0.0
        %2177 = vmatpush1.msra.mxu0 %v663
        %2178 = vmatprep.subr.mxu0 0.0
        %2179 = vmatpush1.msra.mxu0 %v664
        %2180 = vmatprep.subr.mxu0 0.0
        %2181 = vmatpush1.msra.mxu0 %v665
        %2182 = vmatprep.subr.mxu0 0.0
        %2183 = vmatpush1.msra.mxu0 %v666
        %2184 = vmatprep.subr.mxu0 0.0
        %2185 = vmatpush1.msra.mxu0 %v667
        %2186 = vmatprep.subr.mxu0 0.0
        %2187 = vmatpush1.msra.mxu0 0.0
        %2188 = vmatprep.subr.mxu0 0.0
        %2189 = vmatpush1.msra.mxu0 0.0
        %2190 = vmatprep.subr.mxu0 0.0
        %2191 = vmatpush1.msra.mxu0 0.0
        %2192 = vmatprep.subr.mxu0 0.0
        %2193 = vmatpush1.msra.mxu0 0.0
        %2194 = vmatprep.subr.mxu0 0.0
        %2195 = vmatpush1.msra.mxu0 0.0
        %2196 = vmatprep.subr.mxu0 0.0
        %2197 = vmatpush1.msra.mxu0 0.0
        %2198 = vmatprep.subr.mxu0 0.0
        %2199 = vmatpush1.msra.mxu0 0.0
        %2200 = vmatprep.subr.mxu0 0.0
        %2201 = vmatpush1.msra.mxu0 0.0
        %2202 = vmatprep.subr.mxu0 0.0
        %2203 = vmatpush1.msra.mxu0 0.0
        %2204 = vmatprep.subr.mxu0 0.0
        %2205 = vmatpush1.msra.mxu0 0.0
        %2206 = vmatprep.subr.mxu0 0.0
        %2207 = vmatpush1.msra.mxu0 0.0
        %2208 = vmatprep.subr.mxu0 0.0
        %2209 = vmatpush1.msra.mxu0 0.0
        %2210 = vmatprep.subr.mxu0 0.0
        %2211 = vmatpush1.msra.mxu0 0.0
        %2212 = vmatprep.subr.mxu0 0.0
        %2213 = vmatpush1.msra.mxu0 0.0
        %2214 = vmatprep.subr.mxu0 0.0
        %2215 = vmatpush1.msra.mxu0 0.0
        %2216 = vmatprep.subr.mxu0 0.0
        %2217 = vmatpush1.msra.mxu0 0.0
        %2218 = vmatprep.mubr.f32.mxu0 0.0
        %2219 = vmatmul.mubr.f32.gmra.mrb[0].mxu0 %v2077
        %v2220 = vpop.f32.mrb[0].mxu0
        %v2221 = vadd.f32 0.0, %v2220
        %v2222 = vpop.f32.mrb[0].mxu0
        %2223 = vdwg.mxu0
        %2224 = vmatprep.subr.mxu0 0.0
        %2225 = vmatpush1.msra.mxu0 %v652
        %2226 = vmatprep.subr.mxu0 0.0
        %2227 = vmatpush1.msra.mxu0 %v653
        %2228 = vmatprep.subr.mxu0 0.0
        %2229 = vmatpush1.msra.mxu0 %v654
        %2230 = vmatprep.subr.mxu0 0.0
        %2231 = vmatpush1.msra.mxu0 %v655
        %2232 = vmatprep.subr.mxu0 0.0
        %2233 = vmatpush1.msra.mxu0 %v656
        %2234 = vmatprep.subr.mxu0 0.0
        %2235 = vmatpush1.msra.mxu0 %v657
        %2236 = vmatprep.subr.mxu0 0.0
        %2237 = vmatpush1.msra.mxu0 %v658
        %2238 = vmatprep.subr.mxu0 0.0
        %2239 = vmatpush1.msra.mxu0 %v659
        %2240 = vmatprep.subr.mxu0 0.0
        %2241 = vmatpush1.msra.mxu0 %v660
        %2242 = vmatprep.subr.mxu0 0.0
        %2243 = vmatpush1.msra.mxu0 %v661
        %2244 = vmatprep.subr.mxu0 0.0
        %2245 = vmatpush1.msra.mxu0 %v662
        %2246 = vmatprep.subr.mxu0 0.0
        %2247 = vmatpush1.msra.mxu0 %v663
        %2248 = vmatprep.subr.mxu0 0.0
        %2249 = vmatpush1.msra.mxu0 %v664
        %2250 = vmatprep.subr.mxu0 0.0
        %2251 = vmatpush1.msra.mxu0 %v665
        %2252 = vmatprep.subr.mxu0 0.0
        %2253 = vmatpush1.msra.mxu0 %v666
        %2254 = vmatprep.subr.mxu0 0.0
        %2255 = vmatpush1.msra.mxu0 %v667
        %2256 = vmatprep.subr.mxu0 0.0
        %2257 = vmatpush1.msra.mxu0 0.0
        %2258 = vmatprep.subr.mxu0 0.0
        %2259 = vmatpush1.msra.mxu0 0.0
        %2260 = vmatprep.subr.mxu0 0.0
        %2261 = vmatpush1.msra.mxu0 0.0
        %2262 = vmatprep.subr.mxu0 0.0
        %2263 = vmatpush1.msra.mxu0 0.0
        %2264 = vmatprep.subr.mxu0 0.0
        %2265 = vmatpush1.msra.mxu0 0.0
        %2266 = vmatprep.subr.mxu0 0.0
        %2267 = vmatpush1.msra.mxu0 0.0
        %2268 = vmatprep.subr.mxu0 0.0
        %2269 = vmatpush1.msra.mxu0 0.0
        %2270 = vmatprep.subr.mxu0 0.0
        %2271 = vmatpush1.msra.mxu0 0.0
        %2272 = vmatprep.subr.mxu0 0.0
        %2273 = vmatpush1.msra.mxu0 0.0
        %2274 = vmatprep.subr.mxu0 0.0
        %2275 = vmatpush1.msra.mxu0 0.0
        %2276 = vmatprep.subr.mxu0 0.0
        %2277 = vmatpush1.msra.mxu0 0.0
        %2278 = vmatprep.subr.mxu0 0.0
        %2279 = vmatpush1.msra.mxu0 0.0
        %2280 = vmatprep.subr.mxu0 0.0
        %2281 = vmatpush1.msra.mxu0 0.0
        %2282 = vmatprep.subr.mxu0 0.0
        %2283 = vmatpush1.msra.mxu0 0.0
        %2284 = vmatprep.subr.mxu0 0.0
        %2285 = vmatpush1.msra.mxu0 0.0
        %2286 = vmatprep.subr.mxu0 0.0
        %2287 = vmatpush1.msra.mxu0 0.0
        %2288 = vmatprep.mubr.f32.mxu0 0.0
        %2289 = vmatmul.mubr.f32.gmra.mrb[0].mxu0 %v2151
        %v2290 = vpop.f32.mrb[0].mxu0
        %v2291 = vadd.f32 0.0, %v2290
        %v2292 = vpop.f32.mrb[0].mxu0
        %2293 = vdwg.mxu0
        %2294 = vmatprep.subr.mxu0 0.0
        %2295 = vmatpush1.msra.mxu0 %v2221
        %2296 = vmatprep.subr.mxu0 0.0
        %2297 = vmatpush1.msra.mxu0 0.0
        %2298 = vmatprep.subr.mxu0 0.0
        %2299 = vmatpush1.msra.mxu0 0.0
        %2300 = vmatprep.subr.mxu0 0.0
        %2301 = vmatpush1.msra.mxu0 0.0
        %2302 = vmatprep.subr.mxu0 0.0
        %2303 = vmatpush1.msra.mxu0 0.0
        %2304 = vmatprep.subr.mxu0 0.0
        %2305 = vmatpush1.msra.mxu0 0.0
        %2306 = vmatprep.subr.mxu0 0.0
        %2307 = vmatpush1.msra.mxu0 0.0
        %2308 = vmatprep.subr.mxu0 0.0
        %2309 = vmatpush1.msra.mxu0 0.0
        %2310 = vmatprep.subr.mxu0 0.0
        %2311 = vmatpush1.msra.mxu0 0.0
        %2312 = vmatprep.subr.mxu0 0.0
        %2313 = vmatpush1.msra.mxu0 0.0
        %2314 = vmatprep.subr.mxu0 0.0
        %2315 = vmatpush1.msra.mxu0 0.0
        %2316 = vmatprep.subr.mxu0 0.0
        %2317 = vmatpush1.msra.mxu0 0.0
        %2318 = vmatprep.subr.mxu0 0.0
        %2319 = vmatpush1.msra.mxu0 0.0
        %2320 = vmatprep.subr.mxu0 0.0
        %2321 = vmatpush1.msra.mxu0 0.0
        %2322 = vmatprep.subr.mxu0 0.0
        %2323 = vmatpush1.msra.mxu0 0.0
        %2324 = vmatprep.subr.mxu0 0.0
        %2325 = vmatpush1.msra.mxu0 0.0
        %2326 = vmatprep.subr.mxu0 0.0
        %2327 = vmatpush1.msra.mxu0 0.0
        %2328 = vmatprep.subr.mxu0 0.0
        %2329 = vmatpush1.msra.mxu0 0.0
        %2330 = vmatprep.subr.mxu0 0.0
        %2331 = vmatpush1.msra.mxu0 0.0
        %2332 = vmatprep.subr.mxu0 0.0
        %2333 = vmatpush1.msra.mxu0 0.0
        %2334 = vmatprep.subr.mxu0 0.0
        %2335 = vmatpush1.msra.mxu0 0.0
        %2336 = vmatprep.subr.mxu0 0.0
        %2337 = vmatpush1.msra.mxu0 0.0
        %2338 = vmatprep.subr.mxu0 0.0
        %2339 = vmatpush1.msra.mxu0 0.0
        %2340 = vmatprep.subr.mxu0 0.0
        %2341 = vmatpush1.msra.mxu0 0.0
        %2342 = vmatprep.subr.mxu0 0.0
        %2343 = vmatpush1.msra.mxu0 0.0
        %2344 = vmatprep.subr.mxu0 0.0
        %2345 = vmatpush1.msra.mxu0 0.0
        %2346 = vmatprep.subr.mxu0 0.0
        %2347 = vmatpush1.msra.mxu0 0.0
        %2348 = vmatprep.subr.mxu0 0.0
        %2349 = vmatpush1.msra.mxu0 0.0
        %2350 = vmatprep.subr.mxu0 0.0
        %2351 = vmatpush1.msra.mxu0 0.0
        %2352 = vmatprep.subr.mxu0 0.0
        %2353 = vmatpush1.msra.mxu0 0.0
        %2354 = vmatprep.subr.mxu0 0.0
        %2355 = vmatpush1.msra.mxu0 0.0
        %2356 = vmatprep.subr.mxu0 0.0
        %2357 = vmatpush1.msra.mxu0 0.0
        %2358 = vmatprep.mubr.f32.mxu0 0.0
        %2359 = vmatmul.mubr.f32.gmra.mrb[0].mxu0 %v1395
        %v2360 = vpop.f32.mrb[0].mxu0
        %v2361 = vadd.f32 0.0, %v2360
        %v2362 = vpop.f32.mrb[0].mxu0
        %2363 = vmatprep.mubr.f32.mxu0 0.0
        %2364 = vmatmul.mubr.f32.gmra.mrb[0].mxu0 %v1398
        %v2365 = vpop.f32.mrb[0].mxu0
        %v2366 = vadd.f32 0.0, %v2365
        %v2367 = vpop.f32.mrb[0].mxu0
        %2368 = vmatprep.mubr.f32.mxu0 0.0
        %2369 = vmatmul.mubr.f32.gmra.mrb[0].mxu0 %v1401
        %v2370 = vpop.f32.mrb[0].mxu0
        %v2371 = vadd.f32 0.0, %v2370
        %v2372 = vpop.f32.mrb[0].mxu0
        %2373 = vmatprep.mubr.f32.mxu0 0.0
        %2374 = vmatmul.mubr.f32.gmra.mrb[0].mxu0 %v1404
        %v2375 = vpop.f32.mrb[0].mxu0
        %v2376 = vadd.f32 0.0, %v2375
        %v2377 = vpop.f32.mrb[0].mxu0
        %2378 = vdwg.mxu0
        %2379 = vmatprep.subr.mxu0 0.0
        %2380 = vmatpush1.msra.mxu0 %v2291
        %2381 = vmatprep.subr.mxu0 0.0
        %2382 = vmatpush1.msra.mxu0 0.0
        %2383 = vmatprep.subr.mxu0 0.0
        %2384 = vmatpush1.msra.mxu0 0.0
        %2385 = vmatprep.subr.mxu0 0.0
        %2386 = vmatpush1.msra.mxu0 0.0
        %2387 = vmatprep.subr.mxu0 0.0
        %2388 = vmatpush1.msra.mxu0 0.0
        %2389 = vmatprep.subr.mxu0 0.0
        %2390 = vmatpush1.msra.mxu0 0.0
        %2391 = vmatprep.subr.mxu0 0.0
        %2392 = vmatpush1.msra.mxu0 0.0
        %2393 = vmatprep.subr.mxu0 0.0
        %2394 = vmatpush1.msra.mxu0 0.0
        %2395 = vmatprep.subr.mxu0 0.0
        %2396 = vmatpush1.msra.mxu0 0.0
        %2397 = vmatprep.subr.mxu0 0.0
        %2398 = vmatpush1.msra.mxu0 0.0
        %2399 = vmatprep.subr.mxu0 0.0
        %2400 = vmatpush1.msra.mxu0 0.0
        %2401 = vmatprep.subr.mxu0 0.0
        %2402 = vmatpush1.msra.mxu0 0.0
        %2403 = vmatprep.subr.mxu0 0.0
        %2404 = vmatpush1.msra.mxu0 0.0
        %2405 = vmatprep.subr.mxu0 0.0
        %2406 = vmatpush1.msra.mxu0 0.0
        %2407 = vmatprep.subr.mxu0 0.0
        %2408 = vmatpush1.msra.mxu0 0.0
        %2409 = vmatprep.subr.mxu0 0.0
        %2410 = vmatpush1.msra.mxu0 0.0
        %2411 = vmatprep.subr.mxu0 0.0
        %2412 = vmatpush1.msra.mxu0 0.0
        %2413 = vmatprep.subr.mxu0 0.0
        %2414 = vmatpush1.msra.mxu0 0.0
        %2415 = vmatprep.subr.mxu0 0.0
        %2416 = vmatpush1.msra.mxu0 0.0
        %2417 = vmatprep.subr.mxu0 0.0
        %2418 = vmatpush1.msra.mxu0 0.0
        %2419 = vmatprep.subr.mxu0 0.0
        %2420 = vmatpush1.msra.mxu0 0.0
        %2421 = vmatprep.subr.mxu0 0.0
        %2422 = vmatpush1.msra.mxu0 0.0
        %2423 = vmatprep.subr.mxu0 0.0
        %2424 = vmatpush1.msra.mxu0 0.0
        %2425 = vmatprep.subr.mxu0 0.0
        %2426 = vmatpush1.msra.mxu0 0.0
        %2427 = vmatprep.subr.mxu0 0.0
        %2428 = vmatpush1.msra.mxu0 0.0
        %2429 = vmatprep.subr.mxu0 0.0
        %2430 = vmatpush1.msra.mxu0 0.0
        %2431 = vmatprep.subr.mxu0 0.0
        %2432 = vmatpush1.msra.mxu0 0.0
        %2433 = vmatprep.subr.mxu0 0.0
        %2434 = vmatpush1.msra.mxu0 0.0
        %2435 = vmatprep.subr.mxu0 0.0
        %2436 = vmatpush1.msra.mxu0 0.0
        %2437 = vmatprep.subr.mxu0 0.0
        %2438 = vmatpush1.msra.mxu0 0.0
        %2439 = vmatprep.subr.mxu0 0.0
        %2440 = vmatpush1.msra.mxu0 0.0
        %2441 = vmatprep.subr.mxu0 0.0
        %2442 = vmatpush1.msra.mxu0 0.0
        %2443 = vmatprep.mubr.f32.mxu0 0.0
        %2444 = vmatmul.mubr.f32.gmra.mrb[0].mxu0 %v1395
        %v2445 = vpop.f32.mrb[0].mxu0
        %v2446 = vadd.f32 0.0, %v2445
        %v2447 = vpop.f32.mrb[0].mxu0
        %2448 = vmatprep.mubr.f32.mxu0 0.0
        %2449 = vmatmul.mubr.f32.gmra.mrb[0].mxu0 %v1398
        %v2450 = vpop.f32.mrb[0].mxu0
        %v2451 = vadd.f32 0.0, %v2450
        %v2452 = vpop.f32.mrb[0].mxu0
        %2453 = vmatprep.mubr.f32.mxu0 0.0
        %2454 = vmatmul.mubr.f32.gmra.mrb[0].mxu0 %v1401
        %v2455 = vpop.f32.mrb[0].mxu0
        %v2456 = vadd.f32 0.0, %v2455
        %v2457 = vpop.f32.mrb[0].mxu0
        %2458 = vmatprep.mubr.f32.mxu0 0.0
        %2459 = vmatmul.mubr.f32.gmra.mrb[0].mxu0 %v1404
        %v2460 = vpop.f32.mrb[0].mxu0
        %v2461 = vadd.f32 0.0, %v2460
        %v2462 = vpop.f32.mrb[0].mxu0
        %2463 = vdwg.mxu0
        %v2464 = vmul.f32 %v2361, %v2361
        %v2465 = vmul.f32 %v2366, %v2366
        %v2466 = vmul.f32 %v2371, %v2371
        %v2467 = vmul.f32 %v2376, %v2376
        %v2468 = vsub.f32 %v2446, %v2464
        %v2469 = vsub.f32 %v2451, %v2465
        %v2470 = vsub.f32 %v2456, %v2466
        %v2471 = vsub.f32 %v2461, %v2467
        %v2472 = vadd.f32 %v2468, 1e-05
        %v2473 = vadd.f32 %v2469, 1e-05
        %v2474 = vadd.f32 %v2470, 1e-05
        %v2475 = vadd.f32 %v2471, 1e-05
        %v2476 = vrsqrt.pop %v2472
        %v2477 = vrsqrt.pop %v2473
        %v2478 = vrsqrt.pop %v2474
        %v2479 = vrsqrt.pop %v2475
        %v2480 = vsub.f32 %v2006, %v2361
        %v2481 = vsub.f32 %v2007, %v2366
        %v2482 = vsub.f32 %v2008, %v2371
        %v2483 = vsub.f32 %v2009, %v2376
        %v2484 = vmul.f32 %v2480, %v2476
        %v2485 = vmul.f32 %v2481, %v2477
        %v2486 = vmul.f32 %v2482, %v2478
        %v2487 = vmul.f32 %v2483, %v2479
        %v2488 = vld [vmem:[%s7] sm:$0x1]
        %v2490 = vlaneseq
        %v2491 = vshrl.u32 %v2490, 7
        %v2492 = vsub.s32 0, %v2491
        %v2493 = vrot.slane %v2488, %v2492
        %v2495 = vmul.f32 %v2484, %v2493
        %v2496 = vmul.f32 %v2485, %v2493
        %v2497 = vmul.f32 %v2486, %v2493
        %v2498 = vmul.f32 %v2487, %v2493
        %v2499 = vld [vmem:[#allocation8] sm:$0x1]
        %v2501 = vlaneseq
        %v2502 = vshrl.u32 %v2501, 7
        %v2503 = vsub.s32 0, %v2502
        %v2504 = vrot.slane %v2499, %v2503
        %v2506 = vadd.f32 %v2495, %v2504
        %v2507 = vadd.f32 %v2496, %v2504
        %v2508 = vadd.f32 %v2497, %v2504
        %v2509 = vadd.f32 %v2498, %v2504
        %v2510 = vmax.f32 %v2506, 0.0
        %v2511 = vmax.f32 %v2507, 0.0
        %v2512 = vmax.f32 %v2508, 0.0
        %v2513 = vmax.f32 %v2509, 0.0
        %v2514 = vmul.f32 %v2510, %v671
        %v2515 = vmul.f32 %v2511, %v676
        %v2516 = vmul.f32 %v2512, %v681
        %v2517 = vmul.f32 %v2513, %v686
        %v2518 = vrot.slane %v2514, 7
        %v2519 = vrot.slane %v2515, 7
        %v2520 = vrot.slane %v2516, 7
        %v2521 = vrot.slane %v2517, 7
        %v2522 = vsel %vm717, %v2520, %v2521
        %v2523 = vsel %vm717, %v2519, %v2520
        %v2524 = vsel %vm717, %v2518, %v2519
        %v2525 = vsel %vm717, %v2521, %v2518
        %v2526 = vrot.slane %v2514, 1
        %v2527 = vrot.slane %v2515, 1
        %v2528 = vrot.slane %v2516, 1
        %v2529 = vrot.slane %v2517, 1
        %v2530 = vsel %vm726, %v2528, %v2529
        %v2531 = vsel %vm726, %v2527, %v2528
        %v2532 = vsel %vm726, %v2526, %v2527
        %v2533 = vsel %vm726, %v2529, %v2526
        %v2534 = vmul.f32 %v2532, %v701
        %v2535 = vmul.f32 %v2531, %v702
        %v2536 = vmul.f32 %v2530, %v703
        %v2537 = vmul.f32 %v2533, %v704
        %v2538 = vpack.c.bf16 %v2524, %v2525
        %v2539 = vpack.c.bf16 %v2522, %v2523
        %v2540 = vld [vmem:[%s9] sm:$0xf]
        %v2541 = vld [vmem:[%s9 + $0x4] sm:$0xf]
        %v2542 = vld [vmem:[%s9 + $0x8] sm:$0xf]
        %v2543 = vld [vmem:[%s9 + $0xc] sm:$0xf]
        %v2544 = vld [vmem:[%s9 + $0x10] sm:$0xf]
        %v2545 = vld [vmem:[%s9 + $0x14] sm:$0xf]
        %v2546 = vld [vmem:[%s9 + $0x18] sm:$0xf]
        %v2547 = vld [vmem:[%s9 + $0x1c] sm:$0xf]
        %v2548 = vld [vmem:[%s9 + $0x20] sm:$0xf]
        %v2549 = vld [vmem:[%s9 + $0x24] sm:$0xf]
        %v2550 = vld [vmem:[%s9 + $0x28] sm:$0xf]
        %v2551 = vld [vmem:[%s9 + $0x2c] sm:$0xf]
        %v2552 = vld [vmem:[%s9 + $0x30] sm:$0xf]
        %v2553 = vld [vmem:[%s9 + $0x34] sm:$0xf]
        %v2554 = vld [vmem:[%s9 + $0x38] sm:$0xf]
        %v2555 = vld [vmem:[%s9 + $0x3c] sm:$0xf]
        %v2556 = vpack.c.bf16 %v2515, %v2514
        %v2557 = vpack.c.bf16 %v2517, %v2516
        %v2558 = vld [vmem:[%s9 + $0x40] sm:$0xf]
        %v2559 = vld [vmem:[%s9 + $0x44] sm:$0xf]
        %v2560 = vld [vmem:[%s9 + $0x48] sm:$0xf]
        %v2561 = vld [vmem:[%s9 + $0x4c] sm:$0xf]
        %v2562 = vld [vmem:[%s9 + $0x50] sm:$0xf]
        %v2563 = vld [vmem:[%s9 + $0x54] sm:$0xf]
        %v2564 = vld [vmem:[%s9 + $0x58] sm:$0xf]
        %v2565 = vld [vmem:[%s9 + $0x5c] sm:$0xf]
        %v2566 = vld [vmem:[%s9 + $0x60] sm:$0xf]
        %v2567 = vld [vmem:[%s9 + $0x64] sm:$0xf]
        %v2568 = vld [vmem:[%s9 + $0x68] sm:$0xf]
        %v2569 = vld [vmem:[%s9 + $0x6c] sm:$0xf]
        %v2570 = vld [vmem:[%s9 + $0x70] sm:$0xf]
        %v2571 = vld [vmem:[%s9 + $0x74] sm:$0xf]
        %v2572 = vld [vmem:[%s9 + $0x78] sm:$0xf]
        %v2573 = vld [vmem:[%s9 + $0x7c] sm:$0xf]
        %v2590 = vunpack.c.l.b16 %v2558
        %v2591 = vunpack.c.l.b16 %v2559
        %v2592 = vunpack.c.l.b16 %v2560
        %v2593 = vunpack.c.l.b16 %v2561
        %v2594 = vunpack.c.l.b16 %v2562
        %v2595 = vunpack.c.l.b16 %v2563
        %v2596 = vunpack.c.l.b16 %v2564
        %v2597 = vunpack.c.l.b16 %v2565
        %v2598 = vunpack.c.l.b16 %v2566
        %v2599 = vunpack.c.l.b16 %v2567
        %v2600 = vunpack.c.l.b16 %v2568
        %v2601 = vunpack.c.l.b16 %v2569
        %v2602 = vunpack.c.l.b16 %v2570
        %v2603 = vunpack.c.l.b16 %v2571
        %v2604 = vunpack.c.l.b16 %v2572
        %v2605 = vunpack.c.l.b16 %v2573
        %v2606 = vpack.c.b16 %v2591, %v2590
        %v2607 = vpack.c.b16 %v2593, %v2592
        %v2608 = vpack.c.b16 %v2595, %v2594
        %v2609 = vpack.c.b16 %v2597, %v2596
        %v2610 = vpack.c.b16 %v2599, %v2598
        %v2611 = vpack.c.b16 %v2601, %v2600
        %v2612 = vpack.c.b16 %v2603, %v2602
        %v2613 = vpack.c.b16 %v2605, %v2604
        %2622 = vmatprep.subr.bf16.mxu0 0
        %2623 = vmatpush1.bf16.msra.mxu0 %v2606
        %2624 = vmatprep.subr.bf16.mxu0 0
        %2625 = vmatpush1.bf16.msra.mxu0 %v2607
        %2626 = vmatprep.subr.bf16.mxu0 0
        %2627 = vmatpush1.bf16.msra.mxu0 %v2608
        %2628 = vmatprep.subr.bf16.mxu0 0
        %2629 = vmatpush1.bf16.msra.mxu0 %v2609
        %2630 = vmatprep.subr.bf16.mxu0 0
        %2631 = vmatpush1.bf16.msra.mxu0 %v2610
        %2632 = vmatprep.subr.bf16.mxu0 0
        %2633 = vmatpush1.bf16.msra.mxu0 %v2611
        %2634 = vmatprep.subr.bf16.mxu0 0
        %2635 = vmatpush1.bf16.msra.mxu0 %v2612
        %2636 = vmatprep.subr.bf16.mxu0 0
        %2637 = vmatpush1.bf16.msra.mxu0 %v2613
        %2638 = vmatprep.subr.bf16.mxu0 0
        %2639 = vmatpush1.bf16.msra.mxu0 0
        %2640 = vmatprep.subr.bf16.mxu0 0
        %2641 = vmatpush1.bf16.msra.mxu0 0
        %2642 = vmatprep.subr.bf16.mxu0 0
        %2643 = vmatpush1.bf16.msra.mxu0 0
        %2644 = vmatprep.subr.bf16.mxu0 0
        %2645 = vmatpush1.bf16.msra.mxu0 0
        %2646 = vmatprep.subr.bf16.mxu0 0
        %2647 = vmatpush1.bf16.msra.mxu0 0
        %2648 = vmatprep.subr.bf16.mxu0 0
        %2649 = vmatpush1.bf16.msra.mxu0 0
        %2650 = vmatprep.subr.bf16.mxu0 0
        %2651 = vmatpush1.bf16.msra.mxu0 0
        %2652 = vmatprep.subr.bf16.mxu0 0
        %2653 = vmatpush1.bf16.msra.mxu0 0
        %2654 = vmatprep.mubr.bf16.mxu0 0
        %2655 = vmatmul.mubr.bf16.gmra.mrb[0].mxu0 %v2556
        %v2656 = vpop.f32.mrb[0].mxu0
        %v2657 = vadd.f32 0.0, %v2656
        %v2658 = vpop.f32.mrb[0].mxu0
        %v2659 = vpop.f32.mrb[0].mxu0
        %v2660 = vadd.f32 0.0, %v2659
        %v2661 = vpop.f32.mrb[0].mxu0
        %2662 = vmatprep.mubr.bf16.mxu0 0
        %2663 = vmatmul.mubr.bf16.gmra.mrb[0].mxu0 %v2557
        %v2664 = vpop.f32.mrb[0].mxu0
        %v2665 = vadd.f32 0.0, %v2664
        %v2666 = vpop.f32.mrb[0].mxu0
        %v2667 = vpop.f32.mrb[0].mxu0
        %v2668 = vadd.f32 0.0, %v2667
        %v2669 = vpop.f32.mrb[0].mxu0
        %2670 = vdwg.mxu0
        %v2687 = vunpack.c.l.b16 %v2540
        %v2688 = vunpack.c.l.b16 %v2541
        %v2689 = vunpack.c.l.b16 %v2542
        %v2690 = vunpack.c.l.b16 %v2543
        %v2691 = vunpack.c.l.b16 %v2544
        %v2692 = vunpack.c.l.b16 %v2545
        %v2693 = vunpack.c.l.b16 %v2546
        %v2694 = vunpack.c.l.b16 %v2547
        %v2695 = vunpack.c.l.b16 %v2548
        %v2696 = vunpack.c.l.b16 %v2549
        %v2697 = vunpack.c.l.b16 %v2550
        %v2698 = vunpack.c.l.b16 %v2551
        %v2699 = vunpack.c.l.b16 %v2552
        %v2700 = vunpack.c.l.b16 %v2553
        %v2701 = vunpack.c.l.b16 %v2554
        %v2702 = vunpack.c.l.b16 %v2555
        %v2703 = vpack.c.b16 %v2688, %v2687
        %v2704 = vpack.c.b16 %v2690, %v2689
        %v2705 = vpack.c.b16 %v2692, %v2691
        %v2706 = vpack.c.b16 %v2694, %v2693
        %v2707 = vpack.c.b16 %v2696, %v2695
        %v2708 = vpack.c.b16 %v2698, %v2697
        %v2709 = vpack.c.b16 %v2700, %v2699
        %v2710 = vpack.c.b16 %v2702, %v2701
        %2719 = vmatprep.subr.bf16.mxu0 0
        %2720 = vmatpush1.bf16.msra.mxu0 %v2703
        %2721 = vmatprep.subr.bf16.mxu0 0
        %2722 = vmatpush1.bf16.msra.mxu0 %v2704
        %2723 = vmatprep.subr.bf16.mxu0 0
        %2724 = vmatpush1.bf16.msra.mxu0 %v2705
        %2725 = vmatprep.subr.bf16.mxu0 0
        %2726 = vmatpush1.bf16.msra.mxu0 %v2706
        %2727 = vmatprep.subr.bf16.mxu0 0
        %2728 = vmatpush1.bf16.msra.mxu0 %v2707
        %2729 = vmatprep.subr.bf16.mxu0 0
        %2730 = vmatpush1.bf16.msra.mxu0 %v2708
        %2731 = vmatprep.subr.bf16.mxu0 0
        %2732 = vmatpush1.bf16.msra.mxu0 %v2709
        %2733 = vmatprep.subr.bf16.mxu0 0
        %2734 = vmatpush1.bf16.msra.mxu0 %v2710
        %2735 = vmatprep.subr.bf16.mxu0 0
        %2736 = vmatpush1.bf16.msra.mxu0 0
        %2737 = vmatprep.subr.bf16.mxu0 0
        %2738 = vmatpush1.bf16.msra.mxu0 0
        %2739 = vmatprep.subr.bf16.mxu0 0
        %2740 = vmatpush1.bf16.msra.mxu0 0
        %2741 = vmatprep.subr.bf16.mxu0 0
        %2742 = vmatpush1.bf16.msra.mxu0 0
        %2743 = vmatprep.subr.bf16.mxu0 0
        %2744 = vmatpush1.bf16.msra.mxu0 0
        %2745 = vmatprep.subr.bf16.mxu0 0
        %2746 = vmatpush1.bf16.msra.mxu0 0
        %2747 = vmatprep.subr.bf16.mxu0 0
        %2748 = vmatpush1.bf16.msra.mxu0 0
        %2749 = vmatprep.subr.bf16.mxu0 0
        %2750 = vmatpush1.bf16.msra.mxu0 0
        %2751 = vmatprep.mubr.bf16.mxu0 0
        %2752 = vmatmul.mubr.bf16.gmra.mrb[0].mxu0 %v2538
        %v2753 = vpop.f32.mrb[0].mxu0
        %v2754 = vadd.f32 %v2657, %v2753
        %v2755 = vpop.f32.mrb[0].mxu0
        %v2756 = vpop.f32.mrb[0].mxu0
        %v2757 = vadd.f32 %v2660, %v2756
        %v2758 = vpop.f32.mrb[0].mxu0
        %2759 = vmatprep.mubr.bf16.mxu0 0
        %2760 = vmatmul.mubr.bf16.gmra.mrb[0].mxu0 %v2539
        %v2761 = vpop.f32.mrb[0].mxu0
        %v2762 = vadd.f32 %v2665, %v2761
        %v2763 = vpop.f32.mrb[0].mxu0
        %v2764 = vpop.f32.mrb[0].mxu0
        %v2765 = vadd.f32 %v2668, %v2764
        %v2766 = vpop.f32.mrb[0].mxu0
        %2767 = vdwg.mxu0
        %v2768 = vpack.c.bf16 %v2535, %v2534
        %v2769 = vpack.c.bf16 %v2537, %v2536
        %v2770 = vld [vmem:[%s9 + $0x80] sm:$0xf]
        %v2771 = vld [vmem:[%s9 + $0x84] sm:$0xf]
        %v2772 = vld [vmem:[%s9 + $0x88] sm:$0xf]
        %v2773 = vld [vmem:[%s9 + $0x8c] sm:$0xf]
        %v2774 = vld [vmem:[%s9 + $0x90] sm:$0xf]
        %v2775 = vld [vmem:[%s9 + $0x94] sm:$0xf]
        %v2776 = vld [vmem:[%s9 + $0x98] sm:$0xf]
        %v2777 = vld [vmem:[%s9 + $0x9c] sm:$0xf]
        %v2778 = vld [vmem:[%s9 + $0xa0] sm:$0xf]
        %v2779 = vld [vmem:[%s9 + $0xa4] sm:$0xf]
        %v2780 = vld [vmem:[%s9 + $0xa8] sm:$0xf]
        %v2781 = vld [vmem:[%s9 + $0xac] sm:$0xf]
        %v2782 = vld [vmem:[%s9 + $0xb0] sm:$0xf]
        %v2783 = vld [vmem:[%s9 + $0xb4] sm:$0xf]
        %v2784 = vld [vmem:[%s9 + $0xb8] sm:$0xf]
        %v2785 = vld [vmem:[%s9 + $0xbc] sm:$0xf]
        %v2802 = vunpack.c.l.b16 %v2770
        %v2803 = vunpack.c.l.b16 %v2771
        %v2804 = vunpack.c.l.b16 %v2772
        %v2805 = vunpack.c.l.b16 %v2773
        %v2806 = vunpack.c.l.b16 %v2774
        %v2807 = vunpack.c.l.b16 %v2775
        %v2808 = vunpack.c.l.b16 %v2776
        %v2809 = vunpack.c.l.b16 %v2777
        %v2810 = vunpack.c.l.b16 %v2778
        %v2811 = vunpack.c.l.b16 %v2779
        %v2812 = vunpack.c.l.b16 %v2780
        %v2813 = vunpack.c.l.b16 %v2781
        %v2814 = vunpack.c.l.b16 %v2782
        %v2815 = vunpack.c.l.b16 %v2783
        %v2816 = vunpack.c.l.b16 %v2784
        %v2817 = vunpack.c.l.b16 %v2785
        %v2818 = vpack.c.b16 %v2803, %v2802
        %v2819 = vpack.c.b16 %v2805, %v2804
        %v2820 = vpack.c.b16 %v2807, %v2806
        %v2821 = vpack.c.b16 %v2809, %v2808
        %v2822 = vpack.c.b16 %v2811, %v2810
        %v2823 = vpack.c.b16 %v2813, %v2812
        %v2824 = vpack.c.b16 %v2815, %v2814
        %v2825 = vpack.c.b16 %v2817, %v2816
        %2834 = vmatprep.subr.bf16.mxu0 0
        %2835 = vmatpush1.bf16.msra.mxu0 %v2818
        %2836 = vmatprep.subr.bf16.mxu0 0
        %2837 = vmatpush1.bf16.msra.mxu0 %v2819
        %2838 = vmatprep.subr.bf16.mxu0 0
        %2839 = vmatpush1.bf16.msra.mxu0 %v2820
        %2840 = vmatprep.subr.bf16.mxu0 0
        %2841 = vmatpush1.bf16.msra.mxu0 %v2821
        %2842 = vmatprep.subr.bf16.mxu0 0
        %2843 = vmatpush1.bf16.msra.mxu0 %v2822
        %2844 = vmatprep.subr.bf16.mxu0 0
        %2845 = vmatpush1.bf16.msra.mxu0 %v2823
        %2846 = vmatprep.subr.bf16.mxu0 0
        %2847 = vmatpush1.bf16.msra.mxu0 %v2824
        %2848 = vmatprep.subr.bf16.mxu0 0
        %2849 = vmatpush1.bf16.msra.mxu0 %v2825
        %2850 = vmatprep.subr.bf16.mxu0 0
        %2851 = vmatpush1.bf16.msra.mxu0 0
        %2852 = vmatprep.subr.bf16.mxu0 0
        %2853 = vmatpush1.bf16.msra.mxu0 0
        %2854 = vmatprep.subr.bf16.mxu0 0
        %2855 = vmatpush1.bf16.msra.mxu0 0
        %2856 = vmatprep.subr.bf16.mxu0 0
        %2857 = vmatpush1.bf16.msra.mxu0 0
        %2858 = vmatprep.subr.bf16.mxu0 0
        %2859 = vmatpush1.bf16.msra.mxu0 0
        %2860 = vmatprep.subr.bf16.mxu0 0
        %2861 = vmatpush1.bf16.msra.mxu0 0
        %2862 = vmatprep.subr.bf16.mxu0 0
        %2863 = vmatpush1.bf16.msra.mxu0 0
        %2864 = vmatprep.subr.bf16.mxu0 0
        %2865 = vmatpush1.bf16.msra.mxu0 0
        %2866 = vmatprep.mubr.bf16.mxu0 0
        %2867 = vmatmul.mubr.bf16.gmra.mrb[0].mxu0 %v2768
        %v2868 = vpop.f32.mrb[0].mxu0
        %v2869 = vadd.f32 0.0, %v2868
        %v2870 = vpop.f32.mrb[0].mxu0
        %v2871 = vpop.f32.mrb[0].mxu0
        %v2872 = vadd.f32 0.0, %v2871
        %v2873 = vpop.f32.mrb[0].mxu0
        %2874 = vmatprep.mubr.bf16.mxu0 0
        %2875 = vmatmul.mubr.bf16.gmra.mrb[0].mxu0 %v2769
        %v2876 = vpop.f32.mrb[0].mxu0
        %v2877 = vadd.f32 0.0, %v2876
        %v2878 = vpop.f32.mrb[0].mxu0
        %v2879 = vpop.f32.mrb[0].mxu0
        %v2880 = vadd.f32 0.0, %v2879
        %v2881 = vpop.f32.mrb[0].mxu0
        %2882 = vdwg.mxu0
        %v2883 = vadd.f32 %v2754, %v2869
        %v2884 = vadd.f32 %v2757, %v2872
        %v2885 = vadd.f32 %v2762, %v2877
        %v2886 = vadd.f32 %v2765, %v2880
        %v2887 = vld [vmem:[#allocation10] sm:$0x1]
        %v2889 = vlaneseq
        %v2890 = vshrl.u32 %v2889, 7
        %v2891 = vsub.s32 0, %v2890
        %v2892 = vrot.slane %v2887, %v2891
        %v2894 = vadd.f32 %v2883, %v2892
        %v2895 = vadd.f32 %v2884, %v2892
        %v2896 = vadd.f32 %v2885, %v2892
        %v2897 = vadd.f32 %v2886, %v2892
        %2898 = vset.pattern.permute.xlu0 1
        %2899 = vperm.xlu0 %2898, %v643
        %v2900 = vpop.permute.xlu0 %2899
        %2902 = vset.pattern.permute.xlu0 1
        %2903 = vperm.xlu0 %2902, %v644
        %v2904 = vpop.permute.xlu0 %2903
        %2906 = vset.pattern.permute.xlu0 1
        %2907 = vperm.xlu0 %2906, %v645
        %v2908 = vpop.permute.xlu0 %2907
        %2910 = vset.pattern.permute.xlu0 1
        %2911 = vperm.xlu0 %2910, %v646
        %v2912 = vpop.permute.xlu0 %2911
        %v2914 = vmul.f32 %v2894, %v2900
        %v2915 = vmul.f32 %v2895, %v2904
        %v2916 = vmul.f32 %v2896, %v2908
        %v2917 = vmul.f32 %v2897, %v2912
        %v2918 = vmul.f32 %v2914, 1.442695
        %v2919 = vpow.pop %v2918
        %v2920 = vmul.f32 %v2915, 1.442695
        %v2921 = vpow.pop %v2920
        %v2922 = vmul.f32 %v2916, 1.442695
        %v2923 = vpow.pop %v2922
        %v2924 = vmul.f32 %v2917, 1.442695
        %v2925 = vpow.pop %v2924
        %2926 = vst [vmem:[%s633] sm:$0xff] %v2919
        %2927 = vst [vmem:[%s633 + $0x8] sm:$0xff] %v2921
        %2928 = vst [vmem:[%s633 + $0x10] sm:$0xff] %v2923
        %2929 = vst [vmem:[%s633 + $0x18] sm:$0xff] %v2925
        %s2930 = sand.u32 %s375, 1
        %s2931 = scalar_lea.sflag [#allocation4], %s2930
        %s2932 = sand.u32 %s375, 1
        %s2933 = smul.addr %s2932, 32
        %s2934 = scalar_lea.vmem [#allocation14], %s2933
        // Predicated region
        $region109: #{tpu_custom_call.1} parent=79 // pred_check
          %p2935 = pneg %p385
        $region110: #{tpu_custom_call.1} parent=79 // pred_check_branch
          %2937 = sbr.rel (%p2935) target = $region112
        $region111: #{tpu_custom_call.1} parent=79 // pred_region
          %s2938 = smul.u32 4, %s37
          %s2940 = ssub.s32 512, 512
          %2941 = vsyncadd %s2931, %s2940
          %s2942 = smul.addr %s2938, 128
          %s2943 = scalar_lea.hbm %s15, %s2942
          %s2944 = sshll.u32 %s2934, 4
          %s2945 = int_to_ptr.vmem [resolvable:$true] %s2944
          %2950 = dma.vmem_to_hbm [thread:$0]  %s2945, 512, %s2943, %s2931, 128, 128, 8
        $region112: #{tpu_custom_call.1} parent=79 // pred_fallthru
          _
      $region80: #{tpu_custom_call.1} parent=5 // pred_fallthru
        _
      %p2951 = scmp.le.s32.totalorder 2, %s32
      // Predicated region
      $region113: #{tpu_custom_call.1} parent=5 // pred_check
        %p2952 = pneg %p2951
      $region114: #{tpu_custom_call.1} parent=5 // pred_check_branch
        %2954 = sbr.rel (%p2952) target = $region116
      $region115: #{tpu_custom_call.1} parent=5 // pred_region
        %s2955 = ssub.s32 %s32, 2
        // Predicated region
        $region117: #{tpu_custom_call.1} parent=115 // pred_check
          %p2956 = pneg %p391
        $region118: #{tpu_custom_call.1} parent=115 // pred_check_branch
          %2958 = sbr.rel (%p2956) target = $region120
        $region119: #{tpu_custom_call.1} parent=115 // pred_region
          %s2959 = sand.u32 %s376, 1
          %s2960 = scalar_lea.sflag [#allocation4], %s2959
          %s2961 = sand.u32 %s376, 1
          %s2962 = smul.addr %s2961, 32
          %s2963 = scalar_lea.vmem [#allocation14], %s2962
          %2964 = dma.done %s2960, 512
        $region120: #{tpu_custom_call.1} parent=115 // pred_fallthru
          _
      $region116: #{tpu_custom_call.1} parent=5 // pred_fallthru
        _
    $region6: #{tpu_custom_call.1} parent=1 // loop_footer
      %s36 = sadd.s32 1, %s32
    $region7: #{tpu_custom_call.1} parent=1 // loop_footer_branch
      %31 = sbr.rel target = $region3
    $region8: #{tpu_custom_call.1} parent=1 // loop_exit
      _
    %2965 = vsyncpa [#allocation3], 1
    %s2966 = scalar_lea.sflag [#allocation3], 1
    %2967 = vsyncpa %s2966, 1
    %2968 = vsyncpa [#allocation6], 1
    %2969 = vsyncpa [#allocation9], 1
    %2970 = vsyncpa [#allocation12], 1
    %s2971 = scalar_lea.sflag [#allocation12], 1
    %2972 = vsyncpa %s2971, 1
    %2973 = vsyncpa [#allocation4], 1
    %s2974 = scalar_lea.sflag [#allocation4], 1
    %2975 = vsyncpa %s2974, 1

</llo_original>
